<compile_context>
chip_gen: v5e
topology: v5e:2x2
jax: 0.10.0
libtpu: 0.0.40
codegen_flags: <defaults>
</compile_context>

<pallas_src>
import math

import jax
import jax.numpy as jnp
from jax import lax
from jax.experimental import pallas as pl

HIDDEN = 32
NUM_HEADS = 4
HEAD_DIM = HIDDEN // NUM_HEADS
INTERMEDIATE = 64
NUM_LAYERS = 2            # config.num_hidden_layers = 2 (set in __init__)
LN_EPS = 1e-12
NEG_BIG = -1e30           # additive bias for padded / cross-batch key positions

# ---- packed-parameter row layout (one weight DMA + one vector DMA) ----------
PACK_LANES = 128
W_QKV = 0                                   # (H, 3H)
W_ATT_OUT = HIDDEN                          # (H, H)
W_FFN_IN = 2 * HIDDEN                       # (H, I)
W_FFN_OUT = 3 * HIDDEN                      # (I, H)
W_LAYER_ROWS = 3 * HIDDEN + INTERMEDIATE    # 160 rows per layer
W_POOL = NUM_LAYERS * W_LAYER_ROWS          # pooler dense (H, H)
W_TOTAL_ROWS = W_POOL + HIDDEN              # 352 (multiple of 8)

V_LAYER_ROWS = 8     # bqkv, bo, g1, b1, bi, bo2, g2, b2 -> one 128-lane row each
V_POOL = NUM_LAYERS * V_LAYER_ROWS          # row holding the pooler bias
V_TOTAL_ROWS = ((V_POOL + 1 + 7) // 8) * 8  # 24


def _layernorm(x, gamma, beta):
    mean = jnp.mean(x, axis=-1, keepdims=True)
    var = jnp.mean((x - mean) ** 2, axis=-1, keepdims=True)
    return (x - mean) * lax.rsqrt(var + LN_EPS) * gamma + beta


def _gelu_exact(x):
    return 0.5 * x * (1.0 + lax.erf(x / math.sqrt(2.0)))


def fused_pooling_kernel(x_ref, bias_ref, w_ref, vec_ref, out_ref):
    """Padded CLS slab -> 2 BERT layers -> pooler, everything in VMEM."""
    B, H = out_ref.shape
    rows = x_ref.shape[0]            # B * S_pad, sublane aligned
    s_pad = rows // B
    scale = 1.0 / math.sqrt(HEAD_DIM)

    h = x_ref[...]                   # (rows, H)
    bias_full = bias_ref[...]        # (rows, rows) — hoisted once, reused everywhere

    for l in range(NUM_LAYERS):      # static unroll over the 2 layers
        wb = l * W_LAYER_ROWS
        vb = l * V_LAYER_ROWS
        wqkv = w_ref[wb + W_QKV: wb + W_QKV + H, 0:3 * H]
        wo = w_ref[wb + W_ATT_OUT: wb + W_ATT_OUT + H, 0:H]
        wi = w_ref[wb + W_FFN_IN: wb + W_FFN_IN + H, 0:INTERMEDIATE]
        wo2 = w_ref[wb + W_FFN_OUT: wb + W_FFN_OUT + INTERMEDIATE, 0:H]
        bqkv = vec_ref[vb + 0: vb + 1, 0:3 * H]
        bo = vec_ref[vb + 1: vb + 2, 0:H]
        g1 = vec_ref[vb + 2: vb + 3, 0:H]
        b1 = vec_ref[vb + 3: vb + 4, 0:H]
        bi = vec_ref[vb + 4: vb + 5, 0:INTERMEDIATE]
        bo2 = vec_ref[vb + 5: vb + 6, 0:H]
        g2 = vec_ref[vb + 6: vb + 7, 0:H]
        b2 = vec_ref[vb + 7: vb + 8, 0:H]

        # Fused Q/K/V projection: one (rows, H) @ (H, 3H) matmul.
        qkv = jnp.dot(h, wqkv, preferred_element_type=jnp.float32) + bqkv

        # Multi-head attention over the whole (all-batches) slab; cross-batch
        # and padded-key pairs are killed by the -1e30 entries of bias_full.
        heads = []
        for n in range(NUM_HEADS):
            c = n * HEAD_DIM
            qh = qkv[:, c:c + HEAD_DIM]
            kh = qkv[:, H + c:H + c + HEAD_DIM]
            vh = qkv[:, 2 * H + c:2 * H + c + HEAD_DIM]
            # contraction over HEAD_DIM without materializing kh.T
            s = lax.dot_general(qh, kh, (((1,), (1,)), ((), ())),
                                preferred_element_type=jnp.float32)
            s = s * scale + bias_full
            s = s - jnp.max(s, axis=-1, keepdims=True)
            p = jnp.exp(s)
            p = p / jnp.sum(p, axis=-1, keepdims=True)      # exact softmax
            heads.append(jnp.dot(p, vh, preferred_element_type=jnp.float32))
        ctx = jnp.concatenate(heads, axis=-1)               # (rows, H)

        # BertSelfOutput: dense + residual + LayerNorm.
        attn = jnp.dot(ctx, wo, preferred_element_type=jnp.float32) + bo
        h1 = _layernorm(attn + h, g1, b1)

        # BertIntermediate (exact GELU) + BertOutput: dense + residual + LN.
        inter = _gelu_exact(jnp.dot(h1, wi, preferred_element_type=jnp.float32) + bi)
        ffn = jnp.dot(inter, wo2, preferred_element_type=jnp.float32) + bo2
        h = _layernorm(ffn + h1, g2, b2)

    # BertPooler: dense on the full aligned slab, then gather the (8-aligned)
    # CLS rows (0, s_pad, 2*s_pad, ...) and apply tanh.
    wpool = w_ref[W_POOL: W_POOL + H, 0:H]
    bpool = vec_ref[V_POOL: V_POOL + 1, 0:H]
    pooled = jnp.dot(h, wpool, preferred_element_type=jnp.float32) + bpool
    cls = jnp.concatenate(
        [pooled[b * s_pad: b * s_pad + 1, :] for b in range(B)], axis=0)
    out_ref[...] = jnp.tanh(cls)


def global_mask_transformer_pooling_1d(x, params, mask=None):
    B, S, H = x.shape
    assert H == HIDDEN
    s_pad = ((S + 1 + 7) // 8) * 8          # CLS + sequence, padded to sublane multiple
    rows = B * s_pad
    x = x.astype(jnp.float32)

    # Host-side CLS prepend + zero padding -> aligned (rows, H) slab.
    cls = jnp.broadcast_to(params["cls_emb"].reshape(1, 1, H), (B, 1, H))
    pad = jnp.zeros((B, s_pad - S - 1, H), jnp.float32)
    slab = jnp.concatenate([cls, x, pad], axis=1).reshape(rows, H)

    # Full additive-bias matrix:
    #   * raw 0/1 mask values are ADDED to the scores (exact reference behavior
    #     of calling BertEncoder directly),
    #   * padded keys and cross-batch pairs get -1e30 so they contribute ~0
    #     probability, which lets all batches share one attention matmul.
    if mask is not None:
        key_bias = jnp.concatenate(
            [jnp.ones((B, 1), jnp.float32), mask.astype(jnp.float32)], axis=1)
    else:
        key_bias = jnp.zeros((B, S + 1), jnp.float32)
    key_bias = jnp.concatenate(
        [key_bias, jnp.full((B, s_pad - S - 1), NEG_BIG, jnp.float32)], axis=1)
    batch_of = jnp.arange(rows) // s_pad
    same = batch_of[:, None] == batch_of[None, :]
    bias_full = jnp.where(same, key_bias.reshape(-1)[None, :], NEG_BIG)

    # Advisory cost estimate for the XLA scheduler.
    flops_layer = (2 * rows * H * 3 * H
                   + NUM_HEADS * 2 * 2 * rows * rows * HEAD_DIM
                   + 2 * rows * H * H
                   + 2 * rows * H * INTERMEDIATE
                   + 2 * rows * INTERMEDIATE * H)
    flops = NUM_LAYERS * flops_layer + 2 * rows * H * H
    transcendentals = (NUM_LAYERS * (NUM_HEADS * rows * rows + rows * INTERMEDIATE)
                       + B * H)
    bytes_accessed = 4 * (slab.size + rows * rows
                          + params["w_pack"].size + params["vec_pack"].size + B * H)

    return pl.pallas_call(
        fused_pooling_kernel,
        out_shape=jax.ShapeDtypeStruct((B, H), jnp.float32),
        cost_estimate=pl.CostEstimate(flops=flops,
                                      transcendentals=transcendentals,
                                      bytes_accessed=bytes_accessed),
    )(slab, bias_full, params["w_pack"], params["vec_pack"])


def pack_params(layers, wp, bp):
    """Pack all layer weights / vectors into two DMA-friendly buffers."""
    w_pack = jnp.zeros((W_TOTAL_ROWS, PACK_LANES), jnp.float32)
    vec_pack = jnp.zeros((V_TOTAL_ROWS, PACK_LANES), jnp.float32)

    def put_w(buf, r0, w):
        return buf.at[r0:r0 + w.shape[0], 0:w.shape[1]].set(w)

    def put_v(buf, r, v):
        return buf.at[r, 0:v.shape[0]].set(v)

    for l, p in enumerate(layers):
        wb = l * W_LAYER_ROWS
        w_pack = put_w(w_pack, wb + W_QKV, p["wqkv"])
        w_pack = put_w(w_pack, wb + W_ATT_OUT, p["wo"])
        w_pack = put_w(w_pack, wb + W_FFN_IN, p["wi"])
        w_pack = put_w(w_pack, wb + W_FFN_OUT, p["wo2"])
        vb = l * V_LAYER_ROWS
        for i, name in enumerate(("bqkv", "bo", "g1", "b1", "bi", "bo2", "g2", "b2")):
            vec_pack = put_v(vec_pack, vb + i, p[name])
    w_pack = put_w(w_pack, W_POOL, wp)
    vec_pack = put_v(vec_pack, V_POOL, bp)
    return {"w_pack": w_pack, "vec_pack": vec_pack}


def init_params(key):
    keys = iter(jax.random.split(key, 32))

    def dense(k, fan_in, fan_out):
        return jax.random.normal(k, (fan_in, fan_out), jnp.float32) * 0.02

    def vec(k, n, scale=0.02):
        return jax.random.normal(k, (n,), jnp.float32) * scale

    cls_emb = jax.random.truncated_normal(
        next(keys), -2.0, 2.0, (1, HIDDEN), jnp.float32) * 0.02

    layers = []
    for _ in range(NUM_LAYERS):
        wq = dense(next(keys), HIDDEN, HIDDEN)
        wk = dense(next(keys), HIDDEN, HIDDEN)
        wv = dense(next(keys), HIDDEN, HIDDEN)
        layers.append(dict(
            wqkv=jnp.concatenate([wq, wk, wv], axis=1),   # (H, 3H) fused QKV
            bqkv=vec(next(keys), 3 * HIDDEN),
            wo=dense(next(keys), HIDDEN, HIDDEN), bo=vec(next(keys), HIDDEN),
            g1=1.0 + vec(next(keys), HIDDEN, 0.1), b1=vec(next(keys), HIDDEN),
            wi=dense(next(keys), HIDDEN, INTERMEDIATE), bi=vec(next(keys), INTERMEDIATE),
            wo2=dense(next(keys), INTERMEDIATE, HIDDEN), bo2=vec(next(keys), HIDDEN),
            g2=1.0 + vec(next(keys), HIDDEN, 0.1), b2=vec(next(keys), HIDDEN)))
    wp = dense(next(keys), HIDDEN, HIDDEN)
    bp = vec(next(keys), HIDDEN)

    params = pack_params(layers, wp, bp)
    params["cls_emb"] = cls_emb
    params["raw"] = dict(layers=layers, wp=wp, bp=bp)   # used only by the reference
    return params


def reference_forward(x, params, mask=None):
    """Pure-JAX re-implementation of the PyTorch module (correctness check)."""
    raw = params["raw"]
    B, S, H = x.shape
    h = jnp.concatenate(
        [jnp.broadcast_to(params["cls_emb"].reshape(1, 1, H), (B, 1, H)),
         x.astype(jnp.float32)], axis=1)                  # (B, S+1, H)
    add_mask = None
    if mask is not None:
        add_mask = jnp.concatenate(
            [jnp.ones((B, 1), jnp.float32), mask.astype(jnp.float32)], axis=1)

    def split(t):
        return t.reshape(B, -1, NUM_HEADS, HEAD_DIM).transpose(0, 2, 1, 3)

    for p in raw["layers"]:
        qkv = jnp.einsum("bsh,hk->bsk", h, p["wqkv"]) + p["bqkv"]
        q, k, v = qkv[..., :H], qkv[..., H:2 * H], qkv[..., 2 * H:]
        qh, kh, vh = split(q), split(k), split(v)
        s = jnp.einsum("bnqd,bnkd->bnqk", qh, kh) / math.sqrt(HEAD_DIM)
        if add_mask is not None:
            s = s + add_mask[:, None, None, :]
        prob = jax.nn.softmax(s, axis=-1)
        ctx = jnp.einsum("bnqk,bnkd->bnqd", prob, vh)
        ctx = ctx.transpose(0, 2, 1, 3).reshape(B, -1, H)
        attn = jnp.einsum("bsh,hk->bsk", ctx, p["wo"]) + p["bo"]
        h1 = _layernorm(attn + h, p["g1"], p["b1"])
        inter = _gelu_exact(jnp.einsum("bsh,hk->bsk", h1, p["wi"]) + p["bi"])
        ffn = jnp.einsum("bsh,hk->bsk", inter, p["wo2"]) + p["bo2"]
        h = _layernorm(ffn + h1, p["g2"], p["b2"])
    return jnp.tanh(h[:, 0, :] @ raw["wp"] + raw["bp"])


if __name__ == "__main__":
    key = jax.random.PRNGKey(0)
    k_param, k_x, k_mask = jax.random.split(key, 3)

    B, S = 2, 8
    params = init_params(k_param)
    x = jax.random.normal(k_x, (B, S, HIDDEN), jnp.float32)
    mask = (jax.random.uniform(k_mask, (B, S)) > 0.3).astype(jnp.float32)

    pooled = global_mask_transformer_pooling_1d(x, params, mask=mask)
    pooled = jax.block_until_ready(pooled)
    assert pooled.shape == (B, HIDDEN)
    assert bool(jnp.all(jnp.isfinite(pooled)))

    ref = jax.block_until_ready(reference_forward(x, params, mask=mask))
    assert float(jnp.max(jnp.abs(pooled - ref))) < 3e-2

    pooled_nm = jax.block_until_ready(global_mask_transformer_pooling_1d(x, params))
    ref_nm = jax.block_until_ready(reference_forward(x, params))
    assert float(jnp.max(jnp.abs(pooled_nm - ref_nm))) < 3e-2

    print("KERNEL_OK")
</pallas_src>

<mosaic_0001>
module attributes {stable_mosaic.version = 11 : i64} {
  func.func @fused_pooling_kernel(%arg0: memref<32x32xf32, #tpu.memory_space<vmem>>, %arg1: memref<32x32xf32, #tpu.memory_space<vmem>>, %arg2: memref<352x128xf32, #tpu.memory_space<vmem>>, %arg3: memref<24x128xf32, #tpu.memory_space<vmem>>, %arg4: memref<2x32xf32, #tpu.memory_space<vmem>>) attributes {dimension_semantics = [], scalar_prefetch = 0 : i64, scratch_operands = 0 : i64, tpu.core_type = #tpu.core_type<tc>} {
    %c0 = arith.constant 0 : index
    %c0_0 = arith.constant 0 : index
    %0 = vector.load %arg0[%c0, %c0_0] : memref<32x32xf32, #tpu.memory_space<vmem>>, vector<32x32xf32>
    %c0_1 = arith.constant 0 : index
    %c0_2 = arith.constant 0 : index
    %1 = vector.load %arg1[%c0_1, %c0_2] : memref<32x32xf32, #tpu.memory_space<vmem>>, vector<32x32xf32>
    %c0_3 = arith.constant 0 : index
    %c0_4 = arith.constant 0 : index
    %2 = vector.load %arg2[%c0_3, %c0_4] : memref<352x128xf32, #tpu.memory_space<vmem>>, vector<32x96xf32>
    %c32 = arith.constant 32 : index
    %c0_5 = arith.constant 0 : index
    %3 = vector.load %arg2[%c32, %c0_5] : memref<352x128xf32, #tpu.memory_space<vmem>>, vector<32x32xf32>
    %c64 = arith.constant 64 : index
    %c0_6 = arith.constant 0 : index
    %4 = vector.load %arg2[%c64, %c0_6] : memref<352x128xf32, #tpu.memory_space<vmem>>, vector<32x64xf32>
    %c96 = arith.constant 96 : index
    %c0_7 = arith.constant 0 : index
    %5 = vector.load %arg2[%c96, %c0_7] : memref<352x128xf32, #tpu.memory_space<vmem>>, vector<64x32xf32>
    %c0_8 = arith.constant 0 : index
    %c0_9 = arith.constant 0 : index
    %6 = vector.load %arg3[%c0_8, %c0_9] : memref<24x128xf32, #tpu.memory_space<vmem>>, vector<1x96xf32>
    %c1 = arith.constant 1 : index
    %c0_10 = arith.constant 0 : index
    %7 = vector.load %arg3[%c1, %c0_10] : memref<24x128xf32, #tpu.memory_space<vmem>>, vector<1x32xf32>
    %c2 = arith.constant 2 : index
    %c0_11 = arith.constant 0 : index
    %8 = vector.load %arg3[%c2, %c0_11] : memref<24x128xf32, #tpu.memory_space<vmem>>, vector<1x32xf32>
    %c3 = arith.constant 3 : index
    %c0_12 = arith.constant 0 : index
    %9 = vector.load %arg3[%c3, %c0_12] : memref<24x128xf32, #tpu.memory_space<vmem>>, vector<1x32xf32>
    %c4 = arith.constant 4 : index
    %c0_13 = arith.constant 0 : index
    %10 = vector.load %arg3[%c4, %c0_13] : memref<24x128xf32, #tpu.memory_space<vmem>>, vector<1x64xf32>
    %c5 = arith.constant 5 : index
    %c0_14 = arith.constant 0 : index
    %11 = vector.load %arg3[%c5, %c0_14] : memref<24x128xf32, #tpu.memory_space<vmem>>, vector<1x32xf32>
    %c6 = arith.constant 6 : index
    %c0_15 = arith.constant 0 : index
    %12 = vector.load %arg3[%c6, %c0_15] : memref<24x128xf32, #tpu.memory_space<vmem>>, vector<1x32xf32>
    %c7 = arith.constant 7 : index
    %c0_16 = arith.constant 0 : index
    %13 = vector.load %arg3[%c7, %c0_16] : memref<24x128xf32, #tpu.memory_space<vmem>>, vector<1x32xf32>
    %cst = arith.constant dense<0.000000e+00> : vector<32x96xf32>
    %14 = tpu.matmul %0, %2, %cst {dimension_numbers = #tpu.dot_dimension_numbers<[1], [0], [0], [1], [0, 0, 1, 1], [], []>} : vector<32x32xf32>, vector<32x96xf32>, vector<32x96xf32> -> vector<32x96xf32>
    %15 = vector.broadcast %6 : vector<1x96xf32> to vector<32x96xf32>
    %16 = arith.addf %14, %15 : vector<32x96xf32>
    %17 = vector.extract_strided_slice %16 {offsets = [0, 0], sizes = [32, 8], strides = [1, 1]} : vector<32x96xf32> to vector<32x8xf32>
    %18 = vector.extract_strided_slice %16 {offsets = [0, 32], sizes = [32, 8], strides = [1, 1]} : vector<32x96xf32> to vector<32x8xf32>
    %19 = vector.extract_strided_slice %16 {offsets = [0, 64], sizes = [32, 8], strides = [1, 1]} : vector<32x96xf32> to vector<32x8xf32>
    %cst_17 = arith.constant dense<0.000000e+00> : vector<32x32xf32>
    %20 = tpu.matmul %17, %18, %cst_17 {dimension_numbers = #tpu.dot_dimension_numbers<[1], [1], [0], [0], [0, 0, 1, 0], [], []>} : vector<32x8xf32>, vector<32x8xf32>, vector<32x32xf32> -> vector<32x32xf32>
    %cst_18 = arith.constant 0.353553385 : f32
    %21 = vector.broadcast %cst_18 : f32 to vector<32x32xf32>
    %22 = arith.mulf %20, %21 : vector<32x32xf32>
    %23 = arith.addf %22, %1 : vector<32x32xf32>
    %cst_19 = arith.constant dense<0xFF800000> : vector<32xf32>
    %24 = vector.multi_reduction <maximumf>, %23, %cst_19 [1] : vector<32x32xf32> to vector<32xf32>
    %25 = vector.shape_cast %24 : vector<32xf32> to vector<32x1xf32>
    %26 = vector.broadcast %25 : vector<32x1xf32> to vector<32x32xf32>
    %27 = arith.subf %23, %26 : vector<32x32xf32>
    %28 = math.exp %27 : vector<32x32xf32>
    %cst_20 = arith.constant dense<0.000000e+00> : vector<32xf32>
    %29 = vector.multi_reduction <add>, %28, %cst_20 [1] : vector<32x32xf32> to vector<32xf32>
    %30 = vector.shape_cast %29 : vector<32xf32> to vector<32x1xf32>
    %31 = vector.broadcast %30 : vector<32x1xf32> to vector<32x32xf32>
    %32 = arith.divf %28, %31 : vector<32x32xf32>
    %cst_21 = arith.constant dense<0.000000e+00> : vector<32x8xf32>
    %33 = tpu.matmul %32, %19, %cst_21 {dimension_numbers = #tpu.dot_dimension_numbers<[1], [0], [0], [1], [0, 0, 1, 1], [], []>} : vector<32x32xf32>, vector<32x8xf32>, vector<32x8xf32> -> vector<32x8xf32>
    %34 = vector.extract_strided_slice %16 {offsets = [0, 8], sizes = [32, 8], strides = [1, 1]} : vector<32x96xf32> to vector<32x8xf32>
    %35 = vector.extract_strided_slice %16 {offsets = [0, 40], sizes = [32, 8], strides = [1, 1]} : vector<32x96xf32> to vector<32x8xf32>
    %36 = vector.extract_strided_slice %16 {offsets = [0, 72], sizes = [32, 8], strides = [1, 1]} : vector<32x96xf32> to vector<32x8xf32>
    %cst_22 = arith.constant dense<0.000000e+00> : vector<32x32xf32>
    %37 = tpu.matmul %34, %35, %cst_22 {dimension_numbers = #tpu.dot_dimension_numbers<[1], [1], [0], [0], [0, 0, 1, 0], [], []>} : vector<32x8xf32>, vector<32x8xf32>, vector<32x32xf32> -> vector<32x32xf32>
    %cst_23 = arith.constant 0.353553385 : f32
    %38 = vector.broadcast %cst_23 : f32 to vector<32x32xf32>
    %39 = arith.mulf %37, %38 : vector<32x32xf32>
    %40 = arith.addf %39, %1 : vector<32x32xf32>
    %cst_24 = arith.constant dense<0xFF800000> : vector<32xf32>
    %41 = vector.multi_reduction <maximumf>, %40, %cst_24 [1] : vector<32x32xf32> to vector<32xf32>
    %42 = vector.shape_cast %41 : vector<32xf32> to vector<32x1xf32>
    %43 = vector.broadcast %42 : vector<32x1xf32> to vector<32x32xf32>
    %44 = arith.subf %40, %43 : vector<32x32xf32>
    %45 = math.exp %44 : vector<32x32xf32>
    %cst_25 = arith.constant dense<0.000000e+00> : vector<32xf32>
    %46 = vector.multi_reduction <add>, %45, %cst_25 [1] : vector<32x32xf32> to vector<32xf32>
    %47 = vector.shape_cast %46 : vector<32xf32> to vector<32x1xf32>
    %48 = vector.broadcast %47 : vector<32x1xf32> to vector<32x32xf32>
    %49 = arith.divf %45, %48 : vector<32x32xf32>
    %cst_26 = arith.constant dense<0.000000e+00> : vector<32x8xf32>
    %50 = tpu.matmul %49, %36, %cst_26 {dimension_numbers = #tpu.dot_dimension_numbers<[1], [0], [0], [1], [0, 0, 1, 1], [], []>} : vector<32x32xf32>, vector<32x8xf32>, vector<32x8xf32> -> vector<32x8xf32>
    %51 = vector.extract_strided_slice %16 {offsets = [0, 16], sizes = [32, 8], strides = [1, 1]} : vector<32x96xf32> to vector<32x8xf32>
    %52 = vector.extract_strided_slice %16 {offsets = [0, 48], sizes = [32, 8], strides = [1, 1]} : vector<32x96xf32> to vector<32x8xf32>
    %53 = vector.extract_strided_slice %16 {offsets = [0, 80], sizes = [32, 8], strides = [1, 1]} : vector<32x96xf32> to vector<32x8xf32>
    %cst_27 = arith.constant dense<0.000000e+00> : vector<32x32xf32>
    %54 = tpu.matmul %51, %52, %cst_27 {dimension_numbers = #tpu.dot_dimension_numbers<[1], [1], [0], [0], [0, 0, 1, 0], [], []>} : vector<32x8xf32>, vector<32x8xf32>, vector<32x32xf32> -> vector<32x32xf32>
    %cst_28 = arith.constant 0.353553385 : f32
    %55 = vector.broadcast %cst_28 : f32 to vector<32x32xf32>
    %56 = arith.mulf %54, %55 : vector<32x32xf32>
    %57 = arith.addf %56, %1 : vector<32x32xf32>
    %cst_29 = arith.constant dense<0xFF800000> : vector<32xf32>
    %58 = vector.multi_reduction <maximumf>, %57, %cst_29 [1] : vector<32x32xf32> to vector<32xf32>
    %59 = vector.shape_cast %58 : vector<32xf32> to vector<32x1xf32>
    %60 = vector.broadcast %59 : vector<32x1xf32> to vector<32x32xf32>
    %61 = arith.subf %57, %60 : vector<32x32xf32>
    %62 = math.exp %61 : vector<32x32xf32>
    %cst_30 = arith.constant dense<0.000000e+00> : vector<32xf32>
    %63 = vector.multi_reduction <add>, %62, %cst_30 [1] : vector<32x32xf32> to vector<32xf32>
    %64 = vector.shape_cast %63 : vector<32xf32> to vector<32x1xf32>
    %65 = vector.broadcast %64 : vector<32x1xf32> to vector<32x32xf32>
    %66 = arith.divf %62, %65 : vector<32x32xf32>
    %cst_31 = arith.constant dense<0.000000e+00> : vector<32x8xf32>
    %67 = tpu.matmul %66, %53, %cst_31 {dimension_numbers = #tpu.dot_dimension_numbers<[1], [0], [0], [1], [0, 0, 1, 1], [], []>} : vector<32x32xf32>, vector<32x8xf32>, vector<32x8xf32> -> vector<32x8xf32>
    %68 = vector.extract_strided_slice %16 {offsets = [0, 24], sizes = [32, 8], strides = [1, 1]} : vector<32x96xf32> to vector<32x8xf32>
    %69 = vector.extract_strided_slice %16 {offsets = [0, 56], sizes = [32, 8], strides = [1, 1]} : vector<32x96xf32> to vector<32x8xf32>
    %70 = vector.extract_strided_slice %16 {offsets = [0, 88], sizes = [32, 8], strides = [1, 1]} : vector<32x96xf32> to vector<32x8xf32>
    %cst_32 = arith.constant dense<0.000000e+00> : vector<32x32xf32>
    %71 = tpu.matmul %68, %69, %cst_32 {dimension_numbers = #tpu.dot_dimension_numbers<[1], [1], [0], [0], [0, 0, 1, 0], [], []>} : vector<32x8xf32>, vector<32x8xf32>, vector<32x32xf32> -> vector<32x32xf32>
    %cst_33 = arith.constant 0.353553385 : f32
    %72 = vector.broadcast %cst_33 : f32 to vector<32x32xf32>
    %73 = arith.mulf %71, %72 : vector<32x32xf32>
    %74 = arith.addf %73, %1 : vector<32x32xf32>
    %cst_34 = arith.constant dense<0xFF800000> : vector<32xf32>
    %75 = vector.multi_reduction <maximumf>, %74, %cst_34 [1] : vector<32x32xf32> to vector<32xf32>
    %76 = vector.shape_cast %75 : vector<32xf32> to vector<32x1xf32>
    %77 = vector.broadcast %76 : vector<32x1xf32> to vector<32x32xf32>
    %78 = arith.subf %74, %77 : vector<32x32xf32>
    %79 = math.exp %78 : vector<32x32xf32>
    %cst_35 = arith.constant dense<0.000000e+00> : vector<32xf32>
    %80 = vector.multi_reduction <add>, %79, %cst_35 [1] : vector<32x32xf32> to vector<32xf32>
    %81 = vector.shape_cast %80 : vector<32xf32> to vector<32x1xf32>
    %82 = vector.broadcast %81 : vector<32x1xf32> to vector<32x32xf32>
    %83 = arith.divf %79, %82 : vector<32x32xf32>
    %cst_36 = arith.constant dense<0.000000e+00> : vector<32x8xf32>
    %84 = tpu.matmul %83, %70, %cst_36 {dimension_numbers = #tpu.dot_dimension_numbers<[1], [0], [0], [1], [0, 0, 1, 1], [], []>} : vector<32x32xf32>, vector<32x8xf32>, vector<32x8xf32> -> vector<32x8xf32>
    %85 = tpu.concatenate %33, %50, %67, %84 in 1 : vector<32x8xf32>, vector<32x8xf32>, vector<32x8xf32>, vector<32x8xf32> -> vector<32x32xf32>
    %cst_37 = arith.constant dense<0.000000e+00> : vector<32x32xf32>
    %86 = tpu.matmul %85, %3, %cst_37 {dimension_numbers = #tpu.dot_dimension_numbers<[1], [0], [0], [1], [0, 0, 1, 1], [], []>} : vector<32x32xf32>, vector<32x32xf32>, vector<32x32xf32> -> vector<32x32xf32>
    %87 = vector.broadcast %7 : vector<1x32xf32> to vector<32x32xf32>
    %88 = arith.addf %86, %87 : vector<32x32xf32>
    %89 = arith.addf %88, %0 : vector<32x32xf32>
    %cst_38 = arith.constant dense<0.000000e+00> : vector<32xf32>
    %90 = vector.multi_reduction <add>, %89, %cst_38 [1] : vector<32x32xf32> to vector<32xf32>
    %91 = vector.shape_cast %90 : vector<32xf32> to vector<32x1xf32>
    %cst_39 = arith.constant 3.200000e+01 : f32
    %92 = vector.broadcast %cst_39 : f32 to vector<32x1xf32>
    %93 = arith.divf %91, %92 : vector<32x1xf32>
    %94 = vector.broadcast %93 : vector<32x1xf32> to vector<32x32xf32>
    %95 = arith.subf %89, %94 : vector<32x32xf32>
    %96 = arith.mulf %95, %95 : vector<32x32xf32>
    %cst_40 = arith.constant dense<0.000000e+00> : vector<32xf32>
    %97 = vector.multi_reduction <add>, %96, %cst_40 [1] : vector<32x32xf32> to vector<32xf32>
    %98 = vector.shape_cast %97 : vector<32xf32> to vector<32x1xf32>
    %cst_41 = arith.constant 3.200000e+01 : f32
    %99 = vector.broadcast %cst_41 : f32 to vector<32x1xf32>
    %100 = arith.divf %98, %99 : vector<32x1xf32>
    %101 = vector.broadcast %93 : vector<32x1xf32> to vector<32x32xf32>
    %102 = arith.subf %89, %101 : vector<32x32xf32>
    %cst_42 = arith.constant 9.99999996E-13 : f32
    %103 = vector.broadcast %cst_42 : f32 to vector<32x1xf32>
    %104 = arith.addf %100, %103 : vector<32x1xf32>
    %105 = math.rsqrt %104 : vector<32x1xf32>
    %106 = vector.broadcast %105 : vector<32x1xf32> to vector<32x32xf32>
    %107 = arith.mulf %102, %106 : vector<32x32xf32>
    %108 = vector.broadcast %8 : vector<1x32xf32> to vector<32x32xf32>
    %109 = arith.mulf %107, %108 : vector<32x32xf32>
    %110 = vector.broadcast %9 : vector<1x32xf32> to vector<32x32xf32>
    %111 = arith.addf %109, %110 : vector<32x32xf32>
    %cst_43 = arith.constant dense<0.000000e+00> : vector<32x64xf32>
    %112 = tpu.matmul %111, %4, %cst_43 {dimension_numbers = #tpu.dot_dimension_numbers<[1], [0], [0], [1], [0, 0, 1, 1], [], []>} : vector<32x32xf32>, vector<32x64xf32>, vector<32x64xf32> -> vector<32x64xf32>
    %113 = vector.broadcast %10 : vector<1x64xf32> to vector<32x64xf32>
    %114 = arith.addf %112, %113 : vector<32x64xf32>
    %cst_44 = arith.constant 5.000000e-01 : f32
    %115 = vector.broadcast %cst_44 : f32 to vector<32x64xf32>
    %116 = arith.mulf %115, %114 : vector<32x64xf32>
    %cst_45 = arith.constant 1.41421354 : f32
    %117 = vector.broadcast %cst_45 : f32 to vector<32x64xf32>
    %118 = arith.divf %114, %117 : vector<32x64xf32>
    %119 = math.erf %118 : vector<32x64xf32>
    %cst_46 = arith.constant 1.000000e+00 : f32
    %120 = vector.broadcast %cst_46 : f32 to vector<32x64xf32>
    %121 = arith.addf %120, %119 : vector<32x64xf32>
    %122 = arith.mulf %116, %121 : vector<32x64xf32>
    %cst_47 = arith.constant dense<0.000000e+00> : vector<32x32xf32>
    %123 = tpu.matmul %122, %5, %cst_47 {dimension_numbers = #tpu.dot_dimension_numbers<[1], [0], [0], [1], [0, 0, 1, 1], [], []>} : vector<32x64xf32>, vector<64x32xf32>, vector<32x32xf32> -> vector<32x32xf32>
    %124 = vector.broadcast %11 : vector<1x32xf32> to vector<32x32xf32>
    %125 = arith.addf %123, %124 : vector<32x32xf32>
    %126 = arith.addf %125, %111 : vector<32x32xf32>
    %cst_48 = arith.constant dense<0.000000e+00> : vector<32xf32>
    %127 = vector.multi_reduction <add>, %126, %cst_48 [1] : vector<32x32xf32> to vector<32xf32>
    %128 = vector.shape_cast %127 : vector<32xf32> to vector<32x1xf32>
    %cst_49 = arith.constant 3.200000e+01 : f32
    %129 = vector.broadcast %cst_49 : f32 to vector<32x1xf32>
    %130 = arith.divf %128, %129 : vector<32x1xf32>
    %131 = vector.broadcast %130 : vector<32x1xf32> to vector<32x32xf32>
    %132 = arith.subf %126, %131 : vector<32x32xf32>
    %133 = arith.mulf %132, %132 : vector<32x32xf32>
    %cst_50 = arith.constant dense<0.000000e+00> : vector<32xf32>
    %134 = vector.multi_reduction <add>, %133, %cst_50 [1] : vector<32x32xf32> to vector<32xf32>
    %135 = vector.shape_cast %134 : vector<32xf32> to vector<32x1xf32>
    %cst_51 = arith.constant 3.200000e+01 : f32
    %136 = vector.broadcast %cst_51 : f32 to vector<32x1xf32>
    %137 = arith.divf %135, %136 : vector<32x1xf32>
    %138 = vector.broadcast %130 : vector<32x1xf32> to vector<32x32xf32>
    %139 = arith.subf %126, %138 : vector<32x32xf32>
    %cst_52 = arith.constant 9.99999996E-13 : f32
    %140 = vector.broadcast %cst_52 : f32 to vector<32x1xf32>
    %141 = arith.addf %137, %140 : vector<32x1xf32>
    %142 = math.rsqrt %141 : vector<32x1xf32>
    %143 = vector.broadcast %142 : vector<32x1xf32> to vector<32x32xf32>
    %144 = arith.mulf %139, %143 : vector<32x32xf32>
    %145 = vector.broadcast %12 : vector<1x32xf32> to vector<32x32xf32>
    %146 = arith.mulf %144, %145 : vector<32x32xf32>
    %147 = vector.broadcast %13 : vector<1x32xf32> to vector<32x32xf32>
    %148 = arith.addf %146, %147 : vector<32x32xf32>
    %c160 = arith.constant 160 : index
    %c0_53 = arith.constant 0 : index
    %149 = vector.load %arg2[%c160, %c0_53] : memref<352x128xf32, #tpu.memory_space<vmem>>, vector<32x96xf32>
    %c192 = arith.constant 192 : index
    %c0_54 = arith.constant 0 : index
    %150 = vector.load %arg2[%c192, %c0_54] : memref<352x128xf32, #tpu.memory_space<vmem>>, vector<32x32xf32>
    %c224 = arith.constant 224 : index
    %c0_55 = arith.constant 0 : index
    %151 = vector.load %arg2[%c224, %c0_55] : memref<352x128xf32, #tpu.memory_space<vmem>>, vector<32x64xf32>
    %c256 = arith.constant 256 : index
    %c0_56 = arith.constant 0 : index
    %152 = vector.load %arg2[%c256, %c0_56] : memref<352x128xf32, #tpu.memory_space<vmem>>, vector<64x32xf32>
    %c8 = arith.constant 8 : index
    %c0_57 = arith.constant 0 : index
    %153 = vector.load %arg3[%c8, %c0_57] : memref<24x128xf32, #tpu.memory_space<vmem>>, vector<1x96xf32>
    %c9 = arith.constant 9 : index
    %c0_58 = arith.constant 0 : index
    %154 = vector.load %arg3[%c9, %c0_58] : memref<24x128xf32, #tpu.memory_space<vmem>>, vector<1x32xf32>
    %c10 = arith.constant 10 : index
    %c0_59 = arith.constant 0 : index
    %155 = vector.load %arg3[%c10, %c0_59] : memref<24x128xf32, #tpu.memory_space<vmem>>, vector<1x32xf32>
    %c11 = arith.constant 11 : index
    %c0_60 = arith.constant 0 : index
    %156 = vector.load %arg3[%c11, %c0_60] : memref<24x128xf32, #tpu.memory_space<vmem>>, vector<1x32xf32>
    %c12 = arith.constant 12 : index
    %c0_61 = arith.constant 0 : index
    %157 = vector.load %arg3[%c12, %c0_61] : memref<24x128xf32, #tpu.memory_space<vmem>>, vector<1x64xf32>
    %c13 = arith.constant 13 : index
    %c0_62 = arith.constant 0 : index
    %158 = vector.load %arg3[%c13, %c0_62] : memref<24x128xf32, #tpu.memory_space<vmem>>, vector<1x32xf32>
    %c14 = arith.constant 14 : index
    %c0_63 = arith.constant 0 : index
    %159 = vector.load %arg3[%c14, %c0_63] : memref<24x128xf32, #tpu.memory_space<vmem>>, vector<1x32xf32>
    %c15 = arith.constant 15 : index
    %c0_64 = arith.constant 0 : index
    %160 = vector.load %arg3[%c15, %c0_64] : memref<24x128xf32, #tpu.memory_space<vmem>>, vector<1x32xf32>
    %cst_65 = arith.constant dense<0.000000e+00> : vector<32x96xf32>
    %161 = tpu.matmul %148, %149, %cst_65 {dimension_numbers = #tpu.dot_dimension_numbers<[1], [0], [0], [1], [0, 0, 1, 1], [], []>} : vector<32x32xf32>, vector<32x96xf32>, vector<32x96xf32> -> vector<32x96xf32>
    %162 = vector.broadcast %153 : vector<1x96xf32> to vector<32x96xf32>
    %163 = arith.addf %161, %162 : vector<32x96xf32>
    %164 = vector.extract_strided_slice %163 {offsets = [0, 0], sizes = [32, 8], strides = [1, 1]} : vector<32x96xf32> to vector<32x8xf32>
    %165 = vector.extract_strided_slice %163 {offsets = [0, 32], sizes = [32, 8], strides = [1, 1]} : vector<32x96xf32> to vector<32x8xf32>
    %166 = vector.extract_strided_slice %163 {offsets = [0, 64], sizes = [32, 8], strides = [1, 1]} : vector<32x96xf32> to vector<32x8xf32>
    %cst_66 = arith.constant dense<0.000000e+00> : vector<32x32xf32>
    %167 = tpu.matmul %164, %165, %cst_66 {dimension_numbers = #tpu.dot_dimension_numbers<[1], [1], [0], [0], [0, 0, 1, 0], [], []>} : vector<32x8xf32>, vector<32x8xf32>, vector<32x32xf32> -> vector<32x32xf32>
    %cst_67 = arith.constant 0.353553385 : f32
    %168 = vector.broadcast %cst_67 : f32 to vector<32x32xf32>
    %169 = arith.mulf %167, %168 : vector<32x32xf32>
    %170 = arith.addf %169, %1 : vector<32x32xf32>
    %cst_68 = arith.constant dense<0xFF800000> : vector<32xf32>
    %171 = vector.multi_reduction <maximumf>, %170, %cst_68 [1] : vector<32x32xf32> to vector<32xf32>
    %172 = vector.shape_cast %171 : vector<32xf32> to vector<32x1xf32>
    %173 = vector.broadcast %172 : vector<32x1xf32> to vector<32x32xf32>
    %174 = arith.subf %170, %173 : vector<32x32xf32>
    %175 = math.exp %174 : vector<32x32xf32>
    %cst_69 = arith.constant dense<0.000000e+00> : vector<32xf32>
    %176 = vector.multi_reduction <add>, %175, %cst_69 [1] : vector<32x32xf32> to vector<32xf32>
    %177 = vector.shape_cast %176 : vector<32xf32> to vector<32x1xf32>
    %178 = vector.broadcast %177 : vector<32x1xf32> to vector<32x32xf32>
    %179 = arith.divf %175, %178 : vector<32x32xf32>
    %cst_70 = arith.constant dense<0.000000e+00> : vector<32x8xf32>
    %180 = tpu.matmul %179, %166, %cst_70 {dimension_numbers = #tpu.dot_dimension_numbers<[1], [0], [0], [1], [0, 0, 1, 1], [], []>} : vector<32x32xf32>, vector<32x8xf32>, vector<32x8xf32> -> vector<32x8xf32>
    %181 = vector.extract_strided_slice %163 {offsets = [0, 8], sizes = [32, 8], strides = [1, 1]} : vector<32x96xf32> to vector<32x8xf32>
    %182 = vector.extract_strided_slice %163 {offsets = [0, 40], sizes = [32, 8], strides = [1, 1]} : vector<32x96xf32> to vector<32x8xf32>
    %183 = vector.extract_strided_slice %163 {offsets = [0, 72], sizes = [32, 8], strides = [1, 1]} : vector<32x96xf32> to vector<32x8xf32>
    %cst_71 = arith.constant dense<0.000000e+00> : vector<32x32xf32>
    %184 = tpu.matmul %181, %182, %cst_71 {dimension_numbers = #tpu.dot_dimension_numbers<[1], [1], [0], [0], [0, 0, 1, 0], [], []>} : vector<32x8xf32>, vector<32x8xf32>, vector<32x32xf32> -> vector<32x32xf32>
    %cst_72 = arith.constant 0.353553385 : f32
    %185 = vector.broadcast %cst_72 : f32 to vector<32x32xf32>
    %186 = arith.mulf %184, %185 : vector<32x32xf32>
    %187 = arith.addf %186, %1 : vector<32x32xf32>
    %cst_73 = arith.constant dense<0xFF800000> : vector<32xf32>
    %188 = vector.multi_reduction <maximumf>, %187, %cst_73 [1] : vector<32x32xf32> to vector<32xf32>
    %189 = vector.shape_cast %188 : vector<32xf32> to vector<32x1xf32>
    %190 = vector.broadcast %189 : vector<32x1xf32> to vector<32x32xf32>
    %191 = arith.subf %187, %190 : vector<32x32xf32>
    %192 = math.exp %191 : vector<32x32xf32>
    %cst_74 = arith.constant dense<0.000000e+00> : vector<32xf32>
    %193 = vector.multi_reduction <add>, %192, %cst_74 [1] : vector<32x32xf32> to vector<32xf32>
    %194 = vector.shape_cast %193 : vector<32xf32> to vector<32x1xf32>
    %195 = vector.broadcast %194 : vector<32x1xf32> to vector<32x32xf32>
    %196 = arith.divf %192, %195 : vector<32x32xf32>
    %cst_75 = arith.constant dense<0.000000e+00> : vector<32x8xf32>
    %197 = tpu.matmul %196, %183, %cst_75 {dimension_numbers = #tpu.dot_dimension_numbers<[1], [0], [0], [1], [0, 0, 1, 1], [], []>} : vector<32x32xf32>, vector<32x8xf32>, vector<32x8xf32> -> vector<32x8xf32>
    %198 = vector.extract_strided_slice %163 {offsets = [0, 16], sizes = [32, 8], strides = [1, 1]} : vector<32x96xf32> to vector<32x8xf32>
    %199 = vector.extract_strided_slice %163 {offsets = [0, 48], sizes = [32, 8], strides = [1, 1]} : vector<32x96xf32> to vector<32x8xf32>
    %200 = vector.extract_strided_slice %163 {offsets = [0, 80], sizes = [32, 8], strides = [1, 1]} : vector<32x96xf32> to vector<32x8xf32>
    %cst_76 = arith.constant dense<0.000000e+00> : vector<32x32xf32>
    %201 = tpu.matmul %198, %199, %cst_76 {dimension_numbers = #tpu.dot_dimension_numbers<[1], [1], [0], [0], [0, 0, 1, 0], [], []>} : vector<32x8xf32>, vector<32x8xf32>, vector<32x32xf32> -> vector<32x32xf32>
    %cst_77 = arith.constant 0.353553385 : f32
    %202 = vector.broadcast %cst_77 : f32 to vector<32x32xf32>
    %203 = arith.mulf %201, %202 : vector<32x32xf32>
    %204 = arith.addf %203, %1 : vector<32x32xf32>
    %cst_78 = arith.constant dense<0xFF800000> : vector<32xf32>
    %205 = vector.multi_reduction <maximumf>, %204, %cst_78 [1] : vector<32x32xf32> to vector<32xf32>
    %206 = vector.shape_cast %205 : vector<32xf32> to vector<32x1xf32>
    %207 = vector.broadcast %206 : vector<32x1xf32> to vector<32x32xf32>
    %208 = arith.subf %204, %207 : vector<32x32xf32>
    %209 = math.exp %208 : vector<32x32xf32>
    %cst_79 = arith.constant dense<0.000000e+00> : vector<32xf32>
    %210 = vector.multi_reduction <add>, %209, %cst_79 [1] : vector<32x32xf32> to vector<32xf32>
    %211 = vector.shape_cast %210 : vector<32xf32> to vector<32x1xf32>
    %212 = vector.broadcast %211 : vector<32x1xf32> to vector<32x32xf32>
    %213 = arith.divf %209, %212 : vector<32x32xf32>
    %cst_80 = arith.constant dense<0.000000e+00> : vector<32x8xf32>
    %214 = tpu.matmul %213, %200, %cst_80 {dimension_numbers = #tpu.dot_dimension_numbers<[1], [0], [0], [1], [0, 0, 1, 1], [], []>} : vector<32x32xf32>, vector<32x8xf32>, vector<32x8xf32> -> vector<32x8xf32>
    %215 = vector.extract_strided_slice %163 {offsets = [0, 24], sizes = [32, 8], strides = [1, 1]} : vector<32x96xf32> to vector<32x8xf32>
    %216 = vector.extract_strided_slice %163 {offsets = [0, 56], sizes = [32, 8], strides = [1, 1]} : vector<32x96xf32> to vector<32x8xf32>
    %217 = vector.extract_strided_slice %163 {offsets = [0, 88], sizes = [32, 8], strides = [1, 1]} : vector<32x96xf32> to vector<32x8xf32>
    %cst_81 = arith.constant dense<0.000000e+00> : vector<32x32xf32>
    %218 = tpu.matmul %215, %216, %cst_81 {dimension_numbers = #tpu.dot_dimension_numbers<[1], [1], [0], [0], [0, 0, 1, 0], [], []>} : vector<32x8xf32>, vector<32x8xf32>, vector<32x32xf32> -> vector<32x32xf32>
    %cst_82 = arith.constant 0.353553385 : f32
    %219 = vector.broadcast %cst_82 : f32 to vector<32x32xf32>
    %220 = arith.mulf %218, %219 : vector<32x32xf32>
    %221 = arith.addf %220, %1 : vector<32x32xf32>
    %cst_83 = arith.constant dense<0xFF800000> : vector<32xf32>
    %222 = vector.multi_reduction <maximumf>, %221, %cst_83 [1] : vector<32x32xf32> to vector<32xf32>
    %223 = vector.shape_cast %222 : vector<32xf32> to vector<32x1xf32>
    %224 = vector.broadcast %223 : vector<32x1xf32> to vector<32x32xf32>
    %225 = arith.subf %221, %224 : vector<32x32xf32>
    %226 = math.exp %225 : vector<32x32xf32>
    %cst_84 = arith.constant dense<0.000000e+00> : vector<32xf32>
    %227 = vector.multi_reduction <add>, %226, %cst_84 [1] : vector<32x32xf32> to vector<32xf32>
    %228 = vector.shape_cast %227 : vector<32xf32> to vector<32x1xf32>
    %229 = vector.broadcast %228 : vector<32x1xf32> to vector<32x32xf32>
    %230 = arith.divf %226, %229 : vector<32x32xf32>
    %cst_85 = arith.constant dense<0.000000e+00> : vector<32x8xf32>
    %231 = tpu.matmul %230, %217, %cst_85 {dimension_numbers = #tpu.dot_dimension_numbers<[1], [0], [0], [1], [0, 0, 1, 1], [], []>} : vector<32x32xf32>, vector<32x8xf32>, vector<32x8xf32> -> vector<32x8xf32>
    %232 = tpu.concatenate %180, %197, %214, %231 in 1 : vector<32x8xf32>, vector<32x8xf32>, vector<32x8xf32>, vector<32x8xf32> -> vector<32x32xf32>
    %cst_86 = arith.constant dense<0.000000e+00> : vector<32x32xf32>
    %233 = tpu.matmul %232, %150, %cst_86 {dimension_numbers = #tpu.dot_dimension_numbers<[1], [0], [0], [1], [0, 0, 1, 1], [], []>} : vector<32x32xf32>, vector<32x32xf32>, vector<32x32xf32> -> vector<32x32xf32>
    %234 = vector.broadcast %154 : vector<1x32xf32> to vector<32x32xf32>
    %235 = arith.addf %233, %234 : vector<32x32xf32>
    %236 = arith.addf %235, %148 : vector<32x32xf32>
    %cst_87 = arith.constant dense<0.000000e+00> : vector<32xf32>
    %237 = vector.multi_reduction <add>, %236, %cst_87 [1] : vector<32x32xf32> to vector<32xf32>
    %238 = vector.shape_cast %237 : vector<32xf32> to vector<32x1xf32>
    %cst_88 = arith.constant 3.200000e+01 : f32
    %239 = vector.broadcast %cst_88 : f32 to vector<32x1xf32>
    %240 = arith.divf %238, %239 : vector<32x1xf32>
    %241 = vector.broadcast %240 : vector<32x1xf32> to vector<32x32xf32>
    %242 = arith.subf %236, %241 : vector<32x32xf32>
    %243 = arith.mulf %242, %242 : vector<32x32xf32>
    %cst_89 = arith.constant dense<0.000000e+00> : vector<32xf32>
    %244 = vector.multi_reduction <add>, %243, %cst_89 [1] : vector<32x32xf32> to vector<32xf32>
    %245 = vector.shape_cast %244 : vector<32xf32> to vector<32x1xf32>
    %cst_90 = arith.constant 3.200000e+01 : f32
    %246 = vector.broadcast %cst_90 : f32 to vector<32x1xf32>
    %247 = arith.divf %245, %246 : vector<32x1xf32>
    %248 = vector.broadcast %240 : vector<32x1xf32> to vector<32x32xf32>
    %249 = arith.subf %236, %248 : vector<32x32xf32>
    %cst_91 = arith.constant 9.99999996E-13 : f32
    %250 = vector.broadcast %cst_91 : f32 to vector<32x1xf32>
    %251 = arith.addf %247, %250 : vector<32x1xf32>
    %252 = math.rsqrt %251 : vector<32x1xf32>
    %253 = vector.broadcast %252 : vector<32x1xf32> to vector<32x32xf32>
    %254 = arith.mulf %249, %253 : vector<32x32xf32>
    %255 = vector.broadcast %155 : vector<1x32xf32> to vector<32x32xf32>
    %256 = arith.mulf %254, %255 : vector<32x32xf32>
    %257 = vector.broadcast %156 : vector<1x32xf32> to vector<32x32xf32>
    %258 = arith.addf %256, %257 : vector<32x32xf32>
    %cst_92 = arith.constant dense<0.000000e+00> : vector<32x64xf32>
    %259 = tpu.matmul %258, %151, %cst_92 {dimension_numbers = #tpu.dot_dimension_numbers<[1], [0], [0], [1], [0, 0, 1, 1], [], []>} : vector<32x32xf32>, vector<32x64xf32>, vector<32x64xf32> -> vector<32x64xf32>
    %260 = vector.broadcast %157 : vector<1x64xf32> to vector<32x64xf32>
    %261 = arith.addf %259, %260 : vector<32x64xf32>
    %cst_93 = arith.constant 5.000000e-01 : f32
    %262 = vector.broadcast %cst_93 : f32 to vector<32x64xf32>
    %263 = arith.mulf %262, %261 : vector<32x64xf32>
    %cst_94 = arith.constant 1.41421354 : f32
    %264 = vector.broadcast %cst_94 : f32 to vector<32x64xf32>
    %265 = arith.divf %261, %264 : vector<32x64xf32>
    %266 = math.erf %265 : vector<32x64xf32>
    %cst_95 = arith.constant 1.000000e+00 : f32
    %267 = vector.broadcast %cst_95 : f32 to vector<32x64xf32>
    %268 = arith.addf %267, %266 : vector<32x64xf32>
    %269 = arith.mulf %263, %268 : vector<32x64xf32>
    %cst_96 = arith.constant dense<0.000000e+00> : vector<32x32xf32>
    %270 = tpu.matmul %269, %152, %cst_96 {dimension_numbers = #tpu.dot_dimension_numbers<[1], [0], [0], [1], [0, 0, 1, 1], [], []>} : vector<32x64xf32>, vector<64x32xf32>, vector<32x32xf32> -> vector<32x32xf32>
    %271 = vector.broadcast %158 : vector<1x32xf32> to vector<32x32xf32>
    %272 = arith.addf %270, %271 : vector<32x32xf32>
    %273 = arith.addf %272, %258 : vector<32x32xf32>
    %cst_97 = arith.constant dense<0.000000e+00> : vector<32xf32>
    %274 = vector.multi_reduction <add>, %273, %cst_97 [1] : vector<32x32xf32> to vector<32xf32>
    %275 = vector.shape_cast %274 : vector<32xf32> to vector<32x1xf32>
    %cst_98 = arith.constant 3.200000e+01 : f32
    %276 = vector.broadcast %cst_98 : f32 to vector<32x1xf32>
    %277 = arith.divf %275, %276 : vector<32x1xf32>
    %278 = vector.broadcast %277 : vector<32x1xf32> to vector<32x32xf32>
    %279 = arith.subf %273, %278 : vector<32x32xf32>
    %280 = arith.mulf %279, %279 : vector<32x32xf32>
    %cst_99 = arith.constant dense<0.000000e+00> : vector<32xf32>
    %281 = vector.multi_reduction <add>, %280, %cst_99 [1] : vector<32x32xf32> to vector<32xf32>
    %282 = vector.shape_cast %281 : vector<32xf32> to vector<32x1xf32>
    %cst_100 = arith.constant 3.200000e+01 : f32
    %283 = vector.broadcast %cst_100 : f32 to vector<32x1xf32>
    %284 = arith.divf %282, %283 : vector<32x1xf32>
    %285 = vector.broadcast %277 : vector<32x1xf32> to vector<32x32xf32>
    %286 = arith.subf %273, %285 : vector<32x32xf32>
    %cst_101 = arith.constant 9.99999996E-13 : f32
    %287 = vector.broadcast %cst_101 : f32 to vector<32x1xf32>
    %288 = arith.addf %284, %287 : vector<32x1xf32>
    %289 = math.rsqrt %288 : vector<32x1xf32>
    %290 = vector.broadcast %289 : vector<32x1xf32> to vector<32x32xf32>
    %291 = arith.mulf %286, %290 : vector<32x32xf32>
    %292 = vector.broadcast %159 : vector<1x32xf32> to vector<32x32xf32>
    %293 = arith.mulf %291, %292 : vector<32x32xf32>
    %294 = vector.broadcast %160 : vector<1x32xf32> to vector<32x32xf32>
    %295 = arith.addf %293, %294 : vector<32x32xf32>
    %c320 = arith.constant 320 : index
    %c0_102 = arith.constant 0 : index
    %296 = vector.load %arg2[%c320, %c0_102] : memref<352x128xf32, #tpu.memory_space<vmem>>, vector<32x32xf32>
    %c16 = arith.constant 16 : index
    %c0_103 = arith.constant 0 : index
    %297 = vector.load %arg3[%c16, %c0_103] : memref<24x128xf32, #tpu.memory_space<vmem>>, vector<1x32xf32>
    %cst_104 = arith.constant dense<0.000000e+00> : vector<32x32xf32>
    %298 = tpu.matmul %295, %296, %cst_104 {dimension_numbers = #tpu.dot_dimension_numbers<[1], [0], [0], [1], [0, 0, 1, 1], [], []>} : vector<32x32xf32>, vector<32x32xf32>, vector<32x32xf32> -> vector<32x32xf32>
    %299 = vector.broadcast %297 : vector<1x32xf32> to vector<32x32xf32>
    %300 = arith.addf %298, %299 : vector<32x32xf32>
    %301 = vector.extract_strided_slice %300 {offsets = [0, 0], sizes = [1, 32], strides = [1, 1]} : vector<32x32xf32> to vector<1x32xf32>
    %302 = vector.extract_strided_slice %300 {offsets = [16, 0], sizes = [1, 32], strides = [1, 1]} : vector<32x32xf32> to vector<1x32xf32>
    %303 = tpu.concatenate %301, %302 in 0 : vector<1x32xf32>, vector<1x32xf32> -> vector<2x32xf32>
    %304 = math.tanh %303 : vector<2x32xf32>
    %c0_105 = arith.constant 0 : index
    %c0_106 = arith.constant 0 : index
    %305 = vector.load %arg4[%c0_105, %c0_106] : memref<2x32xf32, #tpu.memory_space<vmem>>, vector<2x32xf32>
    tpu.vector_store %arg4[%c0_105, %c0_106], %304 {strides = array<i32>} : memref<2x32xf32, #tpu.memory_space<vmem>>, vector<2x32xf32>,
    return
  }
}

</mosaic_0001>

<llo_original>
// kernel: tpu_custom_call.1
$region0: #{tpu_custom_call.1}
  #allocation0 [shape = 'u32[]', space=smem, size = 0x4, offset = 0x4, fixed_abs, tag = 'smem constant byte address 0x4 - core index']
  #allocation1 [shape = 'u32[72,128]{1,0:T(1,128)}', space=vmem, size = 0x9000, scoped, tag = 'internal scratch']
  %s0 = inlined_call_operand.hbm [shape: f32[32,32], index: 0, kind: input, shape index: {}]
  %s1 = inlined_call_operand.hbm [shape: f32[32,32], index: 1, kind: input, shape index: {}]
  %s2 = inlined_call_operand.hbm [shape: f32[352,128], index: 2, kind: input, shape index: {}]
  %s3 = inlined_call_operand.hbm [shape: f32[24,128], index: 3, kind: input, shape index: {}]
  %s4 = inlined_call_operand.hbm [shape: f32[2,32], index: 4, kind: output, shape index: {}]
  %s5 = sld [smem:[#allocation0]]
  $region42: #{tpu_custom_call.1} parent=0
    _
  %s7 = ssub.s32 1, %s5
  %s8 = scalar_select 0, %s7, %s5
  $region1: #{tpu_custom_call.1} parent=0
    #allocation2 [shape = 'u8[16384]{0}', space=vmem, size = 0x4000, scoped, tag = 'input window, operand 0, single buffered']
    #allocation3 [shape = 's32[1]{0}', space=sflag, size = 0x4, scoped, tag = 'scoped memory for tpu_custom_call.1']
    #allocation4 [shape = 's32[1]{0}', space=sflag, size = 0x4, scoped, tag = 'scoped memory for tpu_custom_call.1']
    #allocation5 [shape = 'u8[16384]{0}', space=vmem, size = 0x4000, scoped, tag = 'input window, operand 1, single buffered']
    #allocation6 [shape = 's32[1]{0}', space=sflag, size = 0x4, scoped, tag = 'scoped memory for tpu_custom_call.1']
    #allocation7 [shape = 'u8[180224]{0}', space=vmem, size = 0x2c000, scoped, tag = 'input window, operand 2, single buffered']
    #allocation8 [shape = 'u8[12288]{0}', space=vmem, size = 0x3000, scoped, tag = 'input window, operand 3, single buffered']
    #allocation9 [shape = 's32[1]{0}', space=sflag, size = 0x4, scoped, tag = 'scoped memory for tpu_custom_call.1']
    #allocation10 [shape = 'u8[1024]{0}', space=vmem, size = 0x400, scoped, tag = 'output window, operand 0, single buffered']
    %9 = vsyncpa [#allocation3], 0
    %10 = vsyncpa [#allocation6], 0
    %11 = vsyncpa [#allocation9], 0
    %12 = vsyncpa [#allocation4], 0
    // Predicated region
    $region2: #{tpu_custom_call.1} parent=1 // pred_check
      _
    $region3: #{tpu_custom_call.1} parent=1 // pred_check_branch
      %14 = sbr.rel (0) target = $region5
    $region4: #{tpu_custom_call.1} parent=1 // pred_region
      %16 = vsyncadd [#allocation3], 0
      %s17 = sshll.u32 %s0, 4
      %s18 = int_to_ptr.hbm [resolvable:$true] %s17
      %s19 = sshll.u32 [#allocation2], 4
      %s20 = int_to_ptr.vmem [resolvable:$true] %s19
      %25 = dma.hbm_to_vmem [thread:$0]  %s18, 512, %s20, [#allocation3], 128, 128, 8
    $region5: #{tpu_custom_call.1} parent=1 // pred_fallthru
      _
    // Predicated region
    $region6: #{tpu_custom_call.1} parent=1 // pred_check
      _
    $region7: #{tpu_custom_call.1} parent=1 // pred_check_branch
      %27 = sbr.rel (0) target = $region9
    $region8: #{tpu_custom_call.1} parent=1 // pred_region
      %29 = vsyncadd [#allocation6], 0
      %s30 = sshll.u32 %s1, 4
      %s31 = int_to_ptr.hbm [resolvable:$true] %s30
      %s32 = sshll.u32 [#allocation5], 4
      %s33 = int_to_ptr.vmem [resolvable:$true] %s32
      %38 = dma.hbm_to_vmem [thread:$0]  %s31, 512, %s33, [#allocation6], 128, 128, 8
    $region9: #{tpu_custom_call.1} parent=1 // pred_fallthru
      _
    // Predicated region
    $region10: #{tpu_custom_call.1} parent=1 // pred_check
      _
    $region11: #{tpu_custom_call.1} parent=1 // pred_check_branch
      %40 = sbr.rel (0) target = $region13
    $region12: #{tpu_custom_call.1} parent=1 // pred_region
      %42 = vsyncadd [#allocation6], 0
      %s43 = sshll.u32 %s2, 4
      %s44 = int_to_ptr.hbm [resolvable:$true] %s43
      %s45 = sshll.u32 [#allocation7], 4
      %s46 = int_to_ptr.vmem [resolvable:$true] %s45
      %51 = dma.hbm_to_vmem [thread:$0]  %s44, 5632, %s46, [#allocation6], 128, 128, 8
    $region13: #{tpu_custom_call.1} parent=1 // pred_fallthru
      _
    // Predicated region
    $region14: #{tpu_custom_call.1} parent=1 // pred_check
      _
    $region15: #{tpu_custom_call.1} parent=1 // pred_check_branch
      %53 = sbr.rel (0) target = $region17
    $region16: #{tpu_custom_call.1} parent=1 // pred_region
      %55 = vsyncadd [#allocation9], 0
      %s56 = sshll.u32 %s3, 4
      %s57 = int_to_ptr.hbm [resolvable:$true] %s56
      %s58 = sshll.u32 [#allocation8], 4
      %s59 = int_to_ptr.vmem [resolvable:$true] %s58
      %64 = dma.hbm_to_vmem [thread:$0]  %s57, 384, %s59, [#allocation9], 128, 128, 8
    $region17: #{tpu_custom_call.1} parent=1 // pred_fallthru
      _
    // Predicated region
    $region18: #{tpu_custom_call.1} parent=1 // pred_check
      _
    $region19: #{tpu_custom_call.1} parent=1 // pred_check_branch
      %66 = sbr.rel (0) target = $region21
    $region20: #{tpu_custom_call.1} parent=1 // pred_region
      %68 = dma.done [#allocation3], 512
    $region21: #{tpu_custom_call.1} parent=1 // pred_fallthru
      _
    // Predicated region
    $region22: #{tpu_custom_call.1} parent=1 // pred_check
      _
    $region23: #{tpu_custom_call.1} parent=1 // pred_check_branch
      %70 = sbr.rel (0) target = $region25
    $region24: #{tpu_custom_call.1} parent=1 // pred_region
      %72 = dma.done [#allocation6], 512
    $region25: #{tpu_custom_call.1} parent=1 // pred_fallthru
      _
    // Predicated region
    $region26: #{tpu_custom_call.1} parent=1 // pred_check
      _
    $region27: #{tpu_custom_call.1} parent=1 // pred_check_branch
      %74 = sbr.rel (0) target = $region29
    $region28: #{tpu_custom_call.1} parent=1 // pred_region
      %76 = dma.done [#allocation6], 5632
    $region29: #{tpu_custom_call.1} parent=1 // pred_fallthru
      _
    // Predicated region
    $region30: #{tpu_custom_call.1} parent=1 // pred_check
      _
    $region31: #{tpu_custom_call.1} parent=1 // pred_check_branch
      %78 = sbr.rel (0) target = $region33
    $region32: #{tpu_custom_call.1} parent=1 // pred_region
      %80 = dma.done [#allocation9], 384
    $region33: #{tpu_custom_call.1} parent=1 // pred_fallthru
      _
    %v81 = vld [vmem:[#allocation2] sm:$0xff]
    %v82 = vld [vmem:[#allocation2 + $0x8] sm:$0xff]
    %v83 = vld [vmem:[#allocation2 + $0x10] sm:$0xff]
    %v84 = vld [vmem:[#allocation2 + $0x18] sm:$0xff]
    %v85 = vld [vmem:[#allocation5] sm:$0xff]
    %v86 = vld [vmem:[#allocation5 + $0x8] sm:$0xff]
    %v87 = vld [vmem:[#allocation5 + $0x10] sm:$0xff]
    %v88 = vld [vmem:[#allocation5 + $0x18] sm:$0xff]
    %v89 = vld [vmem:[#allocation7] sm:$0xff]
    %v90 = vld [vmem:[#allocation7 + $0x8] sm:$0xff]
    %v91 = vld [vmem:[#allocation7 + $0x10] sm:$0xff]
    %v92 = vld [vmem:[#allocation7 + $0x18] sm:$0xff]
    %v93 = vld [vmem:[#allocation7 + $0x20] sm:$0xff]
    %v94 = vld [vmem:[#allocation7 + $0x28] sm:$0xff]
    %v95 = vld [vmem:[#allocation7 + $0x30] sm:$0xff]
    %v96 = vld [vmem:[#allocation7 + $0x38] sm:$0xff]
    %v97 = vld [vmem:[#allocation7 + $0x40] sm:$0xff]
    %v98 = vld [vmem:[#allocation7 + $0x48] sm:$0xff]
    %v99 = vld [vmem:[#allocation7 + $0x50] sm:$0xff]
    %v100 = vld [vmem:[#allocation7 + $0x58] sm:$0xff]
    %v101 = vld [vmem:[#allocation7 + $0x60] sm:$0xff]
    %v102 = vld [vmem:[#allocation7 + $0x68] sm:$0xff]
    %v103 = vld [vmem:[#allocation7 + $0x70] sm:$0xff]
    %v104 = vld [vmem:[#allocation7 + $0x78] sm:$0xff]
    %v105 = vld [vmem:[#allocation7 + $0x80] sm:$0xff]
    %v106 = vld [vmem:[#allocation7 + $0x88] sm:$0xff]
    %v107 = vld [vmem:[#allocation7 + $0x90] sm:$0xff]
    %v108 = vld [vmem:[#allocation7 + $0x98] sm:$0xff]
    %v109 = vld [vmem:[#allocation8] sm:$0x1]
    %v110 = vld [vmem:[#allocation8 + $0x1] sm:$0x1]
    %v111 = vld [vmem:[#allocation8 + $0x2] sm:$0x1]
    %v112 = vld [vmem:[#allocation8 + $0x3] sm:$0x1]
    %v113 = vld [vmem:[#allocation8 + $0x4] sm:$0x1]
    %v114 = vld [vmem:[#allocation8 + $0x5] sm:$0x1]
    %v115 = vld [vmem:[#allocation8 + $0x6] sm:$0x1]
    %v116 = vld [vmem:[#allocation8 + $0x7] sm:$0x1]
    %v117 = vperm.slane %v109, 0
    %vm118 = vcmask 261120
    %v120 = vsel %vm118, %v81, 0
    %v123 = vsel %vm118, %v82, 0
    %v126 = vsel %vm118, %v83, 0
    %v129 = vsel %vm118, %v84, 0
    %131 = vmatpush.msra.mxu0 0.0
    %132 = vmatpush.msra.mxu0 0.0
    %133 = vmatpush.msra.mxu0 0.0
    %134 = vmatpush.msra.mxu0 0.0
    %135 = vmatpush.msra.mxu0 0.0
    %136 = vmatpush.msra.mxu0 0.0
    %137 = vmatpush.msra.mxu0 0.0
    %138 = vmatpush.msra.mxu0 0.0
    %139 = vmatpush.msra.mxu0 0.0
    %140 = vmatpush.msra.mxu0 0.0
    %141 = vmatpush.msra.mxu0 0.0
    %142 = vmatpush.msra.mxu0 0.0
    %143 = vmatpush.msra.mxu0 %v92
    %144 = vmatpush.msra.mxu0 %v91
    %145 = vmatpush.msra.mxu0 %v90
    %146 = vmatpush.msra.mxu0 %v89
    %147 = vmatmul.f32.gmra.mxu0 %v120
    %v148 = vpop.f32.mrf.mxu0
    %v149 = vadd.f32 %v117, %v148
    %150 = vmatmul.f32.gmra.mxu0 %v123
    %v151 = vpop.f32.mrf.mxu0
    %v152 = vadd.f32 %v117, %v151
    %153 = vmatmul.f32.gmra.mxu0 %v126
    %v154 = vpop.f32.mrf.mxu0
    %v155 = vadd.f32 %v117, %v154
    %156 = vmatmul.f32.gmra.mxu0 %v129
    %v157 = vpop.f32.mrf.mxu0
    %v158 = vadd.f32 %v117, %v157
    %159 = vdwg.mxu0
    %164 = vrot.lane.b32.xlu0 %v149, 96
    %v165 = vpop.permute.xlu0 %164
    %166 = vrot.lane.b32.xlu0 %v152, 96
    %v167 = vpop.permute.xlu0 %166
    %168 = vrot.lane.b32.xlu0 %v155, 96
    %v169 = vpop.permute.xlu0 %168
    %170 = vrot.lane.b32.xlu0 %v158, 96
    %v171 = vpop.permute.xlu0 %170
    %vm172 = vcmask 64512
    %v173 = vsel %vm172, %v149, 0
    %v175 = vsel %vm172, %v152, 0
    %v177 = vsel %vm172, %v155, 0
    %v179 = vsel %vm172, %v158, 0
    %v181 = vsel %vm172, %v165, 0
    %v183 = vsel %vm172, %v167, 0
    %v185 = vsel %vm172, %v169, 0
    %v187 = vsel %vm172, %v171, 0
    %189 = vmatpush.xpose.msra.mxu0 0.0
    %190 = vmatpush.xpose.msra.mxu0 0.0
    %191 = vmatpush.xpose.msra.mxu0 0.0
    %192 = vmatpush.xpose.msra.mxu0 0.0
    %193 = vmatpush.xpose.msra.mxu0 0.0
    %194 = vmatpush.xpose.msra.mxu0 0.0
    %195 = vmatpush.xpose.msra.mxu0 0.0
    %196 = vmatpush.xpose.msra.mxu0 0.0
    %197 = vmatpush.xpose.msra.mxu0 0.0
    %198 = vmatpush.xpose.msra.mxu0 0.0
    %199 = vmatpush.xpose.msra.mxu0 0.0
    %200 = vmatpush.xpose.msra.mxu0 0.0
    %201 = vmatpush.xpose.msra.mxu0 %v187
    %202 = vmatpush.xpose.msra.mxu0 %v185
    %203 = vmatpush.xpose.msra.mxu0 %v183
    %204 = vmatpush.xpose.msra.mxu0 %v181
    %205 = vmatmul.f32.gmra.mxu0 %v173
    %v206 = vpop.f32.mrf.mxu0
    %v207 = vadd.f32 0.0, %v206
    %208 = vmatmul.f32.gmra.mxu0 %v175
    %v209 = vpop.f32.mrf.mxu0
    %v210 = vadd.f32 0.0, %v209
    %211 = vmatmul.f32.gmra.mxu0 %v177
    %v212 = vpop.f32.mrf.mxu0
    %v213 = vadd.f32 0.0, %v212
    %214 = vmatmul.f32.gmra.mxu0 %v179
    %v215 = vpop.f32.mrf.mxu0
    %v216 = vadd.f32 0.0, %v215
    %217 = vdwg.mxu0
    %v218 = vmul.f32 %v207, 0.35355338
    %v219 = vmul.f32 %v210, 0.35355338
    %v220 = vmul.f32 %v213, 0.35355338
    %v221 = vmul.f32 %v216, 0.35355338
    %v222 = vadd.f32 %v218, %v85
    %v223 = vadd.f32 %v219, %v86
    %v224 = vadd.f32 %v220, %v87
    %v225 = vadd.f32 %v221, %v88
    %v226 = vsel %vm118, %v222, -inf
    %227 = vmax.xlane.f32.xlu0 %v226
    %v228 = vpop.xlane.xlu0 %227
    %v229 = vsel %vm118, %v223, -inf
    %230 = vmax.xlane.f32.xlu0 %v229
    %v231 = vpop.xlane.xlu0 %230
    %v232 = vsel %vm118, %v224, -inf
    %233 = vmax.xlane.f32.xlu0 %v232
    %v234 = vpop.xlane.xlu0 %233
    %v235 = vsel %vm118, %v225, -inf
    %236 = vmax.xlane.f32.xlu0 %v235
    %v237 = vpop.xlane.xlu0 %236
    %v238 = vsub.f32 %v222, %v228
    %v239 = vsub.f32 %v223, %v231
    %v240 = vsub.f32 %v224, %v234
    %v241 = vsub.f32 %v225, %v237
    %v242 = vmul.f32 %v238, 1.442695
    %v243 = vpow.pop %v242
    %v244 = vmul.f32 %v239, 1.442695
    %v245 = vpow.pop %v244
    %v246 = vmul.f32 %v240, 1.442695
    %v247 = vpow.pop %v246
    %v248 = vmul.f32 %v241, 1.442695
    %v249 = vpow.pop %v248
    %v250 = vsel %vm118, %v243, 0.0
    %251 = vadd.xlane.f32.xlu0 %v250
    %v252 = vpop.xlane.xlu0 %251
    %v253 = vsel %vm118, %v245, 0.0
    %254 = vadd.xlane.f32.xlu0 %v253
    %v255 = vpop.xlane.xlu0 %254
    %v256 = vsel %vm118, %v247, 0.0
    %257 = vadd.xlane.f32.xlu0 %v256
    %v258 = vpop.xlane.xlu0 %257
    %v259 = vsel %vm118, %v249, 0.0
    %260 = vadd.xlane.f32.xlu0 %v259
    %v261 = vpop.xlane.xlu0 %260
    %v262 = vrcp.pop %v252
    %v263 = vmul.f32 %v252, %v262
    %v264 = vsub.f32 1.0, %v263
    %v265 = vmul.f32 %v262, %v264
    %v266 = vadd.f32 %v262, %v265
    %vm267 = vweird.f32 %v252
    %vm268 = vweird.f32 %v262
    %vm269 = vmor %vm267, %vm268
    %v270 = vsel %vm269, %v262, %v266
    %v271 = vand.u32 2147483647, %v252
    %vm272 = vcmp.eq.f32.partialorder %v271, 8.507059e+37
    %v273 = vand.u32 %v252, 2147483648
    %v274 = vor.u32 1.1754944e-38, %v273
    %v275 = vsel %vm272, %v274, %v270
    %v276 = vmul.f32 %v243, %v275
    %v277 = vrcp.pop %v255
    %v278 = vmul.f32 %v255, %v277
    %v279 = vsub.f32 1.0, %v278
    %v280 = vmul.f32 %v277, %v279
    %v281 = vadd.f32 %v277, %v280
    %vm282 = vweird.f32 %v255
    %vm283 = vweird.f32 %v277
    %vm284 = vmor %vm282, %vm283
    %v285 = vsel %vm284, %v277, %v281
    %v286 = vand.u32 2147483647, %v255
    %vm287 = vcmp.eq.f32.partialorder %v286, 8.507059e+37
    %v288 = vand.u32 %v255, 2147483648
    %v289 = vor.u32 1.1754944e-38, %v288
    %v290 = vsel %vm287, %v289, %v285
    %v291 = vmul.f32 %v245, %v290
    %v292 = vrcp.pop %v258
    %v293 = vmul.f32 %v258, %v292
    %v294 = vsub.f32 1.0, %v293
    %v295 = vmul.f32 %v292, %v294
    %v296 = vadd.f32 %v292, %v295
    %vm297 = vweird.f32 %v258
    %vm298 = vweird.f32 %v292
    %vm299 = vmor %vm297, %vm298
    %v300 = vsel %vm299, %v292, %v296
    %v301 = vand.u32 2147483647, %v258
    %vm302 = vcmp.eq.f32.partialorder %v301, 8.507059e+37
    %v303 = vand.u32 %v258, 2147483648
    %v304 = vor.u32 1.1754944e-38, %v303
    %v305 = vsel %vm302, %v304, %v300
    %v306 = vmul.f32 %v247, %v305
    %v307 = vrcp.pop %v261
    %v308 = vmul.f32 %v261, %v307
    %v309 = vsub.f32 1.0, %v308
    %v310 = vmul.f32 %v307, %v309
    %v311 = vadd.f32 %v307, %v310
    %vm312 = vweird.f32 %v261
    %vm313 = vweird.f32 %v307
    %vm314 = vmor %vm312, %vm313
    %v315 = vsel %vm314, %v307, %v311
    %v316 = vand.u32 2147483647, %v261
    %vm317 = vcmp.eq.f32.partialorder %v316, 8.507059e+37
    %v318 = vand.u32 %v261, 2147483648
    %v319 = vor.u32 1.1754944e-38, %v318
    %v320 = vsel %vm317, %v319, %v315
    %v321 = vmul.f32 %v249, %v320
    %322 = vrot.lane.b32.xlu0 %v149, 64
    %v323 = vpop.permute.xlu0 %322
    %324 = vrot.lane.b32.xlu0 %v152, 64
    %v325 = vpop.permute.xlu0 %324
    %326 = vrot.lane.b32.xlu0 %v155, 64
    %v327 = vpop.permute.xlu0 %326
    %328 = vrot.lane.b32.xlu0 %v158, 64
    %v329 = vpop.permute.xlu0 %328
    %v335 = vsel %vm118, %v276, 0
    %v338 = vsel %vm118, %v291, 0
    %v341 = vsel %vm118, %v306, 0
    %v344 = vsel %vm118, %v321, 0
    %346 = vmatpush.msra.mxu0 0.0
    %347 = vmatpush.msra.mxu0 0.0
    %348 = vmatpush.msra.mxu0 0.0
    %349 = vmatpush.msra.mxu0 0.0
    %350 = vmatpush.msra.mxu0 0.0
    %351 = vmatpush.msra.mxu0 0.0
    %352 = vmatpush.msra.mxu0 0.0
    %353 = vmatpush.msra.mxu0 0.0
    %354 = vmatpush.msra.mxu0 0.0
    %355 = vmatpush.msra.mxu0 0.0
    %356 = vmatpush.msra.mxu0 0.0
    %357 = vmatpush.msra.mxu0 0.0
    %358 = vmatpush.msra.mxu0 %v329
    %359 = vmatpush.msra.mxu0 %v327
    %360 = vmatpush.msra.mxu0 %v325
    %361 = vmatpush.msra.mxu0 %v323
    %362 = vmatmul.f32.gmra.mxu0 %v335
    %v363 = vpop.f32.mrf.mxu0
    %v364 = vadd.f32 0.0, %v363
    %365 = vmatmul.f32.gmra.mxu0 %v338
    %v366 = vpop.f32.mrf.mxu0
    %v367 = vadd.f32 0.0, %v366
    %368 = vmatmul.f32.gmra.mxu0 %v341
    %v369 = vpop.f32.mrf.mxu0
    %v370 = vadd.f32 0.0, %v369
    %371 = vmatmul.f32.gmra.mxu0 %v344
    %v372 = vpop.f32.mrf.mxu0
    %v373 = vadd.f32 0.0, %v372
    %374 = vdwg.mxu0
    %375 = vrot.lane.b32.xlu0 %v149, 120
    %v376 = vpop.permute.xlu0 %375
    %377 = vrot.lane.b32.xlu0 %v152, 120
    %v378 = vpop.permute.xlu0 %377
    %379 = vrot.lane.b32.xlu0 %v155, 120
    %v380 = vpop.permute.xlu0 %379
    %381 = vrot.lane.b32.xlu0 %v158, 120
    %v382 = vpop.permute.xlu0 %381
    %383 = vrot.lane.b32.xlu0 %v149, 88
    %v384 = vpop.permute.xlu0 %383
    %385 = vrot.lane.b32.xlu0 %v152, 88
    %v386 = vpop.permute.xlu0 %385
    %387 = vrot.lane.b32.xlu0 %v155, 88
    %v388 = vpop.permute.xlu0 %387
    %389 = vrot.lane.b32.xlu0 %v158, 88
    %v390 = vpop.permute.xlu0 %389
    %v391 = vsel %vm172, %v376, 0
    %v393 = vsel %vm172, %v378, 0
    %v395 = vsel %vm172, %v380, 0
    %v397 = vsel %vm172, %v382, 0
    %v399 = vsel %vm172, %v384, 0
    %v401 = vsel %vm172, %v386, 0
    %v403 = vsel %vm172, %v388, 0
    %v405 = vsel %vm172, %v390, 0
    %407 = vmatpush.xpose.msra.mxu0 0.0
    %408 = vmatpush.xpose.msra.mxu0 0.0
    %409 = vmatpush.xpose.msra.mxu0 0.0
    %410 = vmatpush.xpose.msra.mxu0 0.0
    %411 = vmatpush.xpose.msra.mxu0 0.0
    %412 = vmatpush.xpose.msra.mxu0 0.0
    %413 = vmatpush.xpose.msra.mxu0 0.0
    %414 = vmatpush.xpose.msra.mxu0 0.0
    %415 = vmatpush.xpose.msra.mxu0 0.0
    %416 = vmatpush.xpose.msra.mxu0 0.0
    %417 = vmatpush.xpose.msra.mxu0 0.0
    %418 = vmatpush.xpose.msra.mxu0 0.0
    %419 = vmatpush.xpose.msra.mxu0 %v405
    %420 = vmatpush.xpose.msra.mxu0 %v403
    %421 = vmatpush.xpose.msra.mxu0 %v401
    %422 = vmatpush.xpose.msra.mxu0 %v399
    %423 = vmatmul.f32.gmra.mxu0 %v391
    %v424 = vpop.f32.mrf.mxu0
    %v425 = vadd.f32 0.0, %v424
    %426 = vmatmul.f32.gmra.mxu0 %v393
    %v427 = vpop.f32.mrf.mxu0
    %v428 = vadd.f32 0.0, %v427
    %429 = vmatmul.f32.gmra.mxu0 %v395
    %v430 = vpop.f32.mrf.mxu0
    %v431 = vadd.f32 0.0, %v430
    %432 = vmatmul.f32.gmra.mxu0 %v397
    %v433 = vpop.f32.mrf.mxu0
    %v434 = vadd.f32 0.0, %v433
    %435 = vdwg.mxu0
    %v436 = vmul.f32 %v425, 0.35355338
    %v437 = vmul.f32 %v428, 0.35355338
    %v438 = vmul.f32 %v431, 0.35355338
    %v439 = vmul.f32 %v434, 0.35355338
    %v440 = vadd.f32 %v436, %v85
    %v441 = vadd.f32 %v437, %v86
    %v442 = vadd.f32 %v438, %v87
    %v443 = vadd.f32 %v439, %v88
    %v444 = vsel %vm118, %v440, -inf
    %445 = vmax.xlane.f32.xlu0 %v444
    %v446 = vpop.xlane.xlu0 %445
    %v447 = vsel %vm118, %v441, -inf
    %448 = vmax.xlane.f32.xlu0 %v447
    %v449 = vpop.xlane.xlu0 %448
    %v450 = vsel %vm118, %v442, -inf
    %451 = vmax.xlane.f32.xlu0 %v450
    %v452 = vpop.xlane.xlu0 %451
    %v453 = vsel %vm118, %v443, -inf
    %454 = vmax.xlane.f32.xlu0 %v453
    %v455 = vpop.xlane.xlu0 %454
    %v456 = vsub.f32 %v440, %v446
    %v457 = vsub.f32 %v441, %v449
    %v458 = vsub.f32 %v442, %v452
    %v459 = vsub.f32 %v443, %v455
    %v460 = vmul.f32 %v456, 1.442695
    %v461 = vpow.pop %v460
    %v462 = vmul.f32 %v457, 1.442695
    %v463 = vpow.pop %v462
    %v464 = vmul.f32 %v458, 1.442695
    %v465 = vpow.pop %v464
    %v466 = vmul.f32 %v459, 1.442695
    %v467 = vpow.pop %v466
    %v468 = vsel %vm118, %v461, 0.0
    %469 = vadd.xlane.f32.xlu0 %v468
    %v470 = vpop.xlane.xlu0 %469
    %v471 = vsel %vm118, %v463, 0.0
    %472 = vadd.xlane.f32.xlu0 %v471
    %v473 = vpop.xlane.xlu0 %472
    %v474 = vsel %vm118, %v465, 0.0
    %475 = vadd.xlane.f32.xlu0 %v474
    %v476 = vpop.xlane.xlu0 %475
    %v477 = vsel %vm118, %v467, 0.0
    %478 = vadd.xlane.f32.xlu0 %v477
    %v479 = vpop.xlane.xlu0 %478
    %v480 = vrcp.pop %v470
    %v481 = vmul.f32 %v470, %v480
    %v482 = vsub.f32 1.0, %v481
    %v483 = vmul.f32 %v480, %v482
    %v484 = vadd.f32 %v480, %v483
    %vm485 = vweird.f32 %v470
    %vm486 = vweird.f32 %v480
    %vm487 = vmor %vm485, %vm486
    %v488 = vsel %vm487, %v480, %v484
    %v489 = vand.u32 2147483647, %v470
    %vm490 = vcmp.eq.f32.partialorder %v489, 8.507059e+37
    %v491 = vand.u32 %v470, 2147483648
    %v492 = vor.u32 1.1754944e-38, %v491
    %v493 = vsel %vm490, %v492, %v488
    %v494 = vmul.f32 %v461, %v493
    %v495 = vrcp.pop %v473
    %v496 = vmul.f32 %v473, %v495
    %v497 = vsub.f32 1.0, %v496
    %v498 = vmul.f32 %v495, %v497
    %v499 = vadd.f32 %v495, %v498
    %vm500 = vweird.f32 %v473
    %vm501 = vweird.f32 %v495
    %vm502 = vmor %vm500, %vm501
    %v503 = vsel %vm502, %v495, %v499
    %v504 = vand.u32 2147483647, %v473
    %vm505 = vcmp.eq.f32.partialorder %v504, 8.507059e+37
    %v506 = vand.u32 %v473, 2147483648
    %v507 = vor.u32 1.1754944e-38, %v506
    %v508 = vsel %vm505, %v507, %v503
    %v509 = vmul.f32 %v463, %v508
    %v510 = vrcp.pop %v476
    %v511 = vmul.f32 %v476, %v510
    %v512 = vsub.f32 1.0, %v511
    %v513 = vmul.f32 %v510, %v512
    %v514 = vadd.f32 %v510, %v513
    %vm515 = vweird.f32 %v476
    %vm516 = vweird.f32 %v510
    %vm517 = vmor %vm515, %vm516
    %v518 = vsel %vm517, %v510, %v514
    %v519 = vand.u32 2147483647, %v476
    %vm520 = vcmp.eq.f32.partialorder %v519, 8.507059e+37
    %v521 = vand.u32 %v476, 2147483648
    %v522 = vor.u32 1.1754944e-38, %v521
    %v523 = vsel %vm520, %v522, %v518
    %v524 = vmul.f32 %v465, %v523
    %v525 = vrcp.pop %v479
    %v526 = vmul.f32 %v479, %v525
    %v527 = vsub.f32 1.0, %v526
    %v528 = vmul.f32 %v525, %v527
    %v529 = vadd.f32 %v525, %v528
    %vm530 = vweird.f32 %v479
    %vm531 = vweird.f32 %v525
    %vm532 = vmor %vm530, %vm531
    %v533 = vsel %vm532, %v525, %v529
    %v534 = vand.u32 2147483647, %v479
    %vm535 = vcmp.eq.f32.partialorder %v534, 8.507059e+37
    %v536 = vand.u32 %v479, 2147483648
    %v537 = vor.u32 1.1754944e-38, %v536
    %v538 = vsel %vm535, %v537, %v533
    %v539 = vmul.f32 %v467, %v538
    %540 = vrot.lane.b32.xlu0 %v149, 56
    %v541 = vpop.permute.xlu0 %540
    %542 = vrot.lane.b32.xlu0 %v152, 56
    %v543 = vpop.permute.xlu0 %542
    %544 = vrot.lane.b32.xlu0 %v155, 56
    %v545 = vpop.permute.xlu0 %544
    %546 = vrot.lane.b32.xlu0 %v158, 56
    %v547 = vpop.permute.xlu0 %546
    %v553 = vsel %vm118, %v494, 0
    %v556 = vsel %vm118, %v509, 0
    %v559 = vsel %vm118, %v524, 0
    %v562 = vsel %vm118, %v539, 0
    %564 = vmatpush.msra.mxu0 0.0
    %565 = vmatpush.msra.mxu0 0.0
    %566 = vmatpush.msra.mxu0 0.0
    %567 = vmatpush.msra.mxu0 0.0
    %568 = vmatpush.msra.mxu0 0.0
    %569 = vmatpush.msra.mxu0 0.0
    %570 = vmatpush.msra.mxu0 0.0
    %571 = vmatpush.msra.mxu0 0.0
    %572 = vmatpush.msra.mxu0 0.0
    %573 = vmatpush.msra.mxu0 0.0
    %574 = vmatpush.msra.mxu0 0.0
    %575 = vmatpush.msra.mxu0 0.0
    %576 = vmatpush.msra.mxu0 %v547
    %577 = vmatpush.msra.mxu0 %v545
    %578 = vmatpush.msra.mxu0 %v543
    %579 = vmatpush.msra.mxu0 %v541
    %580 = vmatmul.f32.gmra.mxu0 %v553
    %v581 = vpop.f32.mrf.mxu0
    %v582 = vadd.f32 0.0, %v581
    %583 = vmatmul.f32.gmra.mxu0 %v556
    %v584 = vpop.f32.mrf.mxu0
    %v585 = vadd.f32 0.0, %v584
    %586 = vmatmul.f32.gmra.mxu0 %v559
    %v587 = vpop.f32.mrf.mxu0
    %v588 = vadd.f32 0.0, %v587
    %589 = vmatmul.f32.gmra.mxu0 %v562
    %v590 = vpop.f32.mrf.mxu0
    %v591 = vadd.f32 0.0, %v590
    %592 = vdwg.mxu0
    %593 = vrot.lane.b32.xlu0 %v149, 112
    %v594 = vpop.permute.xlu0 %593
    %595 = vrot.lane.b32.xlu0 %v152, 112
    %v596 = vpop.permute.xlu0 %595
    %597 = vrot.lane.b32.xlu0 %v155, 112
    %v598 = vpop.permute.xlu0 %597
    %599 = vrot.lane.b32.xlu0 %v158, 112
    %v600 = vpop.permute.xlu0 %599
    %601 = vrot.lane.b32.xlu0 %v149, 80
    %v602 = vpop.permute.xlu0 %601
    %603 = vrot.lane.b32.xlu0 %v152, 80
    %v604 = vpop.permute.xlu0 %603
    %605 = vrot.lane.b32.xlu0 %v155, 80
    %v606 = vpop.permute.xlu0 %605
    %607 = vrot.lane.b32.xlu0 %v158, 80
    %v608 = vpop.permute.xlu0 %607
    %v609 = vsel %vm172, %v594, 0
    %v611 = vsel %vm172, %v596, 0
    %v613 = vsel %vm172, %v598, 0
    %v615 = vsel %vm172, %v600, 0
    %v617 = vsel %vm172, %v602, 0
    %v619 = vsel %vm172, %v604, 0
    %v621 = vsel %vm172, %v606, 0
    %v623 = vsel %vm172, %v608, 0
    %625 = vmatpush.xpose.msra.mxu0 0.0
    %626 = vmatpush.xpose.msra.mxu0 0.0
    %627 = vmatpush.xpose.msra.mxu0 0.0
    %628 = vmatpush.xpose.msra.mxu0 0.0
    %629 = vmatpush.xpose.msra.mxu0 0.0
    %630 = vmatpush.xpose.msra.mxu0 0.0
    %631 = vmatpush.xpose.msra.mxu0 0.0
    %632 = vmatpush.xpose.msra.mxu0 0.0
    %633 = vmatpush.xpose.msra.mxu0 0.0
    %634 = vmatpush.xpose.msra.mxu0 0.0
    %635 = vmatpush.xpose.msra.mxu0 0.0
    %636 = vmatpush.xpose.msra.mxu0 0.0
    %637 = vmatpush.xpose.msra.mxu0 %v623
    %638 = vmatpush.xpose.msra.mxu0 %v621
    %639 = vmatpush.xpose.msra.mxu0 %v619
    %640 = vmatpush.xpose.msra.mxu0 %v617
    %641 = vmatmul.f32.gmra.mxu0 %v609
    %v642 = vpop.f32.mrf.mxu0
    %v643 = vadd.f32 0.0, %v642
    %644 = vmatmul.f32.gmra.mxu0 %v611
    %v645 = vpop.f32.mrf.mxu0
    %v646 = vadd.f32 0.0, %v645
    %647 = vmatmul.f32.gmra.mxu0 %v613
    %v648 = vpop.f32.mrf.mxu0
    %v649 = vadd.f32 0.0, %v648
    %650 = vmatmul.f32.gmra.mxu0 %v615
    %v651 = vpop.f32.mrf.mxu0
    %v652 = vadd.f32 0.0, %v651
    %653 = vdwg.mxu0
    %v654 = vmul.f32 %v643, 0.35355338
    %v655 = vmul.f32 %v646, 0.35355338
    %v656 = vmul.f32 %v649, 0.35355338
    %v657 = vmul.f32 %v652, 0.35355338
    %v658 = vadd.f32 %v654, %v85
    %v659 = vadd.f32 %v655, %v86
    %v660 = vadd.f32 %v656, %v87
    %v661 = vadd.f32 %v657, %v88
    %v662 = vsel %vm118, %v658, -inf
    %663 = vmax.xlane.f32.xlu0 %v662
    %v664 = vpop.xlane.xlu0 %663
    %v665 = vsel %vm118, %v659, -inf
    %666 = vmax.xlane.f32.xlu0 %v665
    %v667 = vpop.xlane.xlu0 %666
    %v668 = vsel %vm118, %v660, -inf
    %669 = vmax.xlane.f32.xlu0 %v668
    %v670 = vpop.xlane.xlu0 %669
    %v671 = vsel %vm118, %v661, -inf
    %672 = vmax.xlane.f32.xlu0 %v671
    %v673 = vpop.xlane.xlu0 %672
    %v674 = vsub.f32 %v658, %v664
    %v675 = vsub.f32 %v659, %v667
    %v676 = vsub.f32 %v660, %v670
    %v677 = vsub.f32 %v661, %v673
    %v678 = vmul.f32 %v674, 1.442695
    %v679 = vpow.pop %v678
    %v680 = vmul.f32 %v675, 1.442695
    %v681 = vpow.pop %v680
    %v682 = vmul.f32 %v676, 1.442695
    %v683 = vpow.pop %v682
    %v684 = vmul.f32 %v677, 1.442695
    %v685 = vpow.pop %v684
    %v686 = vsel %vm118, %v679, 0.0
    %687 = vadd.xlane.f32.xlu0 %v686
    %v688 = vpop.xlane.xlu0 %687
    %v689 = vsel %vm118, %v681, 0.0
    %690 = vadd.xlane.f32.xlu0 %v689
    %v691 = vpop.xlane.xlu0 %690
    %v692 = vsel %vm118, %v683, 0.0
    %693 = vadd.xlane.f32.xlu0 %v692
    %v694 = vpop.xlane.xlu0 %693
    %v695 = vsel %vm118, %v685, 0.0
    %696 = vadd.xlane.f32.xlu0 %v695
    %v697 = vpop.xlane.xlu0 %696
    %v698 = vrcp.pop %v688
    %v699 = vmul.f32 %v688, %v698
    %v700 = vsub.f32 1.0, %v699
    %v701 = vmul.f32 %v698, %v700
    %v702 = vadd.f32 %v698, %v701
    %vm703 = vweird.f32 %v688
    %vm704 = vweird.f32 %v698
    %vm705 = vmor %vm703, %vm704
    %v706 = vsel %vm705, %v698, %v702
    %v707 = vand.u32 2147483647, %v688
    %vm708 = vcmp.eq.f32.partialorder %v707, 8.507059e+37
    %v709 = vand.u32 %v688, 2147483648
    %v710 = vor.u32 1.1754944e-38, %v709
    %v711 = vsel %vm708, %v710, %v706
    %v712 = vmul.f32 %v679, %v711
    %v713 = vrcp.pop %v691
    %v714 = vmul.f32 %v691, %v713
    %v715 = vsub.f32 1.0, %v714
    %v716 = vmul.f32 %v713, %v715
    %v717 = vadd.f32 %v713, %v716
    %vm718 = vweird.f32 %v691
    %vm719 = vweird.f32 %v713
    %vm720 = vmor %vm718, %vm719
    %v721 = vsel %vm720, %v713, %v717
    %v722 = vand.u32 2147483647, %v691
    %vm723 = vcmp.eq.f32.partialorder %v722, 8.507059e+37
    %v724 = vand.u32 %v691, 2147483648
    %v725 = vor.u32 1.1754944e-38, %v724
    %v726 = vsel %vm723, %v725, %v721
    %v727 = vmul.f32 %v681, %v726
    %v728 = vrcp.pop %v694
    %v729 = vmul.f32 %v694, %v728
    %v730 = vsub.f32 1.0, %v729
    %v731 = vmul.f32 %v728, %v730
    %v732 = vadd.f32 %v728, %v731
    %vm733 = vweird.f32 %v694
    %vm734 = vweird.f32 %v728
    %vm735 = vmor %vm733, %vm734
    %v736 = vsel %vm735, %v728, %v732
    %v737 = vand.u32 2147483647, %v694
    %vm738 = vcmp.eq.f32.partialorder %v737, 8.507059e+37
    %v739 = vand.u32 %v694, 2147483648
    %v740 = vor.u32 1.1754944e-38, %v739
    %v741 = vsel %vm738, %v740, %v736
    %v742 = vmul.f32 %v683, %v741
    %v743 = vrcp.pop %v697
    %v744 = vmul.f32 %v697, %v743
    %v745 = vsub.f32 1.0, %v744
    %v746 = vmul.f32 %v743, %v745
    %v747 = vadd.f32 %v743, %v746
    %vm748 = vweird.f32 %v697
    %vm749 = vweird.f32 %v743
    %vm750 = vmor %vm748, %vm749
    %v751 = vsel %vm750, %v743, %v747
    %v752 = vand.u32 2147483647, %v697
    %vm753 = vcmp.eq.f32.partialorder %v752, 8.507059e+37
    %v754 = vand.u32 %v697, 2147483648
    %v755 = vor.u32 1.1754944e-38, %v754
    %v756 = vsel %vm753, %v755, %v751
    %v757 = vmul.f32 %v685, %v756
    %758 = vrot.lane.b32.xlu0 %v149, 48
    %v759 = vpop.permute.xlu0 %758
    %760 = vrot.lane.b32.xlu0 %v152, 48
    %v761 = vpop.permute.xlu0 %760
    %762 = vrot.lane.b32.xlu0 %v155, 48
    %v763 = vpop.permute.xlu0 %762
    %764 = vrot.lane.b32.xlu0 %v158, 48
    %v765 = vpop.permute.xlu0 %764
    %v771 = vsel %vm118, %v712, 0
    %v774 = vsel %vm118, %v727, 0
    %v777 = vsel %vm118, %v742, 0
    %v780 = vsel %vm118, %v757, 0
    %782 = vmatpush.msra.mxu0 0.0
    %783 = vmatpush.msra.mxu0 0.0
    %784 = vmatpush.msra.mxu0 0.0
    %785 = vmatpush.msra.mxu0 0.0
    %786 = vmatpush.msra.mxu0 0.0
    %787 = vmatpush.msra.mxu0 0.0
    %788 = vmatpush.msra.mxu0 0.0
    %789 = vmatpush.msra.mxu0 0.0
    %790 = vmatpush.msra.mxu0 0.0
    %791 = vmatpush.msra.mxu0 0.0
    %792 = vmatpush.msra.mxu0 0.0
    %793 = vmatpush.msra.mxu0 0.0
    %794 = vmatpush.msra.mxu0 %v765
    %795 = vmatpush.msra.mxu0 %v763
    %796 = vmatpush.msra.mxu0 %v761
    %797 = vmatpush.msra.mxu0 %v759
    %798 = vmatmul.f32.gmra.mxu0 %v771
    %v799 = vpop.f32.mrf.mxu0
    %v800 = vadd.f32 0.0, %v799
    %801 = vmatmul.f32.gmra.mxu0 %v774
    %v802 = vpop.f32.mrf.mxu0
    %v803 = vadd.f32 0.0, %v802
    %804 = vmatmul.f32.gmra.mxu0 %v777
    %v805 = vpop.f32.mrf.mxu0
    %v806 = vadd.f32 0.0, %v805
    %807 = vmatmul.f32.gmra.mxu0 %v780
    %v808 = vpop.f32.mrf.mxu0
    %v809 = vadd.f32 0.0, %v808
    %810 = vdwg.mxu0
    %811 = vrot.lane.b32.xlu0 %v149, 104
    %v812 = vpop.permute.xlu0 %811
    %813 = vrot.lane.b32.xlu0 %v152, 104
    %v814 = vpop.permute.xlu0 %813
    %815 = vrot.lane.b32.xlu0 %v155, 104
    %v816 = vpop.permute.xlu0 %815
    %817 = vrot.lane.b32.xlu0 %v158, 104
    %v818 = vpop.permute.xlu0 %817
    %819 = vrot.lane.b32.xlu0 %v149, 72
    %v820 = vpop.permute.xlu0 %819
    %821 = vrot.lane.b32.xlu0 %v152, 72
    %v822 = vpop.permute.xlu0 %821
    %823 = vrot.lane.b32.xlu0 %v155, 72
    %v824 = vpop.permute.xlu0 %823
    %825 = vrot.lane.b32.xlu0 %v158, 72
    %v826 = vpop.permute.xlu0 %825
    %v827 = vsel %vm172, %v812, 0
    %v829 = vsel %vm172, %v814, 0
    %v831 = vsel %vm172, %v816, 0
    %v833 = vsel %vm172, %v818, 0
    %v835 = vsel %vm172, %v820, 0
    %v837 = vsel %vm172, %v822, 0
    %v839 = vsel %vm172, %v824, 0
    %v841 = vsel %vm172, %v826, 0
    %843 = vmatpush.xpose.msra.mxu0 0.0
    %844 = vmatpush.xpose.msra.mxu0 0.0
    %845 = vmatpush.xpose.msra.mxu0 0.0
    %846 = vmatpush.xpose.msra.mxu0 0.0
    %847 = vmatpush.xpose.msra.mxu0 0.0
    %848 = vmatpush.xpose.msra.mxu0 0.0
    %849 = vmatpush.xpose.msra.mxu0 0.0
    %850 = vmatpush.xpose.msra.mxu0 0.0
    %851 = vmatpush.xpose.msra.mxu0 0.0
    %852 = vmatpush.xpose.msra.mxu0 0.0
    %853 = vmatpush.xpose.msra.mxu0 0.0
    %854 = vmatpush.xpose.msra.mxu0 0.0
    %855 = vmatpush.xpose.msra.mxu0 %v841
    %856 = vmatpush.xpose.msra.mxu0 %v839
    %857 = vmatpush.xpose.msra.mxu0 %v837
    %858 = vmatpush.xpose.msra.mxu0 %v835
    %859 = vmatmul.f32.gmra.mxu0 %v827
    %v860 = vpop.f32.mrf.mxu0
    %v861 = vadd.f32 0.0, %v860
    %862 = vmatmul.f32.gmra.mxu0 %v829
    %v863 = vpop.f32.mrf.mxu0
    %v864 = vadd.f32 0.0, %v863
    %865 = vmatmul.f32.gmra.mxu0 %v831
    %v866 = vpop.f32.mrf.mxu0
    %v867 = vadd.f32 0.0, %v866
    %868 = vmatmul.f32.gmra.mxu0 %v833
    %v869 = vpop.f32.mrf.mxu0
    %v870 = vadd.f32 0.0, %v869
    %871 = vdwg.mxu0
    %v872 = vmul.f32 %v861, 0.35355338
    %v873 = vmul.f32 %v864, 0.35355338
    %v874 = vmul.f32 %v867, 0.35355338
    %v875 = vmul.f32 %v870, 0.35355338
    %v876 = vadd.f32 %v872, %v85
    %v877 = vadd.f32 %v873, %v86
    %v878 = vadd.f32 %v874, %v87
    %v879 = vadd.f32 %v875, %v88
    %v880 = vsel %vm118, %v876, -inf
    %881 = vmax.xlane.f32.xlu0 %v880
    %v882 = vpop.xlane.xlu0 %881
    %v883 = vsel %vm118, %v877, -inf
    %884 = vmax.xlane.f32.xlu0 %v883
    %v885 = vpop.xlane.xlu0 %884
    %v886 = vsel %vm118, %v878, -inf
    %887 = vmax.xlane.f32.xlu0 %v886
    %v888 = vpop.xlane.xlu0 %887
    %v889 = vsel %vm118, %v879, -inf
    %890 = vmax.xlane.f32.xlu0 %v889
    %v891 = vpop.xlane.xlu0 %890
    %v892 = vsub.f32 %v876, %v882
    %v893 = vsub.f32 %v877, %v885
    %v894 = vsub.f32 %v878, %v888
    %v895 = vsub.f32 %v879, %v891
    %v896 = vmul.f32 %v892, 1.442695
    %v897 = vpow.pop %v896
    %v898 = vmul.f32 %v893, 1.442695
    %v899 = vpow.pop %v898
    %v900 = vmul.f32 %v894, 1.442695
    %v901 = vpow.pop %v900
    %v902 = vmul.f32 %v895, 1.442695
    %v903 = vpow.pop %v902
    %v904 = vsel %vm118, %v897, 0.0
    %905 = vadd.xlane.f32.xlu0 %v904
    %v906 = vpop.xlane.xlu0 %905
    %v907 = vsel %vm118, %v899, 0.0
    %908 = vadd.xlane.f32.xlu0 %v907
    %v909 = vpop.xlane.xlu0 %908
    %v910 = vsel %vm118, %v901, 0.0
    %911 = vadd.xlane.f32.xlu0 %v910
    %v912 = vpop.xlane.xlu0 %911
    %v913 = vsel %vm118, %v903, 0.0
    %914 = vadd.xlane.f32.xlu0 %v913
    %v915 = vpop.xlane.xlu0 %914
    %v916 = vrcp.pop %v906
    %v917 = vmul.f32 %v906, %v916
    %v918 = vsub.f32 1.0, %v917
    %v919 = vmul.f32 %v916, %v918
    %v920 = vadd.f32 %v916, %v919
    %vm921 = vweird.f32 %v906
    %vm922 = vweird.f32 %v916
    %vm923 = vmor %vm921, %vm922
    %v924 = vsel %vm923, %v916, %v920
    %v925 = vand.u32 2147483647, %v906
    %vm926 = vcmp.eq.f32.partialorder %v925, 8.507059e+37
    %v927 = vand.u32 %v906, 2147483648
    %v928 = vor.u32 1.1754944e-38, %v927
    %v929 = vsel %vm926, %v928, %v924
    %v930 = vmul.f32 %v897, %v929
    %v931 = vrcp.pop %v909
    %v932 = vmul.f32 %v909, %v931
    %v933 = vsub.f32 1.0, %v932
    %v934 = vmul.f32 %v931, %v933
    %v935 = vadd.f32 %v931, %v934
    %vm936 = vweird.f32 %v909
    %vm937 = vweird.f32 %v931
    %vm938 = vmor %vm936, %vm937
    %v939 = vsel %vm938, %v931, %v935
    %v940 = vand.u32 2147483647, %v909
    %vm941 = vcmp.eq.f32.partialorder %v940, 8.507059e+37
    %v942 = vand.u32 %v909, 2147483648
    %v943 = vor.u32 1.1754944e-38, %v942
    %v944 = vsel %vm941, %v943, %v939
    %v945 = vmul.f32 %v899, %v944
    %v946 = vrcp.pop %v912
    %v947 = vmul.f32 %v912, %v946
    %v948 = vsub.f32 1.0, %v947
    %v949 = vmul.f32 %v946, %v948
    %v950 = vadd.f32 %v946, %v949
    %vm951 = vweird.f32 %v912
    %vm952 = vweird.f32 %v946
    %vm953 = vmor %vm951, %vm952
    %v954 = vsel %vm953, %v946, %v950
    %v955 = vand.u32 2147483647, %v912
    %vm956 = vcmp.eq.f32.partialorder %v955, 8.507059e+37
    %v957 = vand.u32 %v912, 2147483648
    %v958 = vor.u32 1.1754944e-38, %v957
    %v959 = vsel %vm956, %v958, %v954
    %v960 = vmul.f32 %v901, %v959
    %v961 = vrcp.pop %v915
    %v962 = vmul.f32 %v915, %v961
    %v963 = vsub.f32 1.0, %v962
    %v964 = vmul.f32 %v961, %v963
    %v965 = vadd.f32 %v961, %v964
    %vm966 = vweird.f32 %v915
    %vm967 = vweird.f32 %v961
    %vm968 = vmor %vm966, %vm967
    %v969 = vsel %vm968, %v961, %v965
    %v970 = vand.u32 2147483647, %v915
    %vm971 = vcmp.eq.f32.partialorder %v970, 8.507059e+37
    %v972 = vand.u32 %v915, 2147483648
    %v973 = vor.u32 1.1754944e-38, %v972
    %v974 = vsel %vm971, %v973, %v969
    %v975 = vmul.f32 %v903, %v974
    %976 = vrot.lane.b32.xlu0 %v149, 40
    %v977 = vpop.permute.xlu0 %976
    %978 = vrot.lane.b32.xlu0 %v152, 40
    %v979 = vpop.permute.xlu0 %978
    %980 = vrot.lane.b32.xlu0 %v155, 40
    %v981 = vpop.permute.xlu0 %980
    %982 = vrot.lane.b32.xlu0 %v158, 40
    %v983 = vpop.permute.xlu0 %982
    %v989 = vsel %vm118, %v930, 0
    %v992 = vsel %vm118, %v945, 0
    %v995 = vsel %vm118, %v960, 0
    %v998 = vsel %vm118, %v975, 0
    %1000 = vmatpush.msra.mxu0 0.0
    %1001 = vmatpush.msra.mxu0 0.0
    %1002 = vmatpush.msra.mxu0 0.0
    %1003 = vmatpush.msra.mxu0 0.0
    %1004 = vmatpush.msra.mxu0 0.0
    %1005 = vmatpush.msra.mxu0 0.0
    %1006 = vmatpush.msra.mxu0 0.0
    %1007 = vmatpush.msra.mxu0 0.0
    %1008 = vmatpush.msra.mxu0 0.0
    %1009 = vmatpush.msra.mxu0 0.0
    %1010 = vmatpush.msra.mxu0 0.0
    %1011 = vmatpush.msra.mxu0 0.0
    %1012 = vmatpush.msra.mxu0 %v983
    %1013 = vmatpush.msra.mxu0 %v981
    %1014 = vmatpush.msra.mxu0 %v979
    %1015 = vmatpush.msra.mxu0 %v977
    %1016 = vmatmul.f32.gmra.mxu0 %v989
    %v1017 = vpop.f32.mrf.mxu0
    %v1018 = vadd.f32 0.0, %v1017
    %1019 = vmatmul.f32.gmra.mxu0 %v992
    %v1020 = vpop.f32.mrf.mxu0
    %v1021 = vadd.f32 0.0, %v1020
    %1022 = vmatmul.f32.gmra.mxu0 %v995
    %v1023 = vpop.f32.mrf.mxu0
    %v1024 = vadd.f32 0.0, %v1023
    %1025 = vmatmul.f32.gmra.mxu0 %v998
    %v1026 = vpop.f32.mrf.mxu0
    %v1027 = vadd.f32 0.0, %v1026
    %1028 = vdwg.mxu0
    %1033 = vrot.lane.b32.xlu0 %v582, 8
    %v1034 = vpop.permute.xlu0 %1033
    %1035 = vrot.lane.b32.xlu0 %v585, 8
    %v1036 = vpop.permute.xlu0 %1035
    %1037 = vrot.lane.b32.xlu0 %v588, 8
    %v1038 = vpop.permute.xlu0 %1037
    %1039 = vrot.lane.b32.xlu0 %v591, 8
    %v1040 = vpop.permute.xlu0 %1039
    %1049 = vrot.lane.b32.xlu0 %v800, 16
    %v1050 = vpop.permute.xlu0 %1049
    %1051 = vrot.lane.b32.xlu0 %v803, 16
    %v1052 = vpop.permute.xlu0 %1051
    %1053 = vrot.lane.b32.xlu0 %v806, 16
    %v1054 = vpop.permute.xlu0 %1053
    %1055 = vrot.lane.b32.xlu0 %v809, 16
    %v1056 = vpop.permute.xlu0 %1055
    %1065 = vrot.lane.b32.xlu0 %v1018, 24
    %v1066 = vpop.permute.xlu0 %1065
    %1067 = vrot.lane.b32.xlu0 %v1021, 24
    %v1068 = vpop.permute.xlu0 %1067
    %1069 = vrot.lane.b32.xlu0 %v1024, 24
    %v1070 = vpop.permute.xlu0 %1069
    %1071 = vrot.lane.b32.xlu0 %v1027, 24
    %v1072 = vpop.permute.xlu0 %1071
    %v1077 = vsel %vm172, %v364, %v1034
    %v1078 = vsel %vm172, %v367, %v1036
    %v1079 = vsel %vm172, %v370, %v1038
    %v1080 = vsel %vm172, %v373, %v1040
    %vm1081 = vcmask 130048
    %v1082 = vsel %vm1081, %v1077, %v1050
    %v1083 = vsel %vm1081, %v1078, %v1052
    %v1084 = vsel %vm1081, %v1079, %v1054
    %v1085 = vsel %vm1081, %v1080, %v1056
    %vm1086 = vcmask 195584
    %v1087 = vsel %vm1086, %v1082, %v1066
    %v1088 = vsel %vm1086, %v1083, %v1068
    %v1089 = vsel %vm1086, %v1084, %v1070
    %v1090 = vsel %vm1086, %v1085, %v1072
    %v1091 = vperm.slane %v110, 0
    %v1093 = vsel %vm118, %v1087, 0
    %v1096 = vsel %vm118, %v1088, 0
    %v1099 = vsel %vm118, %v1089, 0
    %v1102 = vsel %vm118, %v1090, 0
    %1104 = vmatpush.msra.mxu0 0.0
    %1105 = vmatpush.msra.mxu0 0.0
    %1106 = vmatpush.msra.mxu0 0.0
    %1107 = vmatpush.msra.mxu0 0.0
    %1108 = vmatpush.msra.mxu0 0.0
    %1109 = vmatpush.msra.mxu0 0.0
    %1110 = vmatpush.msra.mxu0 0.0
    %1111 = vmatpush.msra.mxu0 0.0
    %1112 = vmatpush.msra.mxu0 0.0
    %1113 = vmatpush.msra.mxu0 0.0
    %1114 = vmatpush.msra.mxu0 0.0
    %1115 = vmatpush.msra.mxu0 0.0
    %1116 = vmatpush.msra.mxu0 %v96
    %1117 = vmatpush.msra.mxu0 %v95
    %1118 = vmatpush.msra.mxu0 %v94
    %1119 = vmatpush.msra.mxu0 %v93
    %1120 = vmatmul.f32.gmra.mxu0 %v1093
    %v1121 = vpop.f32.mrf.mxu0
    %v1122 = vadd.f32 %v1091, %v1121
    %1123 = vmatmul.f32.gmra.mxu0 %v1096
    %v1124 = vpop.f32.mrf.mxu0
    %v1125 = vadd.f32 %v1091, %v1124
    %1126 = vmatmul.f32.gmra.mxu0 %v1099
    %v1127 = vpop.f32.mrf.mxu0
    %v1128 = vadd.f32 %v1091, %v1127
    %1129 = vmatmul.f32.gmra.mxu0 %v1102
    %v1130 = vpop.f32.mrf.mxu0
    %v1131 = vadd.f32 %v1091, %v1130
    %1132 = vdwg.mxu0
    %v1133 = vadd.f32 %v1122, %v81
    %v1134 = vadd.f32 %v1125, %v82
    %v1135 = vadd.f32 %v1128, %v83
    %v1136 = vadd.f32 %v1131, %v84
    %v1137 = vsel %vm118, %v1133, 0.0
    %1138 = vadd.xlane.f32.xlu0 %v1137
    %v1139 = vpop.xlane.xlu0 %1138
    %v1140 = vsel %vm118, %v1134, 0.0
    %1141 = vadd.xlane.f32.xlu0 %v1140
    %v1142 = vpop.xlane.xlu0 %1141
    %v1143 = vsel %vm118, %v1135, 0.0
    %1144 = vadd.xlane.f32.xlu0 %v1143
    %v1145 = vpop.xlane.xlu0 %1144
    %v1146 = vsel %vm118, %v1136, 0.0
    %1147 = vadd.xlane.f32.xlu0 %v1146
    %v1148 = vpop.xlane.xlu0 %1147
    %v1149 = vrcp.pop 32.0
    %v1150 = vmul.f32 32.0, %v1149
    %v1151 = vsub.f32 1.0, %v1150
    %v1152 = vmul.f32 %v1149, %v1151
    %v1153 = vadd.f32 %v1149, %v1152
    %vm1154 = vweird.f32 %v1149
    %v1155 = vsel %vm1154, %v1149, %v1153
    %v1156 = vmul.f32 %v1139, %v1155
    %v1157 = vmul.f32 %v1142, %v1155
    %v1158 = vmul.f32 %v1145, %v1155
    %v1159 = vmul.f32 %v1148, %v1155
    %v1160 = vsub.f32 %v1133, %v1156
    %v1161 = vsub.f32 %v1134, %v1157
    %v1162 = vsub.f32 %v1135, %v1158
    %v1163 = vsub.f32 %v1136, %v1159
    %v1164 = vmul.f32 %v1160, %v1160
    %v1165 = vmul.f32 %v1161, %v1161
    %v1166 = vmul.f32 %v1162, %v1162
    %v1167 = vmul.f32 %v1163, %v1163
    %v1168 = vsel %vm118, %v1164, 0.0
    %1169 = vadd.xlane.f32.xlu0 %v1168
    %v1170 = vpop.xlane.xlu0 %1169
    %v1171 = vsel %vm118, %v1165, 0.0
    %1172 = vadd.xlane.f32.xlu0 %v1171
    %v1173 = vpop.xlane.xlu0 %1172
    %v1174 = vsel %vm118, %v1166, 0.0
    %1175 = vadd.xlane.f32.xlu0 %v1174
    %v1176 = vpop.xlane.xlu0 %1175
    %v1177 = vsel %vm118, %v1167, 0.0
    %1178 = vadd.xlane.f32.xlu0 %v1177
    %v1179 = vpop.xlane.xlu0 %1178
    %v1180 = vmul.f32 %v1170, %v1155
    %v1181 = vmul.f32 %v1173, %v1155
    %v1182 = vmul.f32 %v1176, %v1155
    %v1183 = vmul.f32 %v1179, %v1155
    %v1184 = vadd.f32 %v1180, 1e-12
    %v1185 = vadd.f32 %v1181, 1e-12
    %v1186 = vadd.f32 %v1182, 1e-12
    %v1187 = vadd.f32 %v1183, 1e-12
    %v1188 = vrsqrt.pop %v1184
    %v1189 = vmul.f32 %v1188, %v1184
    %v1190 = vmul.f32 %v1189, %v1188
    %v1191 = vmul.f32 0.5, %v1190
    %v1192 = vsub.f32 1.5, %v1191
    %v1193 = vmul.f32 %v1188, %v1192
    %vm1194 = vweird.f32 %v1184
    %vm1195 = vweird.f32 %v1188
    %vm1196 = vmor %vm1194, %vm1195
    %v1197 = vsel %vm1196, %v1188, %v1193
    %v1198 = vrsqrt.pop %v1185
    %v1199 = vmul.f32 %v1198, %v1185
    %v1200 = vmul.f32 %v1199, %v1198
    %v1201 = vmul.f32 0.5, %v1200
    %v1202 = vsub.f32 1.5, %v1201
    %v1203 = vmul.f32 %v1198, %v1202
    %vm1204 = vweird.f32 %v1185
    %vm1205 = vweird.f32 %v1198
    %vm1206 = vmor %vm1204, %vm1205
    %v1207 = vsel %vm1206, %v1198, %v1203
    %v1208 = vrsqrt.pop %v1186
    %v1209 = vmul.f32 %v1208, %v1186
    %v1210 = vmul.f32 %v1209, %v1208
    %v1211 = vmul.f32 0.5, %v1210
    %v1212 = vsub.f32 1.5, %v1211
    %v1213 = vmul.f32 %v1208, %v1212
    %vm1214 = vweird.f32 %v1186
    %vm1215 = vweird.f32 %v1208
    %vm1216 = vmor %vm1214, %vm1215
    %v1217 = vsel %vm1216, %v1208, %v1213
    %v1218 = vrsqrt.pop %v1187
    %v1219 = vmul.f32 %v1218, %v1187
    %v1220 = vmul.f32 %v1219, %v1218
    %v1221 = vmul.f32 0.5, %v1220
    %v1222 = vsub.f32 1.5, %v1221
    %v1223 = vmul.f32 %v1218, %v1222
    %vm1224 = vweird.f32 %v1187
    %vm1225 = vweird.f32 %v1218
    %vm1226 = vmor %vm1224, %vm1225
    %v1227 = vsel %vm1226, %v1218, %v1223
    %v1228 = vmul.f32 %v1160, %v1197
    %v1229 = vmul.f32 %v1161, %v1207
    %v1230 = vmul.f32 %v1162, %v1217
    %v1231 = vmul.f32 %v1163, %v1227
    %v1232 = vperm.slane %v111, 0
    %v1233 = vmul.f32 %v1228, %v1232
    %v1234 = vmul.f32 %v1229, %v1232
    %v1235 = vmul.f32 %v1230, %v1232
    %v1236 = vmul.f32 %v1231, %v1232
    %v1237 = vperm.slane %v112, 0
    %v1238 = vadd.f32 %v1233, %v1237
    %v1239 = vadd.f32 %v1234, %v1237
    %v1240 = vadd.f32 %v1235, %v1237
    %v1241 = vadd.f32 %v1236, %v1237
    %v1242 = vperm.slane %v113, 0
    %v1244 = vsel %vm118, %v1238, 0
    %v1247 = vsel %vm118, %v1239, 0
    %v1250 = vsel %vm118, %v1240, 0
    %v1253 = vsel %vm118, %v1241, 0
    %1255 = vmatpush.msra.mxu0 0.0
    %1256 = vmatpush.msra.mxu0 0.0
    %1257 = vmatpush.msra.mxu0 0.0
    %1258 = vmatpush.msra.mxu0 0.0
    %1259 = vmatpush.msra.mxu0 0.0
    %1260 = vmatpush.msra.mxu0 0.0
    %1261 = vmatpush.msra.mxu0 0.0
    %1262 = vmatpush.msra.mxu0 0.0
    %1263 = vmatpush.msra.mxu0 0.0
    %1264 = vmatpush.msra.mxu0 0.0
    %1265 = vmatpush.msra.mxu0 0.0
    %1266 = vmatpush.msra.mxu0 0.0
    %1267 = vmatpush.msra.mxu0 %v100
    %1268 = vmatpush.msra.mxu0 %v99
    %1269 = vmatpush.msra.mxu0 %v98
    %1270 = vmatpush.msra.mxu0 %v97
    %1271 = vmatmul.f32.gmra.mxu0 %v1244
    %v1272 = vpop.f32.mrf.mxu0
    %v1273 = vadd.f32 %v1242, %v1272
    %1274 = vmatmul.f32.gmra.mxu0 %v1247
    %v1275 = vpop.f32.mrf.mxu0
    %v1276 = vadd.f32 %v1242, %v1275
    %1277 = vmatmul.f32.gmra.mxu0 %v1250
    %v1278 = vpop.f32.mrf.mxu0
    %v1279 = vadd.f32 %v1242, %v1278
    %1280 = vmatmul.f32.gmra.mxu0 %v1253
    %v1281 = vpop.f32.mrf.mxu0
    %v1282 = vadd.f32 %v1242, %v1281
    %1283 = vdwg.mxu0
    %v1284 = vmul.f32 %v1273, 0.5
    %v1285 = vmul.f32 %v1276, 0.5
    %v1286 = vmul.f32 %v1279, 0.5
    %v1287 = vmul.f32 %v1282, 0.5
    %v1288 = vrcp.pop 1.4142135
    %v1289 = vmul.f32 1.4142135, %v1288
    %v1290 = vsub.f32 1.0, %v1289
    %v1291 = vmul.f32 %v1288, %v1290
    %v1292 = vadd.f32 %v1288, %v1291
    %vm1293 = vweird.f32 %v1288
    %v1294 = vsel %vm1293, %v1288, %v1292
    %v1295 = vmul.f32 %v1273, %v1294
    %v1296 = vmul.f32 %v1276, %v1294
    %v1297 = vmul.f32 %v1279, %v1294
    %v1298 = vmul.f32 %v1282, %v1294
    %v1299 = vmul.f32 %v1295, %v1295
    %v1300 = vmin.f32 16.0, %v1299
    %v1301 = vmul.f32 %v1300, 2.1237322e-06
    %v1302 = vadd.f32 %v1301, 0.00028619796
    %v1303 = vmul.f32 %v1300, %v1302
    %v1304 = vadd.f32 %v1303, 0.0036580483
    %v1305 = vmul.f32 %v1300, %v1304
    %v1306 = vadd.f32 %v1305, 0.05243302
    %v1307 = vmul.f32 %v1300, %v1306
    %v1308 = vadd.f32 %v1307, 0.18741608
    %v1309 = vmul.f32 %v1300, %v1308
    %v1310 = vadd.f32 %v1309, 1.1283791
    %v1311 = vmul.f32 %v1295, %v1310
    %v1312 = vmul.f32 %v1300, 3.8918573e-05
    %v1313 = vadd.f32 %v1312, 0.001143296
    %v1314 = vmul.f32 %v1300, %v1313
    %v1315 = vadd.f32 %v1314, 0.014752088
    %v1316 = vmul.f32 %v1300, %v1315
    %v1317 = vadd.f32 %v1316, 0.112945676
    %v1318 = vmul.f32 %v1300, %v1317
    %v1319 = vadd.f32 %v1318, 0.4994258
    %v1320 = vmul.f32 %v1300, %v1319
    %v1321 = vadd.f32 %v1320, 1.0
    %v1322 = vrcp.pop %v1321
    %v1323 = vmul.f32 %v1321, %v1322
    %v1324 = vsub.f32 1.0, %v1323
    %v1325 = vmul.f32 %v1322, %v1324
    %v1326 = vadd.f32 %v1322, %v1325
    %vm1327 = vweird.f32 %v1321
    %vm1328 = vweird.f32 %v1322
    %vm1329 = vmor %vm1327, %vm1328
    %v1330 = vsel %vm1329, %v1322, %v1326
    %v1331 = vand.u32 2147483647, %v1321
    %vm1332 = vcmp.eq.f32.partialorder %v1331, 8.507059e+37
    %v1333 = vand.u32 %v1321, 2147483648
    %v1334 = vor.u32 1.1754944e-38, %v1333
    %v1335 = vsel %vm1332, %v1334, %v1330
    %v1336 = vmul.f32 %v1311, %v1335
    %v1337 = vmin.f32 %v1336, 1.0
    %v1338 = vmax.f32 %v1337, -1.0
    %v1339 = vmul.f32 %v1296, %v1296
    %v1340 = vmin.f32 16.0, %v1339
    %v1341 = vmul.f32 %v1340, 2.1237322e-06
    %v1342 = vadd.f32 %v1341, 0.00028619796
    %v1343 = vmul.f32 %v1340, %v1342
    %v1344 = vadd.f32 %v1343, 0.0036580483
    %v1345 = vmul.f32 %v1340, %v1344
    %v1346 = vadd.f32 %v1345, 0.05243302
    %v1347 = vmul.f32 %v1340, %v1346
    %v1348 = vadd.f32 %v1347, 0.18741608
    %v1349 = vmul.f32 %v1340, %v1348
    %v1350 = vadd.f32 %v1349, 1.1283791
    %v1351 = vmul.f32 %v1296, %v1350
    %v1352 = vmul.f32 %v1340, 3.8918573e-05
    %v1353 = vadd.f32 %v1352, 0.001143296
    %v1354 = vmul.f32 %v1340, %v1353
    %v1355 = vadd.f32 %v1354, 0.014752088
    %v1356 = vmul.f32 %v1340, %v1355
    %v1357 = vadd.f32 %v1356, 0.112945676
    %v1358 = vmul.f32 %v1340, %v1357
    %v1359 = vadd.f32 %v1358, 0.4994258
    %v1360 = vmul.f32 %v1340, %v1359
    %v1361 = vadd.f32 %v1360, 1.0
    %v1362 = vrcp.pop %v1361
    %v1363 = vmul.f32 %v1361, %v1362
    %v1364 = vsub.f32 1.0, %v1363
    %v1365 = vmul.f32 %v1362, %v1364
    %v1366 = vadd.f32 %v1362, %v1365
    %vm1367 = vweird.f32 %v1361
    %vm1368 = vweird.f32 %v1362
    %vm1369 = vmor %vm1367, %vm1368
    %v1370 = vsel %vm1369, %v1362, %v1366
    %v1371 = vand.u32 2147483647, %v1361
    %vm1372 = vcmp.eq.f32.partialorder %v1371, 8.507059e+37
    %v1373 = vand.u32 %v1361, 2147483648
    %v1374 = vor.u32 1.1754944e-38, %v1373
    %v1375 = vsel %vm1372, %v1374, %v1370
    %v1376 = vmul.f32 %v1351, %v1375
    %v1377 = vmin.f32 %v1376, 1.0
    %v1378 = vmax.f32 %v1377, -1.0
    %v1379 = vmul.f32 %v1297, %v1297
    %v1380 = vmin.f32 16.0, %v1379
    %v1381 = vmul.f32 %v1380, 2.1237322e-06
    %v1382 = vadd.f32 %v1381, 0.00028619796
    %v1383 = vmul.f32 %v1380, %v1382
    %v1384 = vadd.f32 %v1383, 0.0036580483
    %v1385 = vmul.f32 %v1380, %v1384
    %v1386 = vadd.f32 %v1385, 0.05243302
    %v1387 = vmul.f32 %v1380, %v1386
    %v1388 = vadd.f32 %v1387, 0.18741608
    %v1389 = vmul.f32 %v1380, %v1388
    %v1390 = vadd.f32 %v1389, 1.1283791
    %v1391 = vmul.f32 %v1297, %v1390
    %v1392 = vmul.f32 %v1380, 3.8918573e-05
    %v1393 = vadd.f32 %v1392, 0.001143296
    %v1394 = vmul.f32 %v1380, %v1393
    %v1395 = vadd.f32 %v1394, 0.014752088
    %v1396 = vmul.f32 %v1380, %v1395
    %v1397 = vadd.f32 %v1396, 0.112945676
    %v1398 = vmul.f32 %v1380, %v1397
    %v1399 = vadd.f32 %v1398, 0.4994258
    %v1400 = vmul.f32 %v1380, %v1399
    %v1401 = vadd.f32 %v1400, 1.0
    %v1402 = vrcp.pop %v1401
    %v1403 = vmul.f32 %v1401, %v1402
    %v1404 = vsub.f32 1.0, %v1403
    %v1405 = vmul.f32 %v1402, %v1404
    %v1406 = vadd.f32 %v1402, %v1405
    %vm1407 = vweird.f32 %v1401
    %vm1408 = vweird.f32 %v1402
    %vm1409 = vmor %vm1407, %vm1408
    %v1410 = vsel %vm1409, %v1402, %v1406
    %v1411 = vand.u32 2147483647, %v1401
    %vm1412 = vcmp.eq.f32.partialorder %v1411, 8.507059e+37
    %v1413 = vand.u32 %v1401, 2147483648
    %v1414 = vor.u32 1.1754944e-38, %v1413
    %v1415 = vsel %vm1412, %v1414, %v1410
    %v1416 = vmul.f32 %v1391, %v1415
    %v1417 = vmin.f32 %v1416, 1.0
    %v1418 = vmax.f32 %v1417, -1.0
    %v1419 = vmul.f32 %v1298, %v1298
    %v1420 = vmin.f32 16.0, %v1419
    %v1421 = vmul.f32 %v1420, 2.1237322e-06
    %v1422 = vadd.f32 %v1421, 0.00028619796
    %v1423 = vmul.f32 %v1420, %v1422
    %v1424 = vadd.f32 %v1423, 0.0036580483
    %v1425 = vmul.f32 %v1420, %v1424
    %v1426 = vadd.f32 %v1425, 0.05243302
    %v1427 = vmul.f32 %v1420, %v1426
    %v1428 = vadd.f32 %v1427, 0.18741608
    %v1429 = vmul.f32 %v1420, %v1428
    %v1430 = vadd.f32 %v1429, 1.1283791
    %v1431 = vmul.f32 %v1298, %v1430
    %v1432 = vmul.f32 %v1420, 3.8918573e-05
    %v1433 = vadd.f32 %v1432, 0.001143296
    %v1434 = vmul.f32 %v1420, %v1433
    %v1435 = vadd.f32 %v1434, 0.014752088
    %v1436 = vmul.f32 %v1420, %v1435
    %v1437 = vadd.f32 %v1436, 0.112945676
    %v1438 = vmul.f32 %v1420, %v1437
    %v1439 = vadd.f32 %v1438, 0.4994258
    %v1440 = vmul.f32 %v1420, %v1439
    %v1441 = vadd.f32 %v1440, 1.0
    %v1442 = vrcp.pop %v1441
    %v1443 = vmul.f32 %v1441, %v1442
    %v1444 = vsub.f32 1.0, %v1443
    %v1445 = vmul.f32 %v1442, %v1444
    %v1446 = vadd.f32 %v1442, %v1445
    %vm1447 = vweird.f32 %v1441
    %vm1448 = vweird.f32 %v1442
    %vm1449 = vmor %vm1447, %vm1448
    %v1450 = vsel %vm1449, %v1442, %v1446
    %v1451 = vand.u32 2147483647, %v1441
    %vm1452 = vcmp.eq.f32.partialorder %v1451, 8.507059e+37
    %v1453 = vand.u32 %v1441, 2147483648
    %v1454 = vor.u32 1.1754944e-38, %v1453
    %v1455 = vsel %vm1452, %v1454, %v1450
    %v1456 = vmul.f32 %v1431, %v1455
    %v1457 = vmin.f32 %v1456, 1.0
    %v1458 = vmax.f32 %v1457, -1.0
    %v1459 = vadd.f32 %v1338, 1.0
    %v1460 = vadd.f32 %v1378, 1.0
    %v1461 = vadd.f32 %v1418, 1.0
    %v1462 = vadd.f32 %v1458, 1.0
    %v1463 = vmul.f32 %v1284, %v1459
    %v1464 = vmul.f32 %v1285, %v1460
    %v1465 = vmul.f32 %v1286, %v1461
    %v1466 = vmul.f32 %v1287, %v1462
    %v1467 = vperm.slane %v114, 0
    %vm1468 = vcmask 523264
    %v1470 = vsel %vm1468, %v1463, 0
    %v1473 = vsel %vm1468, %v1464, 0
    %v1476 = vsel %vm1468, %v1465, 0
    %v1479 = vsel %vm1468, %v1466, 0
    %1481 = vmatpush.msra.mxu0 0.0
    %1482 = vmatpush.msra.mxu0 0.0
    %1483 = vmatpush.msra.mxu0 0.0
    %1484 = vmatpush.msra.mxu0 0.0
    %1485 = vmatpush.msra.mxu0 0.0
    %1486 = vmatpush.msra.mxu0 0.0
    %1487 = vmatpush.msra.mxu0 0.0
    %1488 = vmatpush.msra.mxu0 0.0
    %1489 = vmatpush.msra.mxu0 %v108
    %1490 = vmatpush.msra.mxu0 %v107
    %1491 = vmatpush.msra.mxu0 %v106
    %1492 = vmatpush.msra.mxu0 %v105
    %1493 = vmatpush.msra.mxu0 %v104
    %1494 = vmatpush.msra.mxu0 %v103
    %1495 = vmatpush.msra.mxu0 %v102
    %1496 = vmatpush.msra.mxu0 %v101
    %1497 = vmatmul.f32.gmra.mxu0 %v1470
    %v1498 = vpop.f32.mrf.mxu0
    %v1499 = vadd.f32 %v1467, %v1498
    %1500 = vmatmul.f32.gmra.mxu0 %v1473
    %v1501 = vpop.f32.mrf.mxu0
    %v1502 = vadd.f32 %v1467, %v1501
    %1503 = vmatmul.f32.gmra.mxu0 %v1476
    %v1504 = vpop.f32.mrf.mxu0
    %v1505 = vadd.f32 %v1467, %v1504
    %1506 = vmatmul.f32.gmra.mxu0 %v1479
    %v1507 = vpop.f32.mrf.mxu0
    %v1508 = vadd.f32 %v1467, %v1507
    %1509 = vdwg.mxu0
    %v1510 = vadd.f32 %v1499, %v1238
    %v1511 = vadd.f32 %v1502, %v1239
    %v1512 = vadd.f32 %v1505, %v1240
    %v1513 = vadd.f32 %v1508, %v1241
    %v1514 = vsel %vm118, %v1510, 0.0
    %1515 = vadd.xlane.f32.xlu0 %v1514
    %v1516 = vpop.xlane.xlu0 %1515
    %v1517 = vsel %vm118, %v1511, 0.0
    %1518 = vadd.xlane.f32.xlu0 %v1517
    %v1519 = vpop.xlane.xlu0 %1518
    %v1520 = vsel %vm118, %v1512, 0.0
    %1521 = vadd.xlane.f32.xlu0 %v1520
    %v1522 = vpop.xlane.xlu0 %1521
    %v1523 = vsel %vm118, %v1513, 0.0
    %1524 = vadd.xlane.f32.xlu0 %v1523
    %v1525 = vpop.xlane.xlu0 %1524
    %v1526 = vmul.f32 %v1516, %v1155
    %v1527 = vmul.f32 %v1519, %v1155
    %v1528 = vmul.f32 %v1522, %v1155
    %v1529 = vmul.f32 %v1525, %v1155
    %v1530 = vsub.f32 %v1510, %v1526
    %v1531 = vsub.f32 %v1511, %v1527
    %v1532 = vsub.f32 %v1512, %v1528
    %v1533 = vsub.f32 %v1513, %v1529
    %v1534 = vmul.f32 %v1530, %v1530
    %v1535 = vmul.f32 %v1531, %v1531
    %v1536 = vmul.f32 %v1532, %v1532
    %v1537 = vmul.f32 %v1533, %v1533
    %v1538 = vsel %vm118, %v1534, 0.0
    %1539 = vadd.xlane.f32.xlu0 %v1538
    %v1540 = vpop.xlane.xlu0 %1539
    %v1541 = vsel %vm118, %v1535, 0.0
    %1542 = vadd.xlane.f32.xlu0 %v1541
    %v1543 = vpop.xlane.xlu0 %1542
    %v1544 = vsel %vm118, %v1536, 0.0
    %1545 = vadd.xlane.f32.xlu0 %v1544
    %v1546 = vpop.xlane.xlu0 %1545
    %v1547 = vsel %vm118, %v1537, 0.0
    %1548 = vadd.xlane.f32.xlu0 %v1547
    %v1549 = vpop.xlane.xlu0 %1548
    %v1550 = vmul.f32 %v1540, %v1155
    %v1551 = vmul.f32 %v1543, %v1155
    %v1552 = vmul.f32 %v1546, %v1155
    %v1553 = vmul.f32 %v1549, %v1155
    %v1554 = vadd.f32 %v1550, 1e-12
    %v1555 = vadd.f32 %v1551, 1e-12
    %v1556 = vadd.f32 %v1552, 1e-12
    %v1557 = vadd.f32 %v1553, 1e-12
    %v1558 = vrsqrt.pop %v1554
    %v1559 = vmul.f32 %v1558, %v1554
    %v1560 = vmul.f32 %v1559, %v1558
    %v1561 = vmul.f32 0.5, %v1560
    %v1562 = vsub.f32 1.5, %v1561
    %v1563 = vmul.f32 %v1558, %v1562
    %vm1564 = vweird.f32 %v1554
    %vm1565 = vweird.f32 %v1558
    %vm1566 = vmor %vm1564, %vm1565
    %v1567 = vsel %vm1566, %v1558, %v1563
    %v1568 = vrsqrt.pop %v1555
    %v1569 = vmul.f32 %v1568, %v1555
    %v1570 = vmul.f32 %v1569, %v1568
    %v1571 = vmul.f32 0.5, %v1570
    %v1572 = vsub.f32 1.5, %v1571
    %v1573 = vmul.f32 %v1568, %v1572
    %vm1574 = vweird.f32 %v1555
    %vm1575 = vweird.f32 %v1568
    %vm1576 = vmor %vm1574, %vm1575
    %v1577 = vsel %vm1576, %v1568, %v1573
    %v1578 = vrsqrt.pop %v1556
    %v1579 = vmul.f32 %v1578, %v1556
    %v1580 = vmul.f32 %v1579, %v1578
    %v1581 = vmul.f32 0.5, %v1580
    %v1582 = vsub.f32 1.5, %v1581
    %v1583 = vmul.f32 %v1578, %v1582
    %vm1584 = vweird.f32 %v1556
    %vm1585 = vweird.f32 %v1578
    %vm1586 = vmor %vm1584, %vm1585
    %v1587 = vsel %vm1586, %v1578, %v1583
    %v1588 = vrsqrt.pop %v1557
    %v1589 = vmul.f32 %v1588, %v1557
    %v1590 = vmul.f32 %v1589, %v1588
    %v1591 = vmul.f32 0.5, %v1590
    %v1592 = vsub.f32 1.5, %v1591
    %v1593 = vmul.f32 %v1588, %v1592
    %vm1594 = vweird.f32 %v1557
    %vm1595 = vweird.f32 %v1588
    %vm1596 = vmor %vm1594, %vm1595
    %v1597 = vsel %vm1596, %v1588, %v1593
    %v1598 = vmul.f32 %v1530, %v1567
    %v1599 = vmul.f32 %v1531, %v1577
    %v1600 = vmul.f32 %v1532, %v1587
    %v1601 = vmul.f32 %v1533, %v1597
    %v1602 = vperm.slane %v115, 0
    %v1603 = vmul.f32 %v1598, %v1602
    %v1604 = vmul.f32 %v1599, %v1602
    %v1605 = vmul.f32 %v1600, %v1602
    %v1606 = vmul.f32 %v1601, %v1602
    %v1607 = vperm.slane %v116, 0
    %v1608 = vadd.f32 %v1603, %v1607
    %v1609 = vadd.f32 %v1604, %v1607
    %v1610 = vadd.f32 %v1605, %v1607
    %v1611 = vadd.f32 %v1606, %v1607
    %v1612 = vld [vmem:[#allocation7 + $0xa0] sm:$0xff]
    %v1613 = vld [vmem:[#allocation7 + $0xa8] sm:$0xff]
    %v1614 = vld [vmem:[#allocation7 + $0xb0] sm:$0xff]
    %v1615 = vld [vmem:[#allocation7 + $0xb8] sm:$0xff]
    %v1616 = vld [vmem:[#allocation7 + $0xc0] sm:$0xff]
    %v1617 = vld [vmem:[#allocation7 + $0xc8] sm:$0xff]
    %v1618 = vld [vmem:[#allocation7 + $0xd0] sm:$0xff]
    %v1619 = vld [vmem:[#allocation7 + $0xd8] sm:$0xff]
    %v1620 = vld [vmem:[#allocation7 + $0xe0] sm:$0xff]
    %v1621 = vld [vmem:[#allocation7 + $0xe8] sm:$0xff]
    %v1622 = vld [vmem:[#allocation7 + $0xf0] sm:$0xff]
    %v1623 = vld [vmem:[#allocation7 + $0xf8] sm:$0xff]
    %v1624 = vld [vmem:[#allocation7 + $0x100] sm:$0xff]
    %v1625 = vld [vmem:[#allocation7 + $0x108] sm:$0xff]
    %v1626 = vld [vmem:[#allocation7 + $0x110] sm:$0xff]
    %v1627 = vld [vmem:[#allocation7 + $0x118] sm:$0xff]
    %v1628 = vld [vmem:[#allocation7 + $0x120] sm:$0xff]
    %v1629 = vld [vmem:[#allocation7 + $0x128] sm:$0xff]
    %v1630 = vld [vmem:[#allocation7 + $0x130] sm:$0xff]
    %v1631 = vld [vmem:[#allocation7 + $0x138] sm:$0xff]
    %v1632 = vld [vmem:[#allocation8 + $0x8] sm:$0x1]
    %v1633 = vld [vmem:[#allocation8 + $0x9] sm:$0x1]
    %v1634 = vld [vmem:[#allocation8 + $0xa] sm:$0x1]
    %v1635 = vld [vmem:[#allocation8 + $0xb] sm:$0x1]
    %v1636 = vld [vmem:[#allocation8 + $0xc] sm:$0x1]
    %v1637 = vld [vmem:[#allocation8 + $0xd] sm:$0x1]
    %v1638 = vld [vmem:[#allocation8 + $0xe] sm:$0x1]
    %v1639 = vld [vmem:[#allocation8 + $0xf] sm:$0x1]
    %v1640 = vperm.slane %v1632, 0
    %v1642 = vsel %vm118, %v1608, 0
    %v1645 = vsel %vm118, %v1609, 0
    %v1648 = vsel %vm118, %v1610, 0
    %v1651 = vsel %vm118, %v1611, 0
    %1653 = vmatpush.msra.mxu0 0.0
    %1654 = vmatpush.msra.mxu0 0.0
    %1655 = vmatpush.msra.mxu0 0.0
    %1656 = vmatpush.msra.mxu0 0.0
    %1657 = vmatpush.msra.mxu0 0.0
    %1658 = vmatpush.msra.mxu0 0.0
    %1659 = vmatpush.msra.mxu0 0.0
    %1660 = vmatpush.msra.mxu0 0.0
    %1661 = vmatpush.msra.mxu0 0.0
    %1662 = vmatpush.msra.mxu0 0.0
    %1663 = vmatpush.msra.mxu0 0.0
    %1664 = vmatpush.msra.mxu0 0.0
    %1665 = vmatpush.msra.mxu0 %v1615
    %1666 = vmatpush.msra.mxu0 %v1614
    %1667 = vmatpush.msra.mxu0 %v1613
    %1668 = vmatpush.msra.mxu0 %v1612
    %1669 = vmatmul.f32.gmra.mxu0 %v1642
    %v1670 = vpop.f32.mrf.mxu0
    %v1671 = vadd.f32 %v1640, %v1670
    %1672 = vmatmul.f32.gmra.mxu0 %v1645
    %v1673 = vpop.f32.mrf.mxu0
    %v1674 = vadd.f32 %v1640, %v1673
    %1675 = vmatmul.f32.gmra.mxu0 %v1648
    %v1676 = vpop.f32.mrf.mxu0
    %v1677 = vadd.f32 %v1640, %v1676
    %1678 = vmatmul.f32.gmra.mxu0 %v1651
    %v1679 = vpop.f32.mrf.mxu0
    %v1680 = vadd.f32 %v1640, %v1679
    %1681 = vdwg.mxu0
    %1686 = vrot.lane.b32.xlu0 %v1671, 96
    %v1687 = vpop.permute.xlu0 %1686
    %1688 = vrot.lane.b32.xlu0 %v1674, 96
    %v1689 = vpop.permute.xlu0 %1688
    %1690 = vrot.lane.b32.xlu0 %v1677, 96
    %v1691 = vpop.permute.xlu0 %1690
    %1692 = vrot.lane.b32.xlu0 %v1680, 96
    %v1693 = vpop.permute.xlu0 %1692
    %v1694 = vsel %vm172, %v1671, 0
    %v1696 = vsel %vm172, %v1674, 0
    %v1698 = vsel %vm172, %v1677, 0
    %v1700 = vsel %vm172, %v1680, 0
    %v1702 = vsel %vm172, %v1687, 0
    %v1704 = vsel %vm172, %v1689, 0
    %v1706 = vsel %vm172, %v1691, 0
    %v1708 = vsel %vm172, %v1693, 0
    %1710 = vmatpush.xpose.msra.mxu0 0.0
    %1711 = vmatpush.xpose.msra.mxu0 0.0
    %1712 = vmatpush.xpose.msra.mxu0 0.0
    %1713 = vmatpush.xpose.msra.mxu0 0.0
    %1714 = vmatpush.xpose.msra.mxu0 0.0
    %1715 = vmatpush.xpose.msra.mxu0 0.0
    %1716 = vmatpush.xpose.msra.mxu0 0.0
    %1717 = vmatpush.xpose.msra.mxu0 0.0
    %1718 = vmatpush.xpose.msra.mxu0 0.0
    %1719 = vmatpush.xpose.msra.mxu0 0.0
    %1720 = vmatpush.xpose.msra.mxu0 0.0
    %1721 = vmatpush.xpose.msra.mxu0 0.0
    %1722 = vmatpush.xpose.msra.mxu0 %v1708
    %1723 = vmatpush.xpose.msra.mxu0 %v1706
    %1724 = vmatpush.xpose.msra.mxu0 %v1704
    %1725 = vmatpush.xpose.msra.mxu0 %v1702
    %1726 = vmatmul.f32.gmra.mxu0 %v1694
    %v1727 = vpop.f32.mrf.mxu0
    %v1728 = vadd.f32 0.0, %v1727
    %1729 = vmatmul.f32.gmra.mxu0 %v1696
    %v1730 = vpop.f32.mrf.mxu0
    %v1731 = vadd.f32 0.0, %v1730
    %1732 = vmatmul.f32.gmra.mxu0 %v1698
    %v1733 = vpop.f32.mrf.mxu0
    %v1734 = vadd.f32 0.0, %v1733
    %1735 = vmatmul.f32.gmra.mxu0 %v1700
    %v1736 = vpop.f32.mrf.mxu0
    %v1737 = vadd.f32 0.0, %v1736
    %1738 = vdwg.mxu0
    %v1739 = vmul.f32 %v1728, 0.35355338
    %v1740 = vmul.f32 %v1731, 0.35355338
    %v1741 = vmul.f32 %v1734, 0.35355338
    %v1742 = vmul.f32 %v1737, 0.35355338
    %v1743 = vadd.f32 %v1739, %v85
    %v1744 = vadd.f32 %v1740, %v86
    %v1745 = vadd.f32 %v1741, %v87
    %v1746 = vadd.f32 %v1742, %v88
    %v1747 = vsel %vm118, %v1743, -inf
    %1748 = vmax.xlane.f32.xlu0 %v1747
    %v1749 = vpop.xlane.xlu0 %1748
    %v1750 = vsel %vm118, %v1744, -inf
    %1751 = vmax.xlane.f32.xlu0 %v1750
    %v1752 = vpop.xlane.xlu0 %1751
    %v1753 = vsel %vm118, %v1745, -inf
    %1754 = vmax.xlane.f32.xlu0 %v1753
    %v1755 = vpop.xlane.xlu0 %1754
    %v1756 = vsel %vm118, %v1746, -inf
    %1757 = vmax.xlane.f32.xlu0 %v1756
    %v1758 = vpop.xlane.xlu0 %1757
    %v1759 = vsub.f32 %v1743, %v1749
    %v1760 = vsub.f32 %v1744, %v1752
    %v1761 = vsub.f32 %v1745, %v1755
    %v1762 = vsub.f32 %v1746, %v1758
    %v1763 = vmul.f32 %v1759, 1.442695
    %v1764 = vpow.pop %v1763
    %v1765 = vmul.f32 %v1760, 1.442695
    %v1766 = vpow.pop %v1765
    %v1767 = vmul.f32 %v1761, 1.442695
    %v1768 = vpow.pop %v1767
    %v1769 = vmul.f32 %v1762, 1.442695
    %v1770 = vpow.pop %v1769
    %v1771 = vsel %vm118, %v1764, 0.0
    %1772 = vadd.xlane.f32.xlu0 %v1771
    %v1773 = vpop.xlane.xlu0 %1772
    %v1774 = vsel %vm118, %v1766, 0.0
    %1775 = vadd.xlane.f32.xlu0 %v1774
    %v1776 = vpop.xlane.xlu0 %1775
    %v1777 = vsel %vm118, %v1768, 0.0
    %1778 = vadd.xlane.f32.xlu0 %v1777
    %v1779 = vpop.xlane.xlu0 %1778
    %v1780 = vsel %vm118, %v1770, 0.0
    %1781 = vadd.xlane.f32.xlu0 %v1780
    %v1782 = vpop.xlane.xlu0 %1781
    %v1783 = vrcp.pop %v1773
    %v1784 = vmul.f32 %v1773, %v1783
    %v1785 = vsub.f32 1.0, %v1784
    %v1786 = vmul.f32 %v1783, %v1785
    %v1787 = vadd.f32 %v1783, %v1786
    %vm1788 = vweird.f32 %v1773
    %vm1789 = vweird.f32 %v1783
    %vm1790 = vmor %vm1788, %vm1789
    %v1791 = vsel %vm1790, %v1783, %v1787
    %v1792 = vand.u32 2147483647, %v1773
    %vm1793 = vcmp.eq.f32.partialorder %v1792, 8.507059e+37
    %v1794 = vand.u32 %v1773, 2147483648
    %v1795 = vor.u32 1.1754944e-38, %v1794
    %v1796 = vsel %vm1793, %v1795, %v1791
    %v1797 = vmul.f32 %v1764, %v1796
    %v1798 = vrcp.pop %v1776
    %v1799 = vmul.f32 %v1776, %v1798
    %v1800 = vsub.f32 1.0, %v1799
    %v1801 = vmul.f32 %v1798, %v1800
    %v1802 = vadd.f32 %v1798, %v1801
    %vm1803 = vweird.f32 %v1776
    %vm1804 = vweird.f32 %v1798
    %vm1805 = vmor %vm1803, %vm1804
    %v1806 = vsel %vm1805, %v1798, %v1802
    %v1807 = vand.u32 2147483647, %v1776
    %vm1808 = vcmp.eq.f32.partialorder %v1807, 8.507059e+37
    %v1809 = vand.u32 %v1776, 2147483648
    %v1810 = vor.u32 1.1754944e-38, %v1809
    %v1811 = vsel %vm1808, %v1810, %v1806
    %v1812 = vmul.f32 %v1766, %v1811
    %v1813 = vrcp.pop %v1779
    %v1814 = vmul.f32 %v1779, %v1813
    %v1815 = vsub.f32 1.0, %v1814
    %v1816 = vmul.f32 %v1813, %v1815
    %v1817 = vadd.f32 %v1813, %v1816
    %vm1818 = vweird.f32 %v1779
    %vm1819 = vweird.f32 %v1813
    %vm1820 = vmor %vm1818, %vm1819
    %v1821 = vsel %vm1820, %v1813, %v1817
    %v1822 = vand.u32 2147483647, %v1779
    %vm1823 = vcmp.eq.f32.partialorder %v1822, 8.507059e+37
    %v1824 = vand.u32 %v1779, 2147483648
    %v1825 = vor.u32 1.1754944e-38, %v1824
    %v1826 = vsel %vm1823, %v1825, %v1821
    %v1827 = vmul.f32 %v1768, %v1826
    %v1828 = vrcp.pop %v1782
    %v1829 = vmul.f32 %v1782, %v1828
    %v1830 = vsub.f32 1.0, %v1829
    %v1831 = vmul.f32 %v1828, %v1830
    %v1832 = vadd.f32 %v1828, %v1831
    %vm1833 = vweird.f32 %v1782
    %vm1834 = vweird.f32 %v1828
    %vm1835 = vmor %vm1833, %vm1834
    %v1836 = vsel %vm1835, %v1828, %v1832
    %v1837 = vand.u32 2147483647, %v1782
    %vm1838 = vcmp.eq.f32.partialorder %v1837, 8.507059e+37
    %v1839 = vand.u32 %v1782, 2147483648
    %v1840 = vor.u32 1.1754944e-38, %v1839
    %v1841 = vsel %vm1838, %v1840, %v1836
    %v1842 = vmul.f32 %v1770, %v1841
    %1843 = vrot.lane.b32.xlu0 %v1671, 64
    %v1844 = vpop.permute.xlu0 %1843
    %1845 = vrot.lane.b32.xlu0 %v1674, 64
    %v1846 = vpop.permute.xlu0 %1845
    %1847 = vrot.lane.b32.xlu0 %v1677, 64
    %v1848 = vpop.permute.xlu0 %1847
    %1849 = vrot.lane.b32.xlu0 %v1680, 64
    %v1850 = vpop.permute.xlu0 %1849
    %v1856 = vsel %vm118, %v1797, 0
    %v1859 = vsel %vm118, %v1812, 0
    %v1862 = vsel %vm118, %v1827, 0
    %v1865 = vsel %vm118, %v1842, 0
    %1867 = vmatpush.msra.mxu0 0.0
    %1868 = vmatpush.msra.mxu0 0.0
    %1869 = vmatpush.msra.mxu0 0.0
    %1870 = vmatpush.msra.mxu0 0.0
    %1871 = vmatpush.msra.mxu0 0.0
    %1872 = vmatpush.msra.mxu0 0.0
    %1873 = vmatpush.msra.mxu0 0.0
    %1874 = vmatpush.msra.mxu0 0.0
    %1875 = vmatpush.msra.mxu0 0.0
    %1876 = vmatpush.msra.mxu0 0.0
    %1877 = vmatpush.msra.mxu0 0.0
    %1878 = vmatpush.msra.mxu0 0.0
    %1879 = vmatpush.msra.mxu0 %v1850
    %1880 = vmatpush.msra.mxu0 %v1848
    %1881 = vmatpush.msra.mxu0 %v1846
    %1882 = vmatpush.msra.mxu0 %v1844
    %1883 = vmatmul.f32.gmra.mxu0 %v1856
    %v1884 = vpop.f32.mrf.mxu0
    %v1885 = vadd.f32 0.0, %v1884
    %1886 = vmatmul.f32.gmra.mxu0 %v1859
    %v1887 = vpop.f32.mrf.mxu0
    %v1888 = vadd.f32 0.0, %v1887
    %1889 = vmatmul.f32.gmra.mxu0 %v1862
    %v1890 = vpop.f32.mrf.mxu0
    %v1891 = vadd.f32 0.0, %v1890
    %1892 = vmatmul.f32.gmra.mxu0 %v1865
    %v1893 = vpop.f32.mrf.mxu0
    %v1894 = vadd.f32 0.0, %v1893
    %1895 = vdwg.mxu0
    %1896 = vrot.lane.b32.xlu0 %v1671, 120
    %v1897 = vpop.permute.xlu0 %1896
    %1898 = vrot.lane.b32.xlu0 %v1674, 120
    %v1899 = vpop.permute.xlu0 %1898
    %1900 = vrot.lane.b32.xlu0 %v1677, 120
    %v1901 = vpop.permute.xlu0 %1900
    %1902 = vrot.lane.b32.xlu0 %v1680, 120
    %v1903 = vpop.permute.xlu0 %1902
    %1904 = vrot.lane.b32.xlu0 %v1671, 88
    %v1905 = vpop.permute.xlu0 %1904
    %1906 = vrot.lane.b32.xlu0 %v1674, 88
    %v1907 = vpop.permute.xlu0 %1906
    %1908 = vrot.lane.b32.xlu0 %v1677, 88
    %v1909 = vpop.permute.xlu0 %1908
    %1910 = vrot.lane.b32.xlu0 %v1680, 88
    %v1911 = vpop.permute.xlu0 %1910
    %v1912 = vsel %vm172, %v1897, 0
    %v1914 = vsel %vm172, %v1899, 0
    %v1916 = vsel %vm172, %v1901, 0
    %v1918 = vsel %vm172, %v1903, 0
    %v1920 = vsel %vm172, %v1905, 0
    %v1922 = vsel %vm172, %v1907, 0
    %v1924 = vsel %vm172, %v1909, 0
    %v1926 = vsel %vm172, %v1911, 0
    %1928 = vmatpush.xpose.msra.mxu0 0.0
    %1929 = vmatpush.xpose.msra.mxu0 0.0
    %1930 = vmatpush.xpose.msra.mxu0 0.0
    %1931 = vmatpush.xpose.msra.mxu0 0.0
    %1932 = vmatpush.xpose.msra.mxu0 0.0
    %1933 = vmatpush.xpose.msra.mxu0 0.0
    %1934 = vmatpush.xpose.msra.mxu0 0.0
    %1935 = vmatpush.xpose.msra.mxu0 0.0
    %1936 = vmatpush.xpose.msra.mxu0 0.0
    %1937 = vmatpush.xpose.msra.mxu0 0.0
    %1938 = vmatpush.xpose.msra.mxu0 0.0
    %1939 = vmatpush.xpose.msra.mxu0 0.0
    %1940 = vmatpush.xpose.msra.mxu0 %v1926
    %1941 = vmatpush.xpose.msra.mxu0 %v1924
    %1942 = vmatpush.xpose.msra.mxu0 %v1922
    %1943 = vmatpush.xpose.msra.mxu0 %v1920
    %1944 = vmatmul.f32.gmra.mxu0 %v1912
    %v1945 = vpop.f32.mrf.mxu0
    %v1946 = vadd.f32 0.0, %v1945
    %1947 = vmatmul.f32.gmra.mxu0 %v1914
    %v1948 = vpop.f32.mrf.mxu0
    %v1949 = vadd.f32 0.0, %v1948
    %1950 = vmatmul.f32.gmra.mxu0 %v1916
    %v1951 = vpop.f32.mrf.mxu0
    %v1952 = vadd.f32 0.0, %v1951
    %1953 = vmatmul.f32.gmra.mxu0 %v1918
    %v1954 = vpop.f32.mrf.mxu0
    %v1955 = vadd.f32 0.0, %v1954
    %1956 = vdwg.mxu0
    %v1957 = vmul.f32 %v1946, 0.35355338
    %v1958 = vmul.f32 %v1949, 0.35355338
    %v1959 = vmul.f32 %v1952, 0.35355338
    %v1960 = vmul.f32 %v1955, 0.35355338
    %v1961 = vadd.f32 %v1957, %v85
    %v1962 = vadd.f32 %v1958, %v86
    %v1963 = vadd.f32 %v1959, %v87
    %v1964 = vadd.f32 %v1960, %v88
    %v1965 = vsel %vm118, %v1961, -inf
    %1966 = vmax.xlane.f32.xlu0 %v1965
    %v1967 = vpop.xlane.xlu0 %1966
    %v1968 = vsel %vm118, %v1962, -inf
    %1969 = vmax.xlane.f32.xlu0 %v1968
    %v1970 = vpop.xlane.xlu0 %1969
    %v1971 = vsel %vm118, %v1963, -inf
    %1972 = vmax.xlane.f32.xlu0 %v1971
    %v1973 = vpop.xlane.xlu0 %1972
    %v1974 = vsel %vm118, %v1964, -inf
    %1975 = vmax.xlane.f32.xlu0 %v1974
    %v1976 = vpop.xlane.xlu0 %1975
    %v1977 = vsub.f32 %v1961, %v1967
    %v1978 = vsub.f32 %v1962, %v1970
    %v1979 = vsub.f32 %v1963, %v1973
    %v1980 = vsub.f32 %v1964, %v1976
    %v1981 = vmul.f32 %v1977, 1.442695
    %v1982 = vpow.pop %v1981
    %v1983 = vmul.f32 %v1978, 1.442695
    %v1984 = vpow.pop %v1983
    %v1985 = vmul.f32 %v1979, 1.442695
    %v1986 = vpow.pop %v1985
    %v1987 = vmul.f32 %v1980, 1.442695
    %v1988 = vpow.pop %v1987
    %v1989 = vsel %vm118, %v1982, 0.0
    %1990 = vadd.xlane.f32.xlu0 %v1989
    %v1991 = vpop.xlane.xlu0 %1990
    %v1992 = vsel %vm118, %v1984, 0.0
    %1993 = vadd.xlane.f32.xlu0 %v1992
    %v1994 = vpop.xlane.xlu0 %1993
    %v1995 = vsel %vm118, %v1986, 0.0
    %1996 = vadd.xlane.f32.xlu0 %v1995
    %v1997 = vpop.xlane.xlu0 %1996
    %v1998 = vsel %vm118, %v1988, 0.0
    %1999 = vadd.xlane.f32.xlu0 %v1998
    %v2000 = vpop.xlane.xlu0 %1999
    %v2001 = vrcp.pop %v1991
    %v2002 = vmul.f32 %v1991, %v2001
    %v2003 = vsub.f32 1.0, %v2002
    %v2004 = vmul.f32 %v2001, %v2003
    %v2005 = vadd.f32 %v2001, %v2004
    %vm2006 = vweird.f32 %v1991
    %vm2007 = vweird.f32 %v2001
    %vm2008 = vmor %vm2006, %vm2007
    %v2009 = vsel %vm2008, %v2001, %v2005
    %v2010 = vand.u32 2147483647, %v1991
    %vm2011 = vcmp.eq.f32.partialorder %v2010, 8.507059e+37
    %v2012 = vand.u32 %v1991, 2147483648
    %v2013 = vor.u32 1.1754944e-38, %v2012
    %v2014 = vsel %vm2011, %v2013, %v2009
    %v2015 = vmul.f32 %v1982, %v2014
    %v2016 = vrcp.pop %v1994
    %v2017 = vmul.f32 %v1994, %v2016
    %v2018 = vsub.f32 1.0, %v2017
    %v2019 = vmul.f32 %v2016, %v2018
    %v2020 = vadd.f32 %v2016, %v2019
    %vm2021 = vweird.f32 %v1994
    %vm2022 = vweird.f32 %v2016
    %vm2023 = vmor %vm2021, %vm2022
    %v2024 = vsel %vm2023, %v2016, %v2020
    %v2025 = vand.u32 2147483647, %v1994
    %vm2026 = vcmp.eq.f32.partialorder %v2025, 8.507059e+37
    %v2027 = vand.u32 %v1994, 2147483648
    %v2028 = vor.u32 1.1754944e-38, %v2027
    %v2029 = vsel %vm2026, %v2028, %v2024
    %v2030 = vmul.f32 %v1984, %v2029
    %v2031 = vrcp.pop %v1997
    %v2032 = vmul.f32 %v1997, %v2031
    %v2033 = vsub.f32 1.0, %v2032
    %v2034 = vmul.f32 %v2031, %v2033
    %v2035 = vadd.f32 %v2031, %v2034
    %vm2036 = vweird.f32 %v1997
    %vm2037 = vweird.f32 %v2031
    %vm2038 = vmor %vm2036, %vm2037
    %v2039 = vsel %vm2038, %v2031, %v2035
    %v2040 = vand.u32 2147483647, %v1997
    %vm2041 = vcmp.eq.f32.partialorder %v2040, 8.507059e+37
    %v2042 = vand.u32 %v1997, 2147483648
    %v2043 = vor.u32 1.1754944e-38, %v2042
    %v2044 = vsel %vm2041, %v2043, %v2039
    %v2045 = vmul.f32 %v1986, %v2044
    %v2046 = vrcp.pop %v2000
    %v2047 = vmul.f32 %v2000, %v2046
    %v2048 = vsub.f32 1.0, %v2047
    %v2049 = vmul.f32 %v2046, %v2048
    %v2050 = vadd.f32 %v2046, %v2049
    %vm2051 = vweird.f32 %v2000
    %vm2052 = vweird.f32 %v2046
    %vm2053 = vmor %vm2051, %vm2052
    %v2054 = vsel %vm2053, %v2046, %v2050
    %v2055 = vand.u32 2147483647, %v2000
    %vm2056 = vcmp.eq.f32.partialorder %v2055, 8.507059e+37
    %v2057 = vand.u32 %v2000, 2147483648
    %v2058 = vor.u32 1.1754944e-38, %v2057
    %v2059 = vsel %vm2056, %v2058, %v2054
    %v2060 = vmul.f32 %v1988, %v2059
    %2061 = vrot.lane.b32.xlu0 %v1671, 56
    %v2062 = vpop.permute.xlu0 %2061
    %2063 = vrot.lane.b32.xlu0 %v1674, 56
    %v2064 = vpop.permute.xlu0 %2063
    %2065 = vrot.lane.b32.xlu0 %v1677, 56
    %v2066 = vpop.permute.xlu0 %2065
    %2067 = vrot.lane.b32.xlu0 %v1680, 56
    %v2068 = vpop.permute.xlu0 %2067
    %v2074 = vsel %vm118, %v2015, 0
    %v2077 = vsel %vm118, %v2030, 0
    %v2080 = vsel %vm118, %v2045, 0
    %v2083 = vsel %vm118, %v2060, 0
    %2085 = vmatpush.msra.mxu0 0.0
    %2086 = vmatpush.msra.mxu0 0.0
    %2087 = vmatpush.msra.mxu0 0.0
    %2088 = vmatpush.msra.mxu0 0.0
    %2089 = vmatpush.msra.mxu0 0.0
    %2090 = vmatpush.msra.mxu0 0.0
    %2091 = vmatpush.msra.mxu0 0.0
    %2092 = vmatpush.msra.mxu0 0.0
    %2093 = vmatpush.msra.mxu0 0.0
    %2094 = vmatpush.msra.mxu0 0.0
    %2095 = vmatpush.msra.mxu0 0.0
    %2096 = vmatpush.msra.mxu0 0.0
    %2097 = vmatpush.msra.mxu0 %v2068
    %2098 = vmatpush.msra.mxu0 %v2066
    %2099 = vmatpush.msra.mxu0 %v2064
    %2100 = vmatpush.msra.mxu0 %v2062
    %2101 = vmatmul.f32.gmra.mxu0 %v2074
    %v2102 = vpop.f32.mrf.mxu0
    %v2103 = vadd.f32 0.0, %v2102
    %2104 = vmatmul.f32.gmra.mxu0 %v2077
    %v2105 = vpop.f32.mrf.mxu0
    %v2106 = vadd.f32 0.0, %v2105
    %2107 = vmatmul.f32.gmra.mxu0 %v2080
    %v2108 = vpop.f32.mrf.mxu0
    %v2109 = vadd.f32 0.0, %v2108
    %2110 = vmatmul.f32.gmra.mxu0 %v2083
    %v2111 = vpop.f32.mrf.mxu0
    %v2112 = vadd.f32 0.0, %v2111
    %2113 = vdwg.mxu0
    %2114 = vrot.lane.b32.xlu0 %v1671, 112
    %v2115 = vpop.permute.xlu0 %2114
    %2116 = vrot.lane.b32.xlu0 %v1674, 112
    %v2117 = vpop.permute.xlu0 %2116
    %2118 = vrot.lane.b32.xlu0 %v1677, 112
    %v2119 = vpop.permute.xlu0 %2118
    %2120 = vrot.lane.b32.xlu0 %v1680, 112
    %v2121 = vpop.permute.xlu0 %2120
    %2122 = vrot.lane.b32.xlu0 %v1671, 80
    %v2123 = vpop.permute.xlu0 %2122
    %2124 = vrot.lane.b32.xlu0 %v1674, 80
    %v2125 = vpop.permute.xlu0 %2124
    %2126 = vrot.lane.b32.xlu0 %v1677, 80
    %v2127 = vpop.permute.xlu0 %2126
    %2128 = vrot.lane.b32.xlu0 %v1680, 80
    %v2129 = vpop.permute.xlu0 %2128
    %v2130 = vsel %vm172, %v2115, 0
    %v2132 = vsel %vm172, %v2117, 0
    %v2134 = vsel %vm172, %v2119, 0
    %v2136 = vsel %vm172, %v2121, 0
    %v2138 = vsel %vm172, %v2123, 0
    %v2140 = vsel %vm172, %v2125, 0
    %v2142 = vsel %vm172, %v2127, 0
    %v2144 = vsel %vm172, %v2129, 0
    %2146 = vmatpush.xpose.msra.mxu0 0.0
    %2147 = vmatpush.xpose.msra.mxu0 0.0
    %2148 = vmatpush.xpose.msra.mxu0 0.0
    %2149 = vmatpush.xpose.msra.mxu0 0.0
    %2150 = vmatpush.xpose.msra.mxu0 0.0
    %2151 = vmatpush.xpose.msra.mxu0 0.0
    %2152 = vmatpush.xpose.msra.mxu0 0.0
    %2153 = vmatpush.xpose.msra.mxu0 0.0
    %2154 = vmatpush.xpose.msra.mxu0 0.0
    %2155 = vmatpush.xpose.msra.mxu0 0.0
    %2156 = vmatpush.xpose.msra.mxu0 0.0
    %2157 = vmatpush.xpose.msra.mxu0 0.0
    %2158 = vmatpush.xpose.msra.mxu0 %v2144
    %2159 = vmatpush.xpose.msra.mxu0 %v2142
    %2160 = vmatpush.xpose.msra.mxu0 %v2140
    %2161 = vmatpush.xpose.msra.mxu0 %v2138
    %2162 = vmatmul.f32.gmra.mxu0 %v2130
    %v2163 = vpop.f32.mrf.mxu0
    %v2164 = vadd.f32 0.0, %v2163
    %2165 = vmatmul.f32.gmra.mxu0 %v2132
    %v2166 = vpop.f32.mrf.mxu0
    %v2167 = vadd.f32 0.0, %v2166
    %2168 = vmatmul.f32.gmra.mxu0 %v2134
    %v2169 = vpop.f32.mrf.mxu0
    %v2170 = vadd.f32 0.0, %v2169
    %2171 = vmatmul.f32.gmra.mxu0 %v2136
    %v2172 = vpop.f32.mrf.mxu0
    %v2173 = vadd.f32 0.0, %v2172
    %2174 = vdwg.mxu0
    %v2175 = vmul.f32 %v2164, 0.35355338
    %v2176 = vmul.f32 %v2167, 0.35355338
    %v2177 = vmul.f32 %v2170, 0.35355338
    %v2178 = vmul.f32 %v2173, 0.35355338
    %v2179 = vadd.f32 %v2175, %v85
    %v2180 = vadd.f32 %v2176, %v86
    %v2181 = vadd.f32 %v2177, %v87
    %v2182 = vadd.f32 %v2178, %v88
    %v2183 = vsel %vm118, %v2179, -inf
    %2184 = vmax.xlane.f32.xlu0 %v2183
    %v2185 = vpop.xlane.xlu0 %2184
    %v2186 = vsel %vm118, %v2180, -inf
    %2187 = vmax.xlane.f32.xlu0 %v2186
    %v2188 = vpop.xlane.xlu0 %2187
    %v2189 = vsel %vm118, %v2181, -inf
    %2190 = vmax.xlane.f32.xlu0 %v2189
    %v2191 = vpop.xlane.xlu0 %2190
    %v2192 = vsel %vm118, %v2182, -inf
    %2193 = vmax.xlane.f32.xlu0 %v2192
    %v2194 = vpop.xlane.xlu0 %2193
    %v2195 = vsub.f32 %v2179, %v2185
    %v2196 = vsub.f32 %v2180, %v2188
    %v2197 = vsub.f32 %v2181, %v2191
    %v2198 = vsub.f32 %v2182, %v2194
    %v2199 = vmul.f32 %v2195, 1.442695
    %v2200 = vpow.pop %v2199
    %v2201 = vmul.f32 %v2196, 1.442695
    %v2202 = vpow.pop %v2201
    %v2203 = vmul.f32 %v2197, 1.442695
    %v2204 = vpow.pop %v2203
    %v2205 = vmul.f32 %v2198, 1.442695
    %v2206 = vpow.pop %v2205
    %v2207 = vsel %vm118, %v2200, 0.0
    %2208 = vadd.xlane.f32.xlu0 %v2207
    %v2209 = vpop.xlane.xlu0 %2208
    %v2210 = vsel %vm118, %v2202, 0.0
    %2211 = vadd.xlane.f32.xlu0 %v2210
    %v2212 = vpop.xlane.xlu0 %2211
    %v2213 = vsel %vm118, %v2204, 0.0
    %2214 = vadd.xlane.f32.xlu0 %v2213
    %v2215 = vpop.xlane.xlu0 %2214
    %v2216 = vsel %vm118, %v2206, 0.0
    %2217 = vadd.xlane.f32.xlu0 %v2216
    %v2218 = vpop.xlane.xlu0 %2217
    %v2219 = vrcp.pop %v2209
    %v2220 = vmul.f32 %v2209, %v2219
    %v2221 = vsub.f32 1.0, %v2220
    %v2222 = vmul.f32 %v2219, %v2221
    %v2223 = vadd.f32 %v2219, %v2222
    %vm2224 = vweird.f32 %v2209
    %vm2225 = vweird.f32 %v2219
    %vm2226 = vmor %vm2224, %vm2225
    %v2227 = vsel %vm2226, %v2219, %v2223
    %v2228 = vand.u32 2147483647, %v2209
    %vm2229 = vcmp.eq.f32.partialorder %v2228, 8.507059e+37
    %v2230 = vand.u32 %v2209, 2147483648
    %v2231 = vor.u32 1.1754944e-38, %v2230
    %v2232 = vsel %vm2229, %v2231, %v2227
    %v2233 = vmul.f32 %v2200, %v2232
    %v2234 = vrcp.pop %v2212
    %v2235 = vmul.f32 %v2212, %v2234
    %v2236 = vsub.f32 1.0, %v2235
    %v2237 = vmul.f32 %v2234, %v2236
    %v2238 = vadd.f32 %v2234, %v2237
    %vm2239 = vweird.f32 %v2212
    %vm2240 = vweird.f32 %v2234
    %vm2241 = vmor %vm2239, %vm2240
    %v2242 = vsel %vm2241, %v2234, %v2238
    %v2243 = vand.u32 2147483647, %v2212
    %vm2244 = vcmp.eq.f32.partialorder %v2243, 8.507059e+37
    %v2245 = vand.u32 %v2212, 2147483648
    %v2246 = vor.u32 1.1754944e-38, %v2245
    %v2247 = vsel %vm2244, %v2246, %v2242
    %v2248 = vmul.f32 %v2202, %v2247
    %v2249 = vrcp.pop %v2215
    %v2250 = vmul.f32 %v2215, %v2249
    %v2251 = vsub.f32 1.0, %v2250
    %v2252 = vmul.f32 %v2249, %v2251
    %v2253 = vadd.f32 %v2249, %v2252
    %vm2254 = vweird.f32 %v2215
    %vm2255 = vweird.f32 %v2249
    %vm2256 = vmor %vm2254, %vm2255
    %v2257 = vsel %vm2256, %v2249, %v2253
    %v2258 = vand.u32 2147483647, %v2215
    %vm2259 = vcmp.eq.f32.partialorder %v2258, 8.507059e+37
    %v2260 = vand.u32 %v2215, 2147483648
    %v2261 = vor.u32 1.1754944e-38, %v2260
    %v2262 = vsel %vm2259, %v2261, %v2257
    %v2263 = vmul.f32 %v2204, %v2262
    %v2264 = vrcp.pop %v2218
    %v2265 = vmul.f32 %v2218, %v2264
    %v2266 = vsub.f32 1.0, %v2265
    %v2267 = vmul.f32 %v2264, %v2266
    %v2268 = vadd.f32 %v2264, %v2267
    %vm2269 = vweird.f32 %v2218
    %vm2270 = vweird.f32 %v2264
    %vm2271 = vmor %vm2269, %vm2270
    %v2272 = vsel %vm2271, %v2264, %v2268
    %v2273 = vand.u32 2147483647, %v2218
    %vm2274 = vcmp.eq.f32.partialorder %v2273, 8.507059e+37
    %v2275 = vand.u32 %v2218, 2147483648
    %v2276 = vor.u32 1.1754944e-38, %v2275
    %v2277 = vsel %vm2274, %v2276, %v2272
    %v2278 = vmul.f32 %v2206, %v2277
    %2279 = vrot.lane.b32.xlu0 %v1671, 48
    %v2280 = vpop.permute.xlu0 %2279
    %2281 = vrot.lane.b32.xlu0 %v1674, 48
    %v2282 = vpop.permute.xlu0 %2281
    %2283 = vrot.lane.b32.xlu0 %v1677, 48
    %v2284 = vpop.permute.xlu0 %2283
    %2285 = vrot.lane.b32.xlu0 %v1680, 48
    %v2286 = vpop.permute.xlu0 %2285
    %v2292 = vsel %vm118, %v2233, 0
    %v2295 = vsel %vm118, %v2248, 0
    %v2298 = vsel %vm118, %v2263, 0
    %v2301 = vsel %vm118, %v2278, 0
    %2303 = vmatpush.msra.mxu0 0.0
    %2304 = vmatpush.msra.mxu0 0.0
    %2305 = vmatpush.msra.mxu0 0.0
    %2306 = vmatpush.msra.mxu0 0.0
    %2307 = vmatpush.msra.mxu0 0.0
    %2308 = vmatpush.msra.mxu0 0.0
    %2309 = vmatpush.msra.mxu0 0.0
    %2310 = vmatpush.msra.mxu0 0.0
    %2311 = vmatpush.msra.mxu0 0.0
    %2312 = vmatpush.msra.mxu0 0.0
    %2313 = vmatpush.msra.mxu0 0.0
    %2314 = vmatpush.msra.mxu0 0.0
    %2315 = vmatpush.msra.mxu0 %v2286
    %2316 = vmatpush.msra.mxu0 %v2284
    %2317 = vmatpush.msra.mxu0 %v2282
    %2318 = vmatpush.msra.mxu0 %v2280
    %2319 = vmatmul.f32.gmra.mxu0 %v2292
    %v2320 = vpop.f32.mrf.mxu0
    %v2321 = vadd.f32 0.0, %v2320
    %2322 = vmatmul.f32.gmra.mxu0 %v2295
    %v2323 = vpop.f32.mrf.mxu0
    %v2324 = vadd.f32 0.0, %v2323
    %2325 = vmatmul.f32.gmra.mxu0 %v2298
    %v2326 = vpop.f32.mrf.mxu0
    %v2327 = vadd.f32 0.0, %v2326
    %2328 = vmatmul.f32.gmra.mxu0 %v2301
    %v2329 = vpop.f32.mrf.mxu0
    %v2330 = vadd.f32 0.0, %v2329
    %2331 = vdwg.mxu0
    %2332 = vrot.lane.b32.xlu0 %v1671, 104
    %v2333 = vpop.permute.xlu0 %2332
    %2334 = vrot.lane.b32.xlu0 %v1674, 104
    %v2335 = vpop.permute.xlu0 %2334
    %2336 = vrot.lane.b32.xlu0 %v1677, 104
    %v2337 = vpop.permute.xlu0 %2336
    %2338 = vrot.lane.b32.xlu0 %v1680, 104
    %v2339 = vpop.permute.xlu0 %2338
    %2340 = vrot.lane.b32.xlu0 %v1671, 72
    %v2341 = vpop.permute.xlu0 %2340
    %2342 = vrot.lane.b32.xlu0 %v1674, 72
    %v2343 = vpop.permute.xlu0 %2342
    %2344 = vrot.lane.b32.xlu0 %v1677, 72
    %v2345 = vpop.permute.xlu0 %2344
    %2346 = vrot.lane.b32.xlu0 %v1680, 72
    %v2347 = vpop.permute.xlu0 %2346
    %v2348 = vsel %vm172, %v2333, 0
    %v2350 = vsel %vm172, %v2335, 0
    %v2352 = vsel %vm172, %v2337, 0
    %v2354 = vsel %vm172, %v2339, 0
    %v2356 = vsel %vm172, %v2341, 0
    %v2358 = vsel %vm172, %v2343, 0
    %v2360 = vsel %vm172, %v2345, 0
    %v2362 = vsel %vm172, %v2347, 0
    %2364 = vmatpush.xpose.msra.mxu0 0.0
    %2365 = vmatpush.xpose.msra.mxu0 0.0
    %2366 = vmatpush.xpose.msra.mxu0 0.0
    %2367 = vmatpush.xpose.msra.mxu0 0.0
    %2368 = vmatpush.xpose.msra.mxu0 0.0
    %2369 = vmatpush.xpose.msra.mxu0 0.0
    %2370 = vmatpush.xpose.msra.mxu0 0.0
    %2371 = vmatpush.xpose.msra.mxu0 0.0
    %2372 = vmatpush.xpose.msra.mxu0 0.0
    %2373 = vmatpush.xpose.msra.mxu0 0.0
    %2374 = vmatpush.xpose.msra.mxu0 0.0
    %2375 = vmatpush.xpose.msra.mxu0 0.0
    %2376 = vmatpush.xpose.msra.mxu0 %v2362
    %2377 = vmatpush.xpose.msra.mxu0 %v2360
    %2378 = vmatpush.xpose.msra.mxu0 %v2358
    %2379 = vmatpush.xpose.msra.mxu0 %v2356
    %2380 = vmatmul.f32.gmra.mxu0 %v2348
    %v2381 = vpop.f32.mrf.mxu0
    %v2382 = vadd.f32 0.0, %v2381
    %2383 = vmatmul.f32.gmra.mxu0 %v2350
    %v2384 = vpop.f32.mrf.mxu0
    %v2385 = vadd.f32 0.0, %v2384
    %2386 = vmatmul.f32.gmra.mxu0 %v2352
    %v2387 = vpop.f32.mrf.mxu0
    %v2388 = vadd.f32 0.0, %v2387
    %2389 = vmatmul.f32.gmra.mxu0 %v2354
    %v2390 = vpop.f32.mrf.mxu0
    %v2391 = vadd.f32 0.0, %v2390
    %2392 = vdwg.mxu0
    %v2393 = vmul.f32 %v2382, 0.35355338
    %v2394 = vmul.f32 %v2385, 0.35355338
    %v2395 = vmul.f32 %v2388, 0.35355338
    %v2396 = vmul.f32 %v2391, 0.35355338
    %v2397 = vadd.f32 %v2393, %v85
    %v2398 = vadd.f32 %v2394, %v86
    %v2399 = vadd.f32 %v2395, %v87
    %v2400 = vadd.f32 %v2396, %v88
    %v2401 = vsel %vm118, %v2397, -inf
    %2402 = vmax.xlane.f32.xlu0 %v2401
    %v2403 = vpop.xlane.xlu0 %2402
    %v2404 = vsel %vm118, %v2398, -inf
    %2405 = vmax.xlane.f32.xlu0 %v2404
    %v2406 = vpop.xlane.xlu0 %2405
    %v2407 = vsel %vm118, %v2399, -inf
    %2408 = vmax.xlane.f32.xlu0 %v2407
    %v2409 = vpop.xlane.xlu0 %2408
    %v2410 = vsel %vm118, %v2400, -inf
    %2411 = vmax.xlane.f32.xlu0 %v2410
    %v2412 = vpop.xlane.xlu0 %2411
    %v2413 = vsub.f32 %v2397, %v2403
    %v2414 = vsub.f32 %v2398, %v2406
    %v2415 = vsub.f32 %v2399, %v2409
    %v2416 = vsub.f32 %v2400, %v2412
    %v2417 = vmul.f32 %v2413, 1.442695
    %v2418 = vpow.pop %v2417
    %v2419 = vmul.f32 %v2414, 1.442695
    %v2420 = vpow.pop %v2419
    %v2421 = vmul.f32 %v2415, 1.442695
    %v2422 = vpow.pop %v2421
    %v2423 = vmul.f32 %v2416, 1.442695
    %v2424 = vpow.pop %v2423
    %v2425 = vsel %vm118, %v2418, 0.0
    %2426 = vadd.xlane.f32.xlu0 %v2425
    %v2427 = vpop.xlane.xlu0 %2426
    %v2428 = vsel %vm118, %v2420, 0.0
    %2429 = vadd.xlane.f32.xlu0 %v2428
    %v2430 = vpop.xlane.xlu0 %2429
    %v2431 = vsel %vm118, %v2422, 0.0
    %2432 = vadd.xlane.f32.xlu0 %v2431
    %v2433 = vpop.xlane.xlu0 %2432
    %v2434 = vsel %vm118, %v2424, 0.0
    %2435 = vadd.xlane.f32.xlu0 %v2434
    %v2436 = vpop.xlane.xlu0 %2435
    %v2437 = vrcp.pop %v2427
    %v2438 = vmul.f32 %v2427, %v2437
    %v2439 = vsub.f32 1.0, %v2438
    %v2440 = vmul.f32 %v2437, %v2439
    %v2441 = vadd.f32 %v2437, %v2440
    %vm2442 = vweird.f32 %v2427
    %vm2443 = vweird.f32 %v2437
    %vm2444 = vmor %vm2442, %vm2443
    %v2445 = vsel %vm2444, %v2437, %v2441
    %v2446 = vand.u32 2147483647, %v2427
    %vm2447 = vcmp.eq.f32.partialorder %v2446, 8.507059e+37
    %v2448 = vand.u32 %v2427, 2147483648
    %v2449 = vor.u32 1.1754944e-38, %v2448
    %v2450 = vsel %vm2447, %v2449, %v2445
    %v2451 = vmul.f32 %v2418, %v2450
    %v2452 = vrcp.pop %v2430
    %v2453 = vmul.f32 %v2430, %v2452
    %v2454 = vsub.f32 1.0, %v2453
    %v2455 = vmul.f32 %v2452, %v2454
    %v2456 = vadd.f32 %v2452, %v2455
    %vm2457 = vweird.f32 %v2430
    %vm2458 = vweird.f32 %v2452
    %vm2459 = vmor %vm2457, %vm2458
    %v2460 = vsel %vm2459, %v2452, %v2456
    %v2461 = vand.u32 2147483647, %v2430
    %vm2462 = vcmp.eq.f32.partialorder %v2461, 8.507059e+37
    %v2463 = vand.u32 %v2430, 2147483648
    %v2464 = vor.u32 1.1754944e-38, %v2463
    %v2465 = vsel %vm2462, %v2464, %v2460
    %v2466 = vmul.f32 %v2420, %v2465
    %v2467 = vrcp.pop %v2433
    %v2468 = vmul.f32 %v2433, %v2467
    %v2469 = vsub.f32 1.0, %v2468
    %v2470 = vmul.f32 %v2467, %v2469
    %v2471 = vadd.f32 %v2467, %v2470
    %vm2472 = vweird.f32 %v2433
    %vm2473 = vweird.f32 %v2467
    %vm2474 = vmor %vm2472, %vm2473
    %v2475 = vsel %vm2474, %v2467, %v2471
    %v2476 = vand.u32 2147483647, %v2433
    %vm2477 = vcmp.eq.f32.partialorder %v2476, 8.507059e+37
    %v2478 = vand.u32 %v2433, 2147483648
    %v2479 = vor.u32 1.1754944e-38, %v2478
    %v2480 = vsel %vm2477, %v2479, %v2475
    %v2481 = vmul.f32 %v2422, %v2480
    %v2482 = vrcp.pop %v2436
    %v2483 = vmul.f32 %v2436, %v2482
    %v2484 = vsub.f32 1.0, %v2483
    %v2485 = vmul.f32 %v2482, %v2484
    %v2486 = vadd.f32 %v2482, %v2485
    %vm2487 = vweird.f32 %v2436
    %vm2488 = vweird.f32 %v2482
    %vm2489 = vmor %vm2487, %vm2488
    %v2490 = vsel %vm2489, %v2482, %v2486
    %v2491 = vand.u32 2147483647, %v2436
    %vm2492 = vcmp.eq.f32.partialorder %v2491, 8.507059e+37
    %v2493 = vand.u32 %v2436, 2147483648
    %v2494 = vor.u32 1.1754944e-38, %v2493
    %v2495 = vsel %vm2492, %v2494, %v2490
    %v2496 = vmul.f32 %v2424, %v2495
    %2497 = vrot.lane.b32.xlu0 %v1671, 40
    %v2498 = vpop.permute.xlu0 %2497
    %2499 = vrot.lane.b32.xlu0 %v1674, 40
    %v2500 = vpop.permute.xlu0 %2499
    %2501 = vrot.lane.b32.xlu0 %v1677, 40
    %v2502 = vpop.permute.xlu0 %2501
    %2503 = vrot.lane.b32.xlu0 %v1680, 40
    %v2504 = vpop.permute.xlu0 %2503
    %v2510 = vsel %vm118, %v2451, 0
    %v2513 = vsel %vm118, %v2466, 0
    %v2516 = vsel %vm118, %v2481, 0
    %v2519 = vsel %vm118, %v2496, 0
    %2521 = vmatpush.msra.mxu0 0.0
    %2522 = vmatpush.msra.mxu0 0.0
    %2523 = vmatpush.msra.mxu0 0.0
    %2524 = vmatpush.msra.mxu0 0.0
    %2525 = vmatpush.msra.mxu0 0.0
    %2526 = vmatpush.msra.mxu0 0.0
    %2527 = vmatpush.msra.mxu0 0.0
    %2528 = vmatpush.msra.mxu0 0.0
    %2529 = vmatpush.msra.mxu0 0.0
    %2530 = vmatpush.msra.mxu0 0.0
    %2531 = vmatpush.msra.mxu0 0.0
    %2532 = vmatpush.msra.mxu0 0.0
    %2533 = vmatpush.msra.mxu0 %v2504
    %2534 = vmatpush.msra.mxu0 %v2502
    %2535 = vmatpush.msra.mxu0 %v2500
    %2536 = vmatpush.msra.mxu0 %v2498
    %2537 = vmatmul.f32.gmra.mxu0 %v2510
    %v2538 = vpop.f32.mrf.mxu0
    %v2539 = vadd.f32 0.0, %v2538
    %2540 = vmatmul.f32.gmra.mxu0 %v2513
    %v2541 = vpop.f32.mrf.mxu0
    %v2542 = vadd.f32 0.0, %v2541
    %2543 = vmatmul.f32.gmra.mxu0 %v2516
    %v2544 = vpop.f32.mrf.mxu0
    %v2545 = vadd.f32 0.0, %v2544
    %2546 = vmatmul.f32.gmra.mxu0 %v2519
    %v2547 = vpop.f32.mrf.mxu0
    %v2548 = vadd.f32 0.0, %v2547
    %2549 = vdwg.mxu0
    %2554 = vrot.lane.b32.xlu0 %v2103, 8
    %v2555 = vpop.permute.xlu0 %2554
    %2556 = vrot.lane.b32.xlu0 %v2106, 8
    %v2557 = vpop.permute.xlu0 %2556
    %2558 = vrot.lane.b32.xlu0 %v2109, 8
    %v2559 = vpop.permute.xlu0 %2558
    %2560 = vrot.lane.b32.xlu0 %v2112, 8
    %v2561 = vpop.permute.xlu0 %2560
    %2570 = vrot.lane.b32.xlu0 %v2321, 16
    %v2571 = vpop.permute.xlu0 %2570
    %2572 = vrot.lane.b32.xlu0 %v2324, 16
    %v2573 = vpop.permute.xlu0 %2572
    %2574 = vrot.lane.b32.xlu0 %v2327, 16
    %v2575 = vpop.permute.xlu0 %2574
    %2576 = vrot.lane.b32.xlu0 %v2330, 16
    %v2577 = vpop.permute.xlu0 %2576
    %2586 = vrot.lane.b32.xlu0 %v2539, 24
    %v2587 = vpop.permute.xlu0 %2586
    %2588 = vrot.lane.b32.xlu0 %v2542, 24
    %v2589 = vpop.permute.xlu0 %2588
    %2590 = vrot.lane.b32.xlu0 %v2545, 24
    %v2591 = vpop.permute.xlu0 %2590
    %2592 = vrot.lane.b32.xlu0 %v2548, 24
    %v2593 = vpop.permute.xlu0 %2592
    %v2598 = vsel %vm172, %v1885, %v2555
    %v2599 = vsel %vm172, %v1888, %v2557
    %v2600 = vsel %vm172, %v1891, %v2559
    %v2601 = vsel %vm172, %v1894, %v2561
    %v2602 = vsel %vm1081, %v2598, %v2571
    %v2603 = vsel %vm1081, %v2599, %v2573
    %v2604 = vsel %vm1081, %v2600, %v2575
    %v2605 = vsel %vm1081, %v2601, %v2577
    %v2606 = vsel %vm1086, %v2602, %v2587
    %v2607 = vsel %vm1086, %v2603, %v2589
    %v2608 = vsel %vm1086, %v2604, %v2591
    %v2609 = vsel %vm1086, %v2605, %v2593
    %v2610 = vperm.slane %v1633, 0
    %v2612 = vsel %vm118, %v2606, 0
    %v2615 = vsel %vm118, %v2607, 0
    %v2618 = vsel %vm118, %v2608, 0
    %v2621 = vsel %vm118, %v2609, 0
    %2623 = vmatpush.msra.mxu0 0.0
    %2624 = vmatpush.msra.mxu0 0.0
    %2625 = vmatpush.msra.mxu0 0.0
    %2626 = vmatpush.msra.mxu0 0.0
    %2627 = vmatpush.msra.mxu0 0.0
    %2628 = vmatpush.msra.mxu0 0.0
    %2629 = vmatpush.msra.mxu0 0.0
    %2630 = vmatpush.msra.mxu0 0.0
    %2631 = vmatpush.msra.mxu0 0.0
    %2632 = vmatpush.msra.mxu0 0.0
    %2633 = vmatpush.msra.mxu0 0.0
    %2634 = vmatpush.msra.mxu0 0.0
    %2635 = vmatpush.msra.mxu0 %v1619
    %2636 = vmatpush.msra.mxu0 %v1618
    %2637 = vmatpush.msra.mxu0 %v1617
    %2638 = vmatpush.msra.mxu0 %v1616
    %2639 = vmatmul.f32.gmra.mxu0 %v2612
    %v2640 = vpop.f32.mrf.mxu0
    %v2641 = vadd.f32 %v2610, %v2640
    %2642 = vmatmul.f32.gmra.mxu0 %v2615
    %v2643 = vpop.f32.mrf.mxu0
    %v2644 = vadd.f32 %v2610, %v2643
    %2645 = vmatmul.f32.gmra.mxu0 %v2618
    %v2646 = vpop.f32.mrf.mxu0
    %v2647 = vadd.f32 %v2610, %v2646
    %2648 = vmatmul.f32.gmra.mxu0 %v2621
    %v2649 = vpop.f32.mrf.mxu0
    %v2650 = vadd.f32 %v2610, %v2649
    %2651 = vdwg.mxu0
    %v2652 = vadd.f32 %v2641, %v1608
    %v2653 = vadd.f32 %v2644, %v1609
    %v2654 = vadd.f32 %v2647, %v1610
    %v2655 = vadd.f32 %v2650, %v1611
    %v2656 = vsel %vm118, %v2652, 0.0
    %2657 = vadd.xlane.f32.xlu0 %v2656
    %v2658 = vpop.xlane.xlu0 %2657
    %v2659 = vsel %vm118, %v2653, 0.0
    %2660 = vadd.xlane.f32.xlu0 %v2659
    %v2661 = vpop.xlane.xlu0 %2660
    %v2662 = vsel %vm118, %v2654, 0.0
    %2663 = vadd.xlane.f32.xlu0 %v2662
    %v2664 = vpop.xlane.xlu0 %2663
    %v2665 = vsel %vm118, %v2655, 0.0
    %2666 = vadd.xlane.f32.xlu0 %v2665
    %v2667 = vpop.xlane.xlu0 %2666
    %v2668 = vmul.f32 %v2658, %v1155
    %v2669 = vmul.f32 %v2661, %v1155
    %v2670 = vmul.f32 %v2664, %v1155
    %v2671 = vmul.f32 %v2667, %v1155
    %v2672 = vsub.f32 %v2652, %v2668
    %v2673 = vsub.f32 %v2653, %v2669
    %v2674 = vsub.f32 %v2654, %v2670
    %v2675 = vsub.f32 %v2655, %v2671
    %v2676 = vmul.f32 %v2672, %v2672
    %v2677 = vmul.f32 %v2673, %v2673
    %v2678 = vmul.f32 %v2674, %v2674
    %v2679 = vmul.f32 %v2675, %v2675
    %v2680 = vsel %vm118, %v2676, 0.0
    %2681 = vadd.xlane.f32.xlu0 %v2680
    %v2682 = vpop.xlane.xlu0 %2681
    %v2683 = vsel %vm118, %v2677, 0.0
    %2684 = vadd.xlane.f32.xlu0 %v2683
    %v2685 = vpop.xlane.xlu0 %2684
    %v2686 = vsel %vm118, %v2678, 0.0
    %2687 = vadd.xlane.f32.xlu0 %v2686
    %v2688 = vpop.xlane.xlu0 %2687
    %v2689 = vsel %vm118, %v2679, 0.0
    %2690 = vadd.xlane.f32.xlu0 %v2689
    %v2691 = vpop.xlane.xlu0 %2690
    %v2692 = vmul.f32 %v2682, %v1155
    %v2693 = vmul.f32 %v2685, %v1155
    %v2694 = vmul.f32 %v2688, %v1155
    %v2695 = vmul.f32 %v2691, %v1155
    %v2696 = vadd.f32 %v2692, 1e-12
    %v2697 = vadd.f32 %v2693, 1e-12
    %v2698 = vadd.f32 %v2694, 1e-12
    %v2699 = vadd.f32 %v2695, 1e-12
    %v2700 = vrsqrt.pop %v2696
    %v2701 = vmul.f32 %v2700, %v2696
    %v2702 = vmul.f32 %v2701, %v2700
    %v2703 = vmul.f32 0.5, %v2702
    %v2704 = vsub.f32 1.5, %v2703
    %v2705 = vmul.f32 %v2700, %v2704
    %vm2706 = vweird.f32 %v2696
    %vm2707 = vweird.f32 %v2700
    %vm2708 = vmor %vm2706, %vm2707
    %v2709 = vsel %vm2708, %v2700, %v2705
    %v2710 = vrsqrt.pop %v2697
    %v2711 = vmul.f32 %v2710, %v2697
    %v2712 = vmul.f32 %v2711, %v2710
    %v2713 = vmul.f32 0.5, %v2712
    %v2714 = vsub.f32 1.5, %v2713
    %v2715 = vmul.f32 %v2710, %v2714
    %vm2716 = vweird.f32 %v2697
    %vm2717 = vweird.f32 %v2710
    %vm2718 = vmor %vm2716, %vm2717
    %v2719 = vsel %vm2718, %v2710, %v2715
    %v2720 = vrsqrt.pop %v2698
    %v2721 = vmul.f32 %v2720, %v2698
    %v2722 = vmul.f32 %v2721, %v2720
    %v2723 = vmul.f32 0.5, %v2722
    %v2724 = vsub.f32 1.5, %v2723
    %v2725 = vmul.f32 %v2720, %v2724
    %vm2726 = vweird.f32 %v2698
    %vm2727 = vweird.f32 %v2720
    %vm2728 = vmor %vm2726, %vm2727
    %v2729 = vsel %vm2728, %v2720, %v2725
    %v2730 = vrsqrt.pop %v2699
    %v2731 = vmul.f32 %v2730, %v2699
    %v2732 = vmul.f32 %v2731, %v2730
    %v2733 = vmul.f32 0.5, %v2732
    %v2734 = vsub.f32 1.5, %v2733
    %v2735 = vmul.f32 %v2730, %v2734
    %vm2736 = vweird.f32 %v2699
    %vm2737 = vweird.f32 %v2730
    %vm2738 = vmor %vm2736, %vm2737
    %v2739 = vsel %vm2738, %v2730, %v2735
    %v2740 = vmul.f32 %v2672, %v2709
    %v2741 = vmul.f32 %v2673, %v2719
    %v2742 = vmul.f32 %v2674, %v2729
    %v2743 = vmul.f32 %v2675, %v2739
    %v2744 = vperm.slane %v1634, 0
    %v2745 = vmul.f32 %v2740, %v2744
    %v2746 = vmul.f32 %v2741, %v2744
    %v2747 = vmul.f32 %v2742, %v2744
    %v2748 = vmul.f32 %v2743, %v2744
    %v2749 = vperm.slane %v1635, 0
    %v2750 = vadd.f32 %v2745, %v2749
    %v2751 = vadd.f32 %v2746, %v2749
    %v2752 = vadd.f32 %v2747, %v2749
    %v2753 = vadd.f32 %v2748, %v2749
    %v2754 = vperm.slane %v1636, 0
    %v2756 = vsel %vm118, %v2750, 0
    %v2759 = vsel %vm118, %v2751, 0
    %v2762 = vsel %vm118, %v2752, 0
    %v2765 = vsel %vm118, %v2753, 0
    %2767 = vmatpush.msra.mxu0 0.0
    %2768 = vmatpush.msra.mxu0 0.0
    %2769 = vmatpush.msra.mxu0 0.0
    %2770 = vmatpush.msra.mxu0 0.0
    %2771 = vmatpush.msra.mxu0 0.0
    %2772 = vmatpush.msra.mxu0 0.0
    %2773 = vmatpush.msra.mxu0 0.0
    %2774 = vmatpush.msra.mxu0 0.0
    %2775 = vmatpush.msra.mxu0 0.0
    %2776 = vmatpush.msra.mxu0 0.0
    %2777 = vmatpush.msra.mxu0 0.0
    %2778 = vmatpush.msra.mxu0 0.0
    %2779 = vmatpush.msra.mxu0 %v1623
    %2780 = vmatpush.msra.mxu0 %v1622
    %2781 = vmatpush.msra.mxu0 %v1621
    %2782 = vmatpush.msra.mxu0 %v1620
    %2783 = vmatmul.f32.gmra.mxu0 %v2756
    %v2784 = vpop.f32.mrf.mxu0
    %v2785 = vadd.f32 %v2754, %v2784
    %2786 = vmatmul.f32.gmra.mxu0 %v2759
    %v2787 = vpop.f32.mrf.mxu0
    %v2788 = vadd.f32 %v2754, %v2787
    %2789 = vmatmul.f32.gmra.mxu0 %v2762
    %v2790 = vpop.f32.mrf.mxu0
    %v2791 = vadd.f32 %v2754, %v2790
    %2792 = vmatmul.f32.gmra.mxu0 %v2765
    %v2793 = vpop.f32.mrf.mxu0
    %v2794 = vadd.f32 %v2754, %v2793
    %2795 = vdwg.mxu0
    %v2796 = vmul.f32 %v2785, 0.5
    %v2797 = vmul.f32 %v2788, 0.5
    %v2798 = vmul.f32 %v2791, 0.5
    %v2799 = vmul.f32 %v2794, 0.5
    %v2800 = vmul.f32 %v2785, %v1294
    %v2801 = vmul.f32 %v2788, %v1294
    %v2802 = vmul.f32 %v2791, %v1294
    %v2803 = vmul.f32 %v2794, %v1294
    %v2804 = vmul.f32 %v2800, %v2800
    %v2805 = vmin.f32 16.0, %v2804
    %v2806 = vmul.f32 %v2805, 2.1237322e-06
    %v2807 = vadd.f32 %v2806, 0.00028619796
    %v2808 = vmul.f32 %v2805, %v2807
    %v2809 = vadd.f32 %v2808, 0.0036580483
    %v2810 = vmul.f32 %v2805, %v2809
    %v2811 = vadd.f32 %v2810, 0.05243302
    %v2812 = vmul.f32 %v2805, %v2811
    %v2813 = vadd.f32 %v2812, 0.18741608
    %v2814 = vmul.f32 %v2805, %v2813
    %v2815 = vadd.f32 %v2814, 1.1283791
    %v2816 = vmul.f32 %v2800, %v2815
    %v2817 = vmul.f32 %v2805, 3.8918573e-05
    %v2818 = vadd.f32 %v2817, 0.001143296
    %v2819 = vmul.f32 %v2805, %v2818
    %v2820 = vadd.f32 %v2819, 0.014752088
    %v2821 = vmul.f32 %v2805, %v2820
    %v2822 = vadd.f32 %v2821, 0.112945676
    %v2823 = vmul.f32 %v2805, %v2822
    %v2824 = vadd.f32 %v2823, 0.4994258
    %v2825 = vmul.f32 %v2805, %v2824
    %v2826 = vadd.f32 %v2825, 1.0
    %v2827 = vrcp.pop %v2826
    %v2828 = vmul.f32 %v2826, %v2827
    %v2829 = vsub.f32 1.0, %v2828
    %v2830 = vmul.f32 %v2827, %v2829
    %v2831 = vadd.f32 %v2827, %v2830
    %vm2832 = vweird.f32 %v2826
    %vm2833 = vweird.f32 %v2827
    %vm2834 = vmor %vm2832, %vm2833
    %v2835 = vsel %vm2834, %v2827, %v2831
    %v2836 = vand.u32 2147483647, %v2826
    %vm2837 = vcmp.eq.f32.partialorder %v2836, 8.507059e+37
    %v2838 = vand.u32 %v2826, 2147483648
    %v2839 = vor.u32 1.1754944e-38, %v2838
    %v2840 = vsel %vm2837, %v2839, %v2835
    %v2841 = vmul.f32 %v2816, %v2840
    %v2842 = vmin.f32 %v2841, 1.0
    %v2843 = vmax.f32 %v2842, -1.0
    %v2844 = vmul.f32 %v2801, %v2801
    %v2845 = vmin.f32 16.0, %v2844
    %v2846 = vmul.f32 %v2845, 2.1237322e-06
    %v2847 = vadd.f32 %v2846, 0.00028619796
    %v2848 = vmul.f32 %v2845, %v2847
    %v2849 = vadd.f32 %v2848, 0.0036580483
    %v2850 = vmul.f32 %v2845, %v2849
    %v2851 = vadd.f32 %v2850, 0.05243302
    %v2852 = vmul.f32 %v2845, %v2851
    %v2853 = vadd.f32 %v2852, 0.18741608
    %v2854 = vmul.f32 %v2845, %v2853
    %v2855 = vadd.f32 %v2854, 1.1283791
    %v2856 = vmul.f32 %v2801, %v2855
    %v2857 = vmul.f32 %v2845, 3.8918573e-05
    %v2858 = vadd.f32 %v2857, 0.001143296
    %v2859 = vmul.f32 %v2845, %v2858
    %v2860 = vadd.f32 %v2859, 0.014752088
    %v2861 = vmul.f32 %v2845, %v2860
    %v2862 = vadd.f32 %v2861, 0.112945676
    %v2863 = vmul.f32 %v2845, %v2862
    %v2864 = vadd.f32 %v2863, 0.4994258
    %v2865 = vmul.f32 %v2845, %v2864
    %v2866 = vadd.f32 %v2865, 1.0
    %v2867 = vrcp.pop %v2866
    %v2868 = vmul.f32 %v2866, %v2867
    %v2869 = vsub.f32 1.0, %v2868
    %v2870 = vmul.f32 %v2867, %v2869
    %v2871 = vadd.f32 %v2867, %v2870
    %vm2872 = vweird.f32 %v2866
    %vm2873 = vweird.f32 %v2867
    %vm2874 = vmor %vm2872, %vm2873
    %v2875 = vsel %vm2874, %v2867, %v2871
    %v2876 = vand.u32 2147483647, %v2866
    %vm2877 = vcmp.eq.f32.partialorder %v2876, 8.507059e+37
    %v2878 = vand.u32 %v2866, 2147483648
    %v2879 = vor.u32 1.1754944e-38, %v2878
    %v2880 = vsel %vm2877, %v2879, %v2875
    %v2881 = vmul.f32 %v2856, %v2880
    %v2882 = vmin.f32 %v2881, 1.0
    %v2883 = vmax.f32 %v2882, -1.0
    %v2884 = vmul.f32 %v2802, %v2802
    %v2885 = vmin.f32 16.0, %v2884
    %v2886 = vmul.f32 %v2885, 2.1237322e-06
    %v2887 = vadd.f32 %v2886, 0.00028619796
    %v2888 = vmul.f32 %v2885, %v2887
    %v2889 = vadd.f32 %v2888, 0.0036580483
    %v2890 = vmul.f32 %v2885, %v2889
    %v2891 = vadd.f32 %v2890, 0.05243302
    %v2892 = vmul.f32 %v2885, %v2891
    %v2893 = vadd.f32 %v2892, 0.18741608
    %v2894 = vmul.f32 %v2885, %v2893
    %v2895 = vadd.f32 %v2894, 1.1283791
    %v2896 = vmul.f32 %v2802, %v2895
    %v2897 = vmul.f32 %v2885, 3.8918573e-05
    %v2898 = vadd.f32 %v2897, 0.001143296
    %v2899 = vmul.f32 %v2885, %v2898
    %v2900 = vadd.f32 %v2899, 0.014752088
    %v2901 = vmul.f32 %v2885, %v2900
    %v2902 = vadd.f32 %v2901, 0.112945676
    %v2903 = vmul.f32 %v2885, %v2902
    %v2904 = vadd.f32 %v2903, 0.4994258
    %v2905 = vmul.f32 %v2885, %v2904
    %v2906 = vadd.f32 %v2905, 1.0
    %v2907 = vrcp.pop %v2906
    %v2908 = vmul.f32 %v2906, %v2907
    %v2909 = vsub.f32 1.0, %v2908
    %v2910 = vmul.f32 %v2907, %v2909
    %v2911 = vadd.f32 %v2907, %v2910
    %vm2912 = vweird.f32 %v2906
    %vm2913 = vweird.f32 %v2907
    %vm2914 = vmor %vm2912, %vm2913
    %v2915 = vsel %vm2914, %v2907, %v2911
    %v2916 = vand.u32 2147483647, %v2906
    %vm2917 = vcmp.eq.f32.partialorder %v2916, 8.507059e+37
    %v2918 = vand.u32 %v2906, 2147483648
    %v2919 = vor.u32 1.1754944e-38, %v2918
    %v2920 = vsel %vm2917, %v2919, %v2915
    %v2921 = vmul.f32 %v2896, %v2920
    %v2922 = vmin.f32 %v2921, 1.0
    %v2923 = vmax.f32 %v2922, -1.0
    %v2924 = vmul.f32 %v2803, %v2803
    %v2925 = vmin.f32 16.0, %v2924
    %v2926 = vmul.f32 %v2925, 2.1237322e-06
    %v2927 = vadd.f32 %v2926, 0.00028619796
    %v2928 = vmul.f32 %v2925, %v2927
    %v2929 = vadd.f32 %v2928, 0.0036580483
    %v2930 = vmul.f32 %v2925, %v2929
    %v2931 = vadd.f32 %v2930, 0.05243302
    %v2932 = vmul.f32 %v2925, %v2931
    %v2933 = vadd.f32 %v2932, 0.18741608
    %v2934 = vmul.f32 %v2925, %v2933
    %v2935 = vadd.f32 %v2934, 1.1283791
    %v2936 = vmul.f32 %v2803, %v2935
    %v2937 = vmul.f32 %v2925, 3.8918573e-05
    %v2938 = vadd.f32 %v2937, 0.001143296
    %v2939 = vmul.f32 %v2925, %v2938
    %v2940 = vadd.f32 %v2939, 0.014752088
    %v2941 = vmul.f32 %v2925, %v2940
    %v2942 = vadd.f32 %v2941, 0.112945676
    %v2943 = vmul.f32 %v2925, %v2942
    %v2944 = vadd.f32 %v2943, 0.4994258
    %v2945 = vmul.f32 %v2925, %v2944
    %v2946 = vadd.f32 %v2945, 1.0
    %v2947 = vrcp.pop %v2946
    %v2948 = vmul.f32 %v2946, %v2947
    %v2949 = vsub.f32 1.0, %v2948
    %v2950 = vmul.f32 %v2947, %v2949
    %v2951 = vadd.f32 %v2947, %v2950
    %vm2952 = vweird.f32 %v2946
    %vm2953 = vweird.f32 %v2947
    %vm2954 = vmor %vm2952, %vm2953
    %v2955 = vsel %vm2954, %v2947, %v2951
    %v2956 = vand.u32 2147483647, %v2946
    %vm2957 = vcmp.eq.f32.partialorder %v2956, 8.507059e+37
    %v2958 = vand.u32 %v2946, 2147483648
    %v2959 = vor.u32 1.1754944e-38, %v2958
    %v2960 = vsel %vm2957, %v2959, %v2955
    %v2961 = vmul.f32 %v2936, %v2960
    %v2962 = vmin.f32 %v2961, 1.0
    %v2963 = vmax.f32 %v2962, -1.0
    %v2964 = vadd.f32 %v2843, 1.0
    %v2965 = vadd.f32 %v2883, 1.0
    %v2966 = vadd.f32 %v2923, 1.0
    %v2967 = vadd.f32 %v2963, 1.0
    %v2968 = vmul.f32 %v2796, %v2964
    %v2969 = vmul.f32 %v2797, %v2965
    %v2970 = vmul.f32 %v2798, %v2966
    %v2971 = vmul.f32 %v2799, %v2967
    %v2972 = vperm.slane %v1637, 0
    %v2974 = vsel %vm1468, %v2968, 0
    %v2977 = vsel %vm1468, %v2969, 0
    %v2980 = vsel %vm1468, %v2970, 0
    %v2983 = vsel %vm1468, %v2971, 0
    %2985 = vmatpush.msra.mxu0 0.0
    %2986 = vmatpush.msra.mxu0 0.0
    %2987 = vmatpush.msra.mxu0 0.0
    %2988 = vmatpush.msra.mxu0 0.0
    %2989 = vmatpush.msra.mxu0 0.0
    %2990 = vmatpush.msra.mxu0 0.0
    %2991 = vmatpush.msra.mxu0 0.0
    %2992 = vmatpush.msra.mxu0 0.0
    %2993 = vmatpush.msra.mxu0 %v1631
    %2994 = vmatpush.msra.mxu0 %v1630
    %2995 = vmatpush.msra.mxu0 %v1629
    %2996 = vmatpush.msra.mxu0 %v1628
    %2997 = vmatpush.msra.mxu0 %v1627
    %2998 = vmatpush.msra.mxu0 %v1626
    %2999 = vmatpush.msra.mxu0 %v1625
    %3000 = vmatpush.msra.mxu0 %v1624
    %3001 = vmatmul.f32.gmra.mxu0 %v2974
    %v3002 = vpop.f32.mrf.mxu0
    %v3003 = vadd.f32 %v2972, %v3002
    %3004 = vmatmul.f32.gmra.mxu0 %v2977
    %v3005 = vpop.f32.mrf.mxu0
    %v3006 = vadd.f32 %v2972, %v3005
    %3007 = vmatmul.f32.gmra.mxu0 %v2980
    %v3008 = vpop.f32.mrf.mxu0
    %v3009 = vadd.f32 %v2972, %v3008
    %3010 = vmatmul.f32.gmra.mxu0 %v2983
    %v3011 = vpop.f32.mrf.mxu0
    %v3012 = vadd.f32 %v2972, %v3011
    %3013 = vdwg.mxu0
    %v3014 = vadd.f32 %v3003, %v2750
    %v3015 = vadd.f32 %v3006, %v2751
    %v3016 = vadd.f32 %v3009, %v2752
    %v3017 = vadd.f32 %v3012, %v2753
    %v3018 = vsel %vm118, %v3014, 0.0
    %3019 = vadd.xlane.f32.xlu0 %v3018
    %v3020 = vpop.xlane.xlu0 %3019
    %v3021 = vsel %vm118, %v3015, 0.0
    %3022 = vadd.xlane.f32.xlu0 %v3021
    %v3023 = vpop.xlane.xlu0 %3022
    %v3024 = vsel %vm118, %v3016, 0.0
    %3025 = vadd.xlane.f32.xlu0 %v3024
    %v3026 = vpop.xlane.xlu0 %3025
    %v3027 = vsel %vm118, %v3017, 0.0
    %3028 = vadd.xlane.f32.xlu0 %v3027
    %v3029 = vpop.xlane.xlu0 %3028
    %v3030 = vmul.f32 %v3020, %v1155
    %v3031 = vmul.f32 %v3023, %v1155
    %v3032 = vmul.f32 %v3026, %v1155
    %v3033 = vmul.f32 %v3029, %v1155
    %v3034 = vsub.f32 %v3014, %v3030
    %v3035 = vsub.f32 %v3015, %v3031
    %v3036 = vsub.f32 %v3016, %v3032
    %v3037 = vsub.f32 %v3017, %v3033
    %v3038 = vmul.f32 %v3034, %v3034
    %v3039 = vmul.f32 %v3035, %v3035
    %v3040 = vmul.f32 %v3036, %v3036
    %v3041 = vmul.f32 %v3037, %v3037
    %v3042 = vsel %vm118, %v3038, 0.0
    %3043 = vadd.xlane.f32.xlu0 %v3042
    %v3044 = vpop.xlane.xlu0 %3043
    %v3045 = vsel %vm118, %v3039, 0.0
    %3046 = vadd.xlane.f32.xlu0 %v3045
    %v3047 = vpop.xlane.xlu0 %3046
    %v3048 = vsel %vm118, %v3040, 0.0
    %3049 = vadd.xlane.f32.xlu0 %v3048
    %v3050 = vpop.xlane.xlu0 %3049
    %v3051 = vsel %vm118, %v3041, 0.0
    %3052 = vadd.xlane.f32.xlu0 %v3051
    %v3053 = vpop.xlane.xlu0 %3052
    %v3054 = vmul.f32 %v3044, %v1155
    %v3055 = vmul.f32 %v3047, %v1155
    %v3056 = vmul.f32 %v3050, %v1155
    %v3057 = vmul.f32 %v3053, %v1155
    %v3058 = vadd.f32 %v3054, 1e-12
    %v3059 = vadd.f32 %v3055, 1e-12
    %v3060 = vadd.f32 %v3056, 1e-12
    %v3061 = vadd.f32 %v3057, 1e-12
    %v3062 = vrsqrt.pop %v3058
    %v3063 = vmul.f32 %v3062, %v3058
    %v3064 = vmul.f32 %v3063, %v3062
    %v3065 = vmul.f32 0.5, %v3064
    %v3066 = vsub.f32 1.5, %v3065
    %v3067 = vmul.f32 %v3062, %v3066
    %vm3068 = vweird.f32 %v3058
    %vm3069 = vweird.f32 %v3062
    %vm3070 = vmor %vm3068, %vm3069
    %v3071 = vsel %vm3070, %v3062, %v3067
    %v3072 = vrsqrt.pop %v3059
    %v3073 = vmul.f32 %v3072, %v3059
    %v3074 = vmul.f32 %v3073, %v3072
    %v3075 = vmul.f32 0.5, %v3074
    %v3076 = vsub.f32 1.5, %v3075
    %v3077 = vmul.f32 %v3072, %v3076
    %vm3078 = vweird.f32 %v3059
    %vm3079 = vweird.f32 %v3072
    %vm3080 = vmor %vm3078, %vm3079
    %v3081 = vsel %vm3080, %v3072, %v3077
    %v3082 = vrsqrt.pop %v3060
    %v3083 = vmul.f32 %v3082, %v3060
    %v3084 = vmul.f32 %v3083, %v3082
    %v3085 = vmul.f32 0.5, %v3084
    %v3086 = vsub.f32 1.5, %v3085
    %v3087 = vmul.f32 %v3082, %v3086
    %vm3088 = vweird.f32 %v3060
    %vm3089 = vweird.f32 %v3082
    %vm3090 = vmor %vm3088, %vm3089
    %v3091 = vsel %vm3090, %v3082, %v3087
    %v3092 = vrsqrt.pop %v3061
    %v3093 = vmul.f32 %v3092, %v3061
    %v3094 = vmul.f32 %v3093, %v3092
    %v3095 = vmul.f32 0.5, %v3094
    %v3096 = vsub.f32 1.5, %v3095
    %v3097 = vmul.f32 %v3092, %v3096
    %vm3098 = vweird.f32 %v3061
    %vm3099 = vweird.f32 %v3092
    %vm3100 = vmor %vm3098, %vm3099
    %v3101 = vsel %vm3100, %v3092, %v3097
    %v3102 = vmul.f32 %v3034, %v3071
    %v3103 = vmul.f32 %v3035, %v3081
    %v3104 = vmul.f32 %v3036, %v3091
    %v3105 = vmul.f32 %v3037, %v3101
    %v3106 = vperm.slane %v1638, 0
    %v3107 = vmul.f32 %v3102, %v3106
    %v3108 = vmul.f32 %v3103, %v3106
    %v3109 = vmul.f32 %v3104, %v3106
    %v3110 = vmul.f32 %v3105, %v3106
    %v3111 = vperm.slane %v1639, 0
    %v3112 = vadd.f32 %v3107, %v3111
    %v3113 = vadd.f32 %v3108, %v3111
    %v3114 = vadd.f32 %v3109, %v3111
    %v3115 = vadd.f32 %v3110, %v3111
    %v3116 = vld [vmem:[#allocation7 + $0x140] sm:$0xff]
    %v3117 = vld [vmem:[#allocation7 + $0x148] sm:$0xff]
    %v3118 = vld [vmem:[#allocation7 + $0x150] sm:$0xff]
    %v3119 = vld [vmem:[#allocation7 + $0x158] sm:$0xff]
    %v3120 = vld [vmem:[#allocation8 + $0x10] sm:$0x1]
    %v3121 = vperm.slane %v3120, 0
    %v3123 = vsel %vm118, %v3112, 0
    %v3126 = vsel %vm118, %v3113, 0
    %v3129 = vsel %vm118, %v3114, 0
    %v3132 = vsel %vm118, %v3115, 0
    %3134 = vmatpush.msra.mxu0 0.0
    %3135 = vmatpush.msra.mxu0 0.0
    %3136 = vmatpush.msra.mxu0 0.0
    %3137 = vmatpush.msra.mxu0 0.0
    %3138 = vmatpush.msra.mxu0 0.0
    %3139 = vmatpush.msra.mxu0 0.0
    %3140 = vmatpush.msra.mxu0 0.0
    %3141 = vmatpush.msra.mxu0 0.0
    %3142 = vmatpush.msra.mxu0 0.0
    %3143 = vmatpush.msra.mxu0 0.0
    %3144 = vmatpush.msra.mxu0 0.0
    %3145 = vmatpush.msra.mxu0 0.0
    %3146 = vmatpush.msra.mxu0 %v3119
    %3147 = vmatpush.msra.mxu0 %v3118
    %3148 = vmatpush.msra.mxu0 %v3117
    %3149 = vmatpush.msra.mxu0 %v3116
    %3150 = vmatmul.f32.gmra.mxu0 %v3123
    %v3151 = vpop.f32.mrf.mxu0
    %v3152 = vadd.f32 %v3121, %v3151
    %3153 = vmatmul.f32.gmra.mxu0 %v3126
    %v3154 = vpop.f32.mrf.mxu0
    %3155 = vmatmul.f32.gmra.mxu0 %v3129
    %v3156 = vpop.f32.mrf.mxu0
    %v3157 = vadd.f32 %v3121, %v3156
    %3158 = vmatmul.f32.gmra.mxu0 %v3132
    %v3159 = vpop.f32.mrf.mxu0
    %3160 = vdwg.mxu0
    %v3162 = vrot.slane %v3157, 7
    %vm3164 = vcmask 1040384
    %v3165 = vsel %vm3164, %v3152, %v3162
    %v3166 = vtanh.pop %v3165
    %vm3167 = vcmask 254976
    %3168 = vst.msk [vmem:[#allocation10] sm:$0x3] %vm3167, %v3166
    // Predicated region
    $region34: #{tpu_custom_call.1} parent=1 // pred_check
      _
    $region35: #{tpu_custom_call.1} parent=1 // pred_check_branch
      %3170 = sbr.rel (0) target = $region37
    $region36: #{tpu_custom_call.1} parent=1 // pred_region
      %3172 = vsyncadd [#allocation4], 0
      %s3174 = sshll.u32 [#allocation10], 4
      %s3175 = int_to_ptr.vmem [resolvable:$true] %s3174
      %s3176 = sshll.u32 %s4, 4
      %s3177 = int_to_ptr.hbm [resolvable:$true] %s3176
      %3179 = dma.vmem_to_hbm [thread:$0]  %s3175, 32, %s3177, [#allocation4]
    $region37: #{tpu_custom_call.1} parent=1 // pred_fallthru
      _
    // Predicated region
    $region38: #{tpu_custom_call.1} parent=1 // pred_check
      _
    $region39: #{tpu_custom_call.1} parent=1 // pred_check_branch
      %3181 = sbr.rel (0) target = $region41
    $region40: #{tpu_custom_call.1} parent=1 // pred_region
      %3183 = dma.done [#allocation4], 32
    $region41: #{tpu_custom_call.1} parent=1 // pred_fallthru
      _
    %3184 = vsyncpa [#allocation3], 1
    %3185 = vsyncpa [#allocation6], 1
    %3186 = vsyncpa [#allocation9], 1
    %3187 = vsyncpa [#allocation4], 1

</llo_original>
